<compile_context>
chip_gen: v5e
topology: v5e:2x2
jax: 0.10.0
libtpu: 0.0.40
codegen_flags: <defaults>
</compile_context>

<pallas_src>
import functools

import jax
import jax.numpy as jnp
from jax.experimental import pallas as pl
from jax.experimental.pallas import tpu as pltpu


# ----------------------------------------------------------------------------
# Pallas kernel: fused DoubleConv = (conv3x3 + folded BN + ReLU) x 2
# ----------------------------------------------------------------------------
def _zero_pad_rows(ref, H, W, Wp):
    """Zero every padding position of an (R, C) flattened padded image ref.

    Flat row r <-> padded pixel (r // Wp, r % Wp) with Wp = W + 2, followed by
    two overflow rows.  Real data lives at rows (y+1)*Wp + 1 .. (y+1)*Wp + W.
    Only halo rows and the left/right padding-column pairs are written, so this
    is much cheaper than a full-buffer memset.
    """
    L = H * Wp
    R, C = ref.shape
    ref[0:Wp + 1, :] = jnp.zeros((Wp + 1, C), ref.dtype)              # top row + (1,0)
    ref[Wp + 1 + L:R, :] = jnp.zeros((R - Wp - 1 - L, C), ref.dtype)  # bottom rows
    z2 = jnp.zeros((2, C), ref.dtype)
    for y in range(1, H + 1):                                         # (y,W+1) and (y+1,0)
        ref[y * Wp + W + 1:y * Wp + W + 3, :] = z2


def _double_conv_kernel(x_ref, w1_ref, b1_ref, w2_ref, b2_ref, of_ref,
                        xpad_ref, mid_ref, *, H, W, Wp):
    """Grid = (batch, cout-blocks of conv2).  Shapes per grid step:
      x_ref   : (H, W, cin)        bf16  unpadded NHWC input
      w1_ref  : (3, 3*cin, cmid)   bf16  conv1 weights (BN folded); ky-major,
                                         the 3 x-taps stacked into the K dim
      b1_ref  : (1, cmid)          f32
      w2_ref  : (3, 3*cmid, tcout) bf16  conv2 weights, cout block j
      b2_ref  : (1, tcout)         f32
      of_ref  : (H, W, tcout)      bf16  unpadded NHWC output, cout block j
      xpad_ref: (R, cin)           bf16  scratch: padded image, rows flattened
      mid_ref : (R, cmid)          bf16  scratch: padded conv1 activation
    """
    j = pl.program_id(1)
    L = H * Wp

    def conv3x3(src_ref, w_ref):
        # 3 MXU matmuls with K = 3 * C_in: the 3 x-taps of each kernel row are
        # contiguous row-shifted slices of the flattened padded image, stacked
        # into the contraction dimension.
        acc = jnp.zeros((L, w_ref.shape[2]), jnp.float32)
        for ky in range(3):
            off = ky * Wp
            lhs = jnp.concatenate(
                [src_ref[off + kx:off + kx + L, :] for kx in range(3)], axis=-1)
            acc = acc + jnp.dot(lhs, w_ref[ky],
                                preferred_element_type=jnp.float32)
        return acc

    # ---- conv1 (+BN+ReLU): once per image, on the first cout block ---------
    @pl.when(j == 0)
    def _():
        for y in range(H):                        # stage padded image in VMEM
            xpad_ref[(y + 1) * Wp + 1:(y + 1) * Wp + 1 + W, :] = x_ref[y]
        _zero_pad_rows(xpad_ref, H, W, Wp)

        h1 = jnp.maximum(conv3x3(xpad_ref, w1_ref) + b1_ref[...], 0.0)
        # Store the interior, then overwrite the junk columns (which land
        # exactly on conv2's left/right padding positions) and halos with 0.
        mid_ref[Wp + 1:Wp + 1 + L, :] = h1.astype(mid_ref.dtype)
        _zero_pad_rows(mid_ref, H, W, Wp)

    # ---- conv2 (+BN+ReLU) for this cout block ------------------------------
    out = jnp.maximum(conv3x3(mid_ref, w2_ref) + b2_ref[...], 0.0)
    out = out.astype(of_ref.dtype)
    for y in range(H):                            # drop the 2 junk cols per row
        of_ref[y] = out[y * Wp:y * Wp + W, :]


def double_conv(x_nhwc, p):
    """DoubleConv(cin -> cmid -> cout) as one fused Pallas kernel.

    grid = (batch, cout // tcout): conv2's weights are streamed one cout tile
    at a time (double-buffered, so the next tile's DMA overlaps the current
    tile's matmuls); conv1 runs on tile 0 and its padded activation stays in
    VMEM scratch for the remaining tiles.
    """
    N, H, W, cin = x_nhwc.shape
    cmid = p["w1"].shape[2]
    cout = p["w2"].shape[2]
    Wp = W + 2
    R = (H + 2) * Wp + 2
    tcout = min(128, cout)
    n_j = cout // tcout

    x = x_nhwc.astype(jnp.bfloat16)
    const = dict(pipeline_mode=pl.Buffered(1))    # constant index -> single buffer

    return pl.pallas_call(
        functools.partial(_double_conv_kernel, H=H, W=W, Wp=Wp),
        out_shape=jax.ShapeDtypeStruct((N, H, W, cout), jnp.bfloat16),
        grid_spec=pltpu.PrefetchScalarGridSpec(
            num_scalar_prefetch=0,
            grid=(N, n_j),
            in_specs=[
                pl.BlockSpec((None, H, W, cin), lambda n, j: (n, 0, 0, 0)),
                pl.BlockSpec((3, 3 * cin, cmid), lambda n, j: (0, 0, 0), **const),
                pl.BlockSpec((1, cmid), lambda n, j: (0, 0), **const),
                pl.BlockSpec((3, 3 * cmid, tcout), lambda n, j: (0, 0, j)),
                pl.BlockSpec((1, tcout), lambda n, j: (0, j)),
            ],
            out_specs=pl.BlockSpec((None, H, W, tcout), lambda n, j: (n, 0, 0, j)),
            scratch_shapes=[
                pltpu.VMEM((R, cin), jnp.bfloat16),    # padded input image
                pltpu.VMEM((R, cmid), jnp.bfloat16),   # padded conv1 activation
            ],
        ),
        compiler_params=pltpu.CompilerParams(
            dimension_semantics=("parallel", "arbitrary"),
            vmem_limit_bytes=24 * 1024 * 1024),
    )(x, p["w1"], p["b1"], p["w2"], p["b2"])


# ----------------------------------------------------------------------------
# XLA glue: pooling, bilinear upsample, Up/Down blocks, OutConv, FFT
# ----------------------------------------------------------------------------
def maxpool2x(x):
    N, H, W, C = x.shape
    return x.reshape(N, H // 2, 2, W // 2, 2, C).max(axis=(2, 4))


def _interp_matrix_2x(s_in):
    """Matches nn.Upsample(scale_factor=2, mode='bilinear', align_corners=True)."""
    s_out = 2 * s_in
    if s_in == 1:
        return jnp.ones((s_out, 1), jnp.float32)
    src = jnp.arange(s_out, dtype=jnp.float32) * (s_in - 1) / (s_out - 1)
    i0 = jnp.clip(jnp.floor(src).astype(jnp.int32), 0, s_in - 2)
    frac = src - i0.astype(jnp.float32)
    return (jax.nn.one_hot(i0, s_in, dtype=jnp.float32) * (1.0 - frac)[:, None]
            + jax.nn.one_hot(i0 + 1, s_in, dtype=jnp.float32) * frac[:, None])


def upsample2x_bilinear(x):
    """2x bilinear upsample (align_corners=True) as two constant matmuls."""
    N, H, W, C = x.shape
    ah = _interp_matrix_2x(H).astype(x.dtype)
    aw = _interp_matrix_2x(W).astype(x.dtype)
    y = jnp.einsum("oh,nhwc->nowc", ah, x)
    return jnp.einsum("pw,nowc->nopc", aw, y)


def down(x, p):
    return double_conv(maxpool2x(x), p)


def up(x_small, x_skip, p):
    x_up = upsample2x_bilinear(x_small)
    # power-of-two spatial sizes -> the reference Up's F.pad(diffX, diffY) is a no-op
    # TODO(synk): fold this concat into the kernel (split w1 over cin) to drop
    # one HBM materialization per Up block.
    return double_conv(jnp.concatenate([x_skip, x_up], axis=-1), p)


def unet_forward(params, x_nchw, x_k=0, mask=0):
    x = jnp.transpose(x_nchw, (0, 2, 3, 1))          # NCHW -> NHWC
    x1 = double_conv(x, params["inc"])               # (N,16,16, 64)
    x2 = down(x1, params["down1"])                   # (N, 8, 8,128)
    x3 = down(x2, params["down2"])                   # (N, 4, 4,256)
    x4 = down(x3, params["down3"])                   # (N, 2, 2,512)
    x5 = down(x4, params["down4"])                   # (N, 1, 1,512)
    y = up(x5, x4, params["up1"])                    # (N, 2, 2,256)
    y = up(y, x3, params["up2"])                     # (N, 4, 4,128)
    y = up(y, x2, params["up3"])                     # (N, 8, 8, 64)
    y = up(y, x1, params["up4"])                     # (N,16,16, 64)
    # OutConv (1x1 conv to n_classes lanes): tiny, plain XLA.
    logits = (jnp.einsum("nhwc,co->nhwo", y.astype(jnp.float32),
                         params["outc"]["w"]) + params["outc"]["b"])
    logits = jnp.transpose(logits, (0, 3, 1, 2))     # NHWC -> NCHW
    # TODO(synk): fft_my is not defined in the reference; using an unshifted
    # jnp.fft.fftn over the last two (spatial) axes with default normalization.
    out_k_c = jnp.fft.fftn(logits, axes=(-2, -1))
    out_k = jnp.stack([out_k_c.real, out_k_c.imag], axis=1)
    return [logits, out_k]


# ----------------------------------------------------------------------------
# f32 XLA reference for one DoubleConv (layout sanity check of the kernel)
# ----------------------------------------------------------------------------
def _double_conv_ref(x_nhwc, p):
    def conv_bn_relu(x, w, b):
        cout = w.shape[2]
        cin = w.shape[1] // 3
        w_hwio = w.reshape(3, 3, cin, cout).astype(jnp.float32)
        y = jax.lax.conv_general_dilated(
            x.astype(jnp.float32), w_hwio, window_strides=(1, 1), padding="SAME",
            dimension_numbers=("NHWC", "HWIO", "NHWC"))
        return jnp.maximum(y + b.astype(jnp.float32), 0.0)
    return conv_bn_relu(conv_bn_relu(x_nhwc, p["w1"], p["b1"]), p["w2"], p["b2"])


# ----------------------------------------------------------------------------
# Deterministic synthetic parameters (conv + eval-mode BN, folded for the kernel)
# ----------------------------------------------------------------------------
def _fold_conv_bn(w_oihw, b, gamma, beta, mean, var, eps=1e-5):
    """Fold eval-mode BatchNorm into the conv; rearrange for the kernel:
    weights -> (3, 3*cin, cout) bf16 (ky-major, x-taps stacked into K),
    bias -> (1, cout) f32."""
    scale = gamma / jnp.sqrt(var + eps)
    w = w_oihw * scale[:, None, None, None]
    bias = (b - mean) * scale + beta
    cout, cin, kh, kw = w_oihw.shape
    w_t = jnp.transpose(w, (2, 3, 1, 0)).reshape(kh, kw * cin, cout)
    return w_t.astype(jnp.bfloat16), bias.reshape(1, cout).astype(jnp.float32)


def init_params(key, n_channels=2, n_classes=2):
    def conv_bn(k, cin, cout):
        kw_, kb_, kg_, kbe_ = jax.random.split(k, 4)
        fan = cin * 9
        w = jax.random.normal(kw_, (cout, cin, 3, 3), jnp.float32) / jnp.sqrt(fan)
        b = 0.01 * jax.random.normal(kb_, (cout,), jnp.float32)
        gamma = 1.0 + 0.1 * jax.random.normal(kg_, (cout,), jnp.float32)
        beta = 0.1 * jax.random.normal(kbe_, (cout,), jnp.float32)
        mean = jnp.zeros((cout,), jnp.float32)
        var = jnp.ones((cout,), jnp.float32)
        return _fold_conv_bn(w, b, gamma, beta, mean, var)

    def dconv(k, cin, cout):
        k1, k2 = jax.random.split(k)
        w1, b1 = conv_bn(k1, cin, cout)
        w2, b2 = conv_bn(k2, cout, cout)
        return dict(w1=w1, b1=b1, w2=w2, b2=b2)

    ks = jax.random.split(key, 11)
    return dict(
        inc=dconv(ks[0], n_channels, 64),
        down1=dconv(ks[1], 64, 128),
        down2=dconv(ks[2], 128, 256),
        down3=dconv(ks[3], 256, 512),
        down4=dconv(ks[4], 512, 512),
        up1=dconv(ks[5], 1024, 256),     # cat(x4:512, up(x5):512)
        up2=dconv(ks[6], 512, 128),      # cat(x3:256, 256)
        up3=dconv(ks[7], 256, 64),       # cat(x2:128, 128)
        up4=dconv(ks[8], 128, 64),       # cat(x1: 64,  64)
        outc=dict(
            w=jax.random.normal(ks[9], (64, n_classes), jnp.float32) / 8.0,
            b=0.01 * jax.random.normal(ks[10], (n_classes,), jnp.float32)),
    )


if __name__ == "__main__":
    key = jax.random.PRNGKey(0)
    kp, kx, kx2 = jax.random.split(key, 3)
    n_channels, n_classes = 2, 2
    params = init_params(kp, n_channels, n_classes)

    N, H, W = 2, 16, 16
    x = jax.random.normal(kx, (N, n_channels, H, W), jnp.float32)

    # --- layout sanity check of the fused kernel vs an f32 XLA reference -----
    x_nhwc = jnp.transpose(x, (0, 2, 3, 1))
    checks = (
        ("inc", x_nhwc),                                                   # n_j == 1 path
        ("down2", jax.random.normal(kx2, (N, 4, 4, 128), jnp.float32)),    # n_j == 2 path
    )
    for name, xin in checks:
        got = double_conv(xin, params[name]).astype(jnp.float32)
        ref = _double_conv_ref(xin, params[name])
        err = float(jnp.max(jnp.abs(got - ref)) / (jnp.max(jnp.abs(ref)) + 1e-6))
        assert err < 5e-2, f"{name}: DoubleConv mismatch (rel-max err {err:.3e})"

    fwd = jax.jit(unet_forward)
    logits, out_k = fwd(params, x)
    jax.block_until_ready((logits, out_k))

    assert logits.shape == (N, n_classes, H, W)
    assert out_k.shape == (N, 2, n_classes, H, W)
    assert bool(jnp.isfinite(logits).all()) and bool(jnp.isfinite(out_k).all())
    print("KERNEL_OK")
</pallas_src>

<mosaic_0001>
module attributes {stable_mosaic.version = 11 : i64} {
  func.func @_double_conv_kernel(%arg0: i32, %arg1: i32, %arg2: memref<1x16x16x2xbf16, #tpu.memory_space<vmem>>, %arg3: memref<3x6x64xbf16, #tpu.memory_space<vmem>>, %arg4: memref<1x64xf32, #tpu.memory_space<vmem>>, %arg5: memref<3x192x64xbf16, #tpu.memory_space<vmem>>, %arg6: memref<1x64xf32, #tpu.memory_space<vmem>>, %arg7: memref<1x16x16x64xbf16, #tpu.memory_space<vmem>>, %arg8: memref<326x2xbf16, #tpu.memory_space<vmem>>, %arg9: memref<326x64xbf16, #tpu.memory_space<vmem>>) attributes {dimension_semantics = [#tpu.dimension_semantics<parallel>, #tpu.dimension_semantics<arbitrary>], iteration_bounds = array<i64: 2, 1>, scalar_prefetch = 0 : i64, scratch_operands = 2 : i64, tpu.core_type = #tpu.core_type<tc>, window_params = [{transform_indices = @transform_0, window_bounds = array<i64: 1, 16, 16, 2>}, {pipeline_mode = #tpu.pipeline_mode<synchronous>, transform_indices = @transform_1, window_bounds = array<i64: 3, 6, 64>}, {pipeline_mode = #tpu.pipeline_mode<synchronous>, transform_indices = @transform_2, window_bounds = array<i64: 1, 64>}, {transform_indices = @transform_3, window_bounds = array<i64: 3, 192, 64>}, {transform_indices = @transform_4, window_bounds = array<i64: 1, 64>}, {transform_indices = @transform_5, window_bounds = array<i64: 1, 16, 16, 64>}]} {
    %c0_i32 = arith.constant 0 : i32
    %0 = arith.cmpi eq, %arg1, %c0_i32 : i32
    %1 = arith.extui %0 : i1 to i32
    %c0_i32_0 = arith.constant 0 : i32
    %2 = arith.cmpi ne, %1, %c0_i32_0 : i32
    scf.if %2 {
      %c0_76 = arith.constant 0 : index
      %c0_77 = arith.constant 0 : index
      %c0_78 = arith.constant 0 : index
      %c0_79 = arith.constant 0 : index
      %98 = vector.load %arg2[%c0_76, %c0_77, %c0_78, %c0_79] : memref<1x16x16x2xbf16, #tpu.memory_space<vmem>>, vector<1x1x16x2xbf16>
      %99 = vector.shape_cast %98 : vector<1x1x16x2xbf16> to vector<16x2xbf16>
      %c19_80 = arith.constant 19 : index
      %c0_81 = arith.constant 0 : index
      %100 = vector.load %arg8[%c19_80, %c0_81] : memref<326x2xbf16, #tpu.memory_space<vmem>>, vector<16x2xbf16>
      tpu.vector_store %arg8[%c19_80, %c0_81], %99 {strides = array<i32>} : memref<326x2xbf16, #tpu.memory_space<vmem>>, vector<16x2xbf16>,
      %c0_82 = arith.constant 0 : index
      %c1_83 = arith.constant 1 : index
      %c0_84 = arith.constant 0 : index
      %c0_85 = arith.constant 0 : index
      %101 = vector.load %arg2[%c0_82, %c1_83, %c0_84, %c0_85] : memref<1x16x16x2xbf16, #tpu.memory_space<vmem>>, vector<1x1x16x2xbf16>
      %102 = vector.shape_cast %101 : vector<1x1x16x2xbf16> to vector<16x2xbf16>
      %c37_86 = arith.constant 37 : index
      %c0_87 = arith.constant 0 : index
      %103 = vector.load %arg8[%c37_86, %c0_87] : memref<326x2xbf16, #tpu.memory_space<vmem>>, vector<16x2xbf16>
      tpu.vector_store %arg8[%c37_86, %c0_87], %102 {strides = array<i32>} : memref<326x2xbf16, #tpu.memory_space<vmem>>, vector<16x2xbf16>,
      %c0_88 = arith.constant 0 : index
      %c2_89 = arith.constant 2 : index
      %c0_90 = arith.constant 0 : index
      %c0_91 = arith.constant 0 : index
      %104 = vector.load %arg2[%c0_88, %c2_89, %c0_90, %c0_91] : memref<1x16x16x2xbf16, #tpu.memory_space<vmem>>, vector<1x1x16x2xbf16>
      %105 = vector.shape_cast %104 : vector<1x1x16x2xbf16> to vector<16x2xbf16>
      %c55 = arith.constant 55 : index
      %c0_92 = arith.constant 0 : index
      %106 = vector.load %arg8[%c55, %c0_92] : memref<326x2xbf16, #tpu.memory_space<vmem>>, vector<16x2xbf16>
      tpu.vector_store %arg8[%c55, %c0_92], %105 {strides = array<i32>} : memref<326x2xbf16, #tpu.memory_space<vmem>>, vector<16x2xbf16>,
      %c0_93 = arith.constant 0 : index
      %c3_94 = arith.constant 3 : index
      %c0_95 = arith.constant 0 : index
      %c0_96 = arith.constant 0 : index
      %107 = vector.load %arg2[%c0_93, %c3_94, %c0_95, %c0_96] : memref<1x16x16x2xbf16, #tpu.memory_space<vmem>>, vector<1x1x16x2xbf16>
      %108 = vector.shape_cast %107 : vector<1x1x16x2xbf16> to vector<16x2xbf16>
      %c73 = arith.constant 73 : index
      %c0_97 = arith.constant 0 : index
      %109 = vector.load %arg8[%c73, %c0_97] : memref<326x2xbf16, #tpu.memory_space<vmem>>, vector<16x2xbf16>
      tpu.vector_store %arg8[%c73, %c0_97], %108 {strides = array<i32>} : memref<326x2xbf16, #tpu.memory_space<vmem>>, vector<16x2xbf16>,
      %c0_98 = arith.constant 0 : index
      %c4_99 = arith.constant 4 : index
      %c0_100 = arith.constant 0 : index
      %c0_101 = arith.constant 0 : index
      %110 = vector.load %arg2[%c0_98, %c4_99, %c0_100, %c0_101] : memref<1x16x16x2xbf16, #tpu.memory_space<vmem>>, vector<1x1x16x2xbf16>
      %111 = vector.shape_cast %110 : vector<1x1x16x2xbf16> to vector<16x2xbf16>
      %c91 = arith.constant 91 : index
      %c0_102 = arith.constant 0 : index
      %112 = vector.load %arg8[%c91, %c0_102] : memref<326x2xbf16, #tpu.memory_space<vmem>>, vector<16x2xbf16>
      tpu.vector_store %arg8[%c91, %c0_102], %111 {strides = array<i32>} : memref<326x2xbf16, #tpu.memory_space<vmem>>, vector<16x2xbf16>,
      %c0_103 = arith.constant 0 : index
      %c5_104 = arith.constant 5 : index
      %c0_105 = arith.constant 0 : index
      %c0_106 = arith.constant 0 : index
      %113 = vector.load %arg2[%c0_103, %c5_104, %c0_105, %c0_106] : memref<1x16x16x2xbf16, #tpu.memory_space<vmem>>, vector<1x1x16x2xbf16>
      %114 = vector.shape_cast %113 : vector<1x1x16x2xbf16> to vector<16x2xbf16>
      %c109 = arith.constant 109 : index
      %c0_107 = arith.constant 0 : index
      %115 = vector.load %arg8[%c109, %c0_107] : memref<326x2xbf16, #tpu.memory_space<vmem>>, vector<16x2xbf16>
      tpu.vector_store %arg8[%c109, %c0_107], %114 {strides = array<i32>} : memref<326x2xbf16, #tpu.memory_space<vmem>>, vector<16x2xbf16>,
      %c0_108 = arith.constant 0 : index
      %c6_109 = arith.constant 6 : index
      %c0_110 = arith.constant 0 : index
      %c0_111 = arith.constant 0 : index
      %116 = vector.load %arg2[%c0_108, %c6_109, %c0_110, %c0_111] : memref<1x16x16x2xbf16, #tpu.memory_space<vmem>>, vector<1x1x16x2xbf16>
      %117 = vector.shape_cast %116 : vector<1x1x16x2xbf16> to vector<16x2xbf16>
      %c127 = arith.constant 127 : index
      %c0_112 = arith.constant 0 : index
      %118 = vector.load %arg8[%c127, %c0_112] : memref<326x2xbf16, #tpu.memory_space<vmem>>, vector<16x2xbf16>
      tpu.vector_store %arg8[%c127, %c0_112], %117 {strides = array<i32>} : memref<326x2xbf16, #tpu.memory_space<vmem>>, vector<16x2xbf16>,
      %c0_113 = arith.constant 0 : index
      %c7_114 = arith.constant 7 : index
      %c0_115 = arith.constant 0 : index
      %c0_116 = arith.constant 0 : index
      %119 = vector.load %arg2[%c0_113, %c7_114, %c0_115, %c0_116] : memref<1x16x16x2xbf16, #tpu.memory_space<vmem>>, vector<1x1x16x2xbf16>
      %120 = vector.shape_cast %119 : vector<1x1x16x2xbf16> to vector<16x2xbf16>
      %c145 = arith.constant 145 : index
      %c0_117 = arith.constant 0 : index
      %121 = vector.load %arg8[%c145, %c0_117] : memref<326x2xbf16, #tpu.memory_space<vmem>>, vector<16x2xbf16>
      tpu.vector_store %arg8[%c145, %c0_117], %120 {strides = array<i32>} : memref<326x2xbf16, #tpu.memory_space<vmem>>, vector<16x2xbf16>,
      %c0_118 = arith.constant 0 : index
      %c8_119 = arith.constant 8 : index
      %c0_120 = arith.constant 0 : index
      %c0_121 = arith.constant 0 : index
      %122 = vector.load %arg2[%c0_118, %c8_119, %c0_120, %c0_121] : memref<1x16x16x2xbf16, #tpu.memory_space<vmem>>, vector<1x1x16x2xbf16>
      %123 = vector.shape_cast %122 : vector<1x1x16x2xbf16> to vector<16x2xbf16>
      %c163 = arith.constant 163 : index
      %c0_122 = arith.constant 0 : index
      %124 = vector.load %arg8[%c163, %c0_122] : memref<326x2xbf16, #tpu.memory_space<vmem>>, vector<16x2xbf16>
      tpu.vector_store %arg8[%c163, %c0_122], %123 {strides = array<i32>} : memref<326x2xbf16, #tpu.memory_space<vmem>>, vector<16x2xbf16>,
      %c0_123 = arith.constant 0 : index
      %c9_124 = arith.constant 9 : index
      %c0_125 = arith.constant 0 : index
      %c0_126 = arith.constant 0 : index
      %125 = vector.load %arg2[%c0_123, %c9_124, %c0_125, %c0_126] : memref<1x16x16x2xbf16, #tpu.memory_space<vmem>>, vector<1x1x16x2xbf16>
      %126 = vector.shape_cast %125 : vector<1x1x16x2xbf16> to vector<16x2xbf16>
      %c181 = arith.constant 181 : index
      %c0_127 = arith.constant 0 : index
      %127 = vector.load %arg8[%c181, %c0_127] : memref<326x2xbf16, #tpu.memory_space<vmem>>, vector<16x2xbf16>
      tpu.vector_store %arg8[%c181, %c0_127], %126 {strides = array<i32>} : memref<326x2xbf16, #tpu.memory_space<vmem>>, vector<16x2xbf16>,
      %c0_128 = arith.constant 0 : index
      %c10_129 = arith.constant 10 : index
      %c0_130 = arith.constant 0 : index
      %c0_131 = arith.constant 0 : index
      %128 = vector.load %arg2[%c0_128, %c10_129, %c0_130, %c0_131] : memref<1x16x16x2xbf16, #tpu.memory_space<vmem>>, vector<1x1x16x2xbf16>
      %129 = vector.shape_cast %128 : vector<1x1x16x2xbf16> to vector<16x2xbf16>
      %c199 = arith.constant 199 : index
      %c0_132 = arith.constant 0 : index
      %130 = vector.load %arg8[%c199, %c0_132] : memref<326x2xbf16, #tpu.memory_space<vmem>>, vector<16x2xbf16>
      tpu.vector_store %arg8[%c199, %c0_132], %129 {strides = array<i32>} : memref<326x2xbf16, #tpu.memory_space<vmem>>, vector<16x2xbf16>,
      %c0_133 = arith.constant 0 : index
      %c11_134 = arith.constant 11 : index
      %c0_135 = arith.constant 0 : index
      %c0_136 = arith.constant 0 : index
      %131 = vector.load %arg2[%c0_133, %c11_134, %c0_135, %c0_136] : memref<1x16x16x2xbf16, #tpu.memory_space<vmem>>, vector<1x1x16x2xbf16>
      %132 = vector.shape_cast %131 : vector<1x1x16x2xbf16> to vector<16x2xbf16>
      %c217 = arith.constant 217 : index
      %c0_137 = arith.constant 0 : index
      %133 = vector.load %arg8[%c217, %c0_137] : memref<326x2xbf16, #tpu.memory_space<vmem>>, vector<16x2xbf16>
      tpu.vector_store %arg8[%c217, %c0_137], %132 {strides = array<i32>} : memref<326x2xbf16, #tpu.memory_space<vmem>>, vector<16x2xbf16>,
      %c0_138 = arith.constant 0 : index
      %c12_139 = arith.constant 12 : index
      %c0_140 = arith.constant 0 : index
      %c0_141 = arith.constant 0 : index
      %134 = vector.load %arg2[%c0_138, %c12_139, %c0_140, %c0_141] : memref<1x16x16x2xbf16, #tpu.memory_space<vmem>>, vector<1x1x16x2xbf16>
      %135 = vector.shape_cast %134 : vector<1x1x16x2xbf16> to vector<16x2xbf16>
      %c235 = arith.constant 235 : index
      %c0_142 = arith.constant 0 : index
      %136 = vector.load %arg8[%c235, %c0_142] : memref<326x2xbf16, #tpu.memory_space<vmem>>, vector<16x2xbf16>
      tpu.vector_store %arg8[%c235, %c0_142], %135 {strides = array<i32>} : memref<326x2xbf16, #tpu.memory_space<vmem>>, vector<16x2xbf16>,
      %c0_143 = arith.constant 0 : index
      %c13_144 = arith.constant 13 : index
      %c0_145 = arith.constant 0 : index
      %c0_146 = arith.constant 0 : index
      %137 = vector.load %arg2[%c0_143, %c13_144, %c0_145, %c0_146] : memref<1x16x16x2xbf16, #tpu.memory_space<vmem>>, vector<1x1x16x2xbf16>
      %138 = vector.shape_cast %137 : vector<1x1x16x2xbf16> to vector<16x2xbf16>
      %c253 = arith.constant 253 : index
      %c0_147 = arith.constant 0 : index
      %139 = vector.load %arg8[%c253, %c0_147] : memref<326x2xbf16, #tpu.memory_space<vmem>>, vector<16x2xbf16>
      tpu.vector_store %arg8[%c253, %c0_147], %138 {strides = array<i32>} : memref<326x2xbf16, #tpu.memory_space<vmem>>, vector<16x2xbf16>,
      %c0_148 = arith.constant 0 : index
      %c14_149 = arith.constant 14 : index
      %c0_150 = arith.constant 0 : index
      %c0_151 = arith.constant 0 : index
      %140 = vector.load %arg2[%c0_148, %c14_149, %c0_150, %c0_151] : memref<1x16x16x2xbf16, #tpu.memory_space<vmem>>, vector<1x1x16x2xbf16>
      %141 = vector.shape_cast %140 : vector<1x1x16x2xbf16> to vector<16x2xbf16>
      %c271 = arith.constant 271 : index
      %c0_152 = arith.constant 0 : index
      %142 = vector.load %arg8[%c271, %c0_152] : memref<326x2xbf16, #tpu.memory_space<vmem>>, vector<16x2xbf16>
      tpu.vector_store %arg8[%c271, %c0_152], %141 {strides = array<i32>} : memref<326x2xbf16, #tpu.memory_space<vmem>>, vector<16x2xbf16>,
      %c0_153 = arith.constant 0 : index
      %c15_154 = arith.constant 15 : index
      %c0_155 = arith.constant 0 : index
      %c0_156 = arith.constant 0 : index
      %143 = vector.load %arg2[%c0_153, %c15_154, %c0_155, %c0_156] : memref<1x16x16x2xbf16, #tpu.memory_space<vmem>>, vector<1x1x16x2xbf16>
      %144 = vector.shape_cast %143 : vector<1x1x16x2xbf16> to vector<16x2xbf16>
      %c289 = arith.constant 289 : index
      %c0_157 = arith.constant 0 : index
      %145 = vector.load %arg8[%c289, %c0_157] : memref<326x2xbf16, #tpu.memory_space<vmem>>, vector<16x2xbf16>
      tpu.vector_store %arg8[%c289, %c0_157], %144 {strides = array<i32>} : memref<326x2xbf16, #tpu.memory_space<vmem>>, vector<16x2xbf16>,
      %cst_158 = arith.constant 0.000000e+00 : bf16
      %146 = vector.broadcast %cst_158 : bf16 to vector<19x2xbf16>
      %c0_159 = arith.constant 0 : index
      %c0_160 = arith.constant 0 : index
      %147 = vector.load %arg8[%c0_159, %c0_160] : memref<326x2xbf16, #tpu.memory_space<vmem>>, vector<19x2xbf16>
      tpu.vector_store %arg8[%c0_159, %c0_160], %146 {strides = array<i32>} : memref<326x2xbf16, #tpu.memory_space<vmem>>, vector<19x2xbf16>,
      %cst_161 = arith.constant 0.000000e+00 : bf16
      %148 = vector.broadcast %cst_161 : bf16 to vector<19x2xbf16>
      %c307 = arith.constant 307 : index
      %c0_162 = arith.constant 0 : index
      %149 = vector.load %arg8[%c307, %c0_162] : memref<326x2xbf16, #tpu.memory_space<vmem>>, vector<19x2xbf16>
      tpu.vector_store %arg8[%c307, %c0_162], %148 {strides = array<i32>} : memref<326x2xbf16, #tpu.memory_space<vmem>>, vector<19x2xbf16>,
      %cst_163 = arith.constant 0.000000e+00 : bf16
      %150 = vector.broadcast %cst_163 : bf16 to vector<2x2xbf16>
      %c35 = arith.constant 35 : index
      %c0_164 = arith.constant 0 : index
      %151 = vector.load %arg8[%c35, %c0_164] : memref<326x2xbf16, #tpu.memory_space<vmem>>, vector<2x2xbf16>
      tpu.vector_store %arg8[%c35, %c0_164], %150 {strides = array<i32>} : memref<326x2xbf16, #tpu.memory_space<vmem>>, vector<2x2xbf16>,
      %c53 = arith.constant 53 : index
      %c0_165 = arith.constant 0 : index
      %152 = vector.load %arg8[%c53, %c0_165] : memref<326x2xbf16, #tpu.memory_space<vmem>>, vector<2x2xbf16>
      tpu.vector_store %arg8[%c53, %c0_165], %150 {strides = array<i32>} : memref<326x2xbf16, #tpu.memory_space<vmem>>, vector<2x2xbf16>,
      %c71 = arith.constant 71 : index
      %c0_166 = arith.constant 0 : index
      %153 = vector.load %arg8[%c71, %c0_166] : memref<326x2xbf16, #tpu.memory_space<vmem>>, vector<2x2xbf16>
      tpu.vector_store %arg8[%c71, %c0_166], %150 {strides = array<i32>} : memref<326x2xbf16, #tpu.memory_space<vmem>>, vector<2x2xbf16>,
      %c89 = arith.constant 89 : index
      %c0_167 = arith.constant 0 : index
      %154 = vector.load %arg8[%c89, %c0_167] : memref<326x2xbf16, #tpu.memory_space<vmem>>, vector<2x2xbf16>
      tpu.vector_store %arg8[%c89, %c0_167], %150 {strides = array<i32>} : memref<326x2xbf16, #tpu.memory_space<vmem>>, vector<2x2xbf16>,
      %c107 = arith.constant 107 : index
      %c0_168 = arith.constant 0 : index
      %155 = vector.load %arg8[%c107, %c0_168] : memref<326x2xbf16, #tpu.memory_space<vmem>>, vector<2x2xbf16>
      tpu.vector_store %arg8[%c107, %c0_168], %150 {strides = array<i32>} : memref<326x2xbf16, #tpu.memory_space<vmem>>, vector<2x2xbf16>,
      %c125 = arith.constant 125 : index
      %c0_169 = arith.constant 0 : index
      %156 = vector.load %arg8[%c125, %c0_169] : memref<326x2xbf16, #tpu.memory_space<vmem>>, vector<2x2xbf16>
      tpu.vector_store %arg8[%c125, %c0_169], %150 {strides = array<i32>} : memref<326x2xbf16, #tpu.memory_space<vmem>>, vector<2x2xbf16>,
      %c143 = arith.constant 143 : index
      %c0_170 = arith.constant 0 : index
      %157 = vector.load %arg8[%c143, %c0_170] : memref<326x2xbf16, #tpu.memory_space<vmem>>, vector<2x2xbf16>
      tpu.vector_store %arg8[%c143, %c0_170], %150 {strides = array<i32>} : memref<326x2xbf16, #tpu.memory_space<vmem>>, vector<2x2xbf16>,
      %c161 = arith.constant 161 : index
      %c0_171 = arith.constant 0 : index
      %158 = vector.load %arg8[%c161, %c0_171] : memref<326x2xbf16, #tpu.memory_space<vmem>>, vector<2x2xbf16>
      tpu.vector_store %arg8[%c161, %c0_171], %150 {strides = array<i32>} : memref<326x2xbf16, #tpu.memory_space<vmem>>, vector<2x2xbf16>,
      %c179 = arith.constant 179 : index
      %c0_172 = arith.constant 0 : index
      %159 = vector.load %arg8[%c179, %c0_172] : memref<326x2xbf16, #tpu.memory_space<vmem>>, vector<2x2xbf16>
      tpu.vector_store %arg8[%c179, %c0_172], %150 {strides = array<i32>} : memref<326x2xbf16, #tpu.memory_space<vmem>>, vector<2x2xbf16>,
      %c197 = arith.constant 197 : index
      %c0_173 = arith.constant 0 : index
      %160 = vector.load %arg8[%c197, %c0_173] : memref<326x2xbf16, #tpu.memory_space<vmem>>, vector<2x2xbf16>
      tpu.vector_store %arg8[%c197, %c0_173], %150 {strides = array<i32>} : memref<326x2xbf16, #tpu.memory_space<vmem>>, vector<2x2xbf16>,
      %c215 = arith.constant 215 : index
      %c0_174 = arith.constant 0 : index
      %161 = vector.load %arg8[%c215, %c0_174] : memref<326x2xbf16, #tpu.memory_space<vmem>>, vector<2x2xbf16>
      tpu.vector_store %arg8[%c215, %c0_174], %150 {strides = array<i32>} : memref<326x2xbf16, #tpu.memory_space<vmem>>, vector<2x2xbf16>,
      %c233 = arith.constant 233 : index
      %c0_175 = arith.constant 0 : index
      %162 = vector.load %arg8[%c233, %c0_175] : memref<326x2xbf16, #tpu.memory_space<vmem>>, vector<2x2xbf16>
      tpu.vector_store %arg8[%c233, %c0_175], %150 {strides = array<i32>} : memref<326x2xbf16, #tpu.memory_space<vmem>>, vector<2x2xbf16>,
      %c251 = arith.constant 251 : index
      %c0_176 = arith.constant 0 : index
      %163 = vector.load %arg8[%c251, %c0_176] : memref<326x2xbf16, #tpu.memory_space<vmem>>, vector<2x2xbf16>
      tpu.vector_store %arg8[%c251, %c0_176], %150 {strides = array<i32>} : memref<326x2xbf16, #tpu.memory_space<vmem>>, vector<2x2xbf16>,
      %c269 = arith.constant 269 : index
      %c0_177 = arith.constant 0 : index
      %164 = vector.load %arg8[%c269, %c0_177] : memref<326x2xbf16, #tpu.memory_space<vmem>>, vector<2x2xbf16>
      tpu.vector_store %arg8[%c269, %c0_177], %150 {strides = array<i32>} : memref<326x2xbf16, #tpu.memory_space<vmem>>, vector<2x2xbf16>,
      %c287 = arith.constant 287 : index
      %c0_178 = arith.constant 0 : index
      %165 = vector.load %arg8[%c287, %c0_178] : memref<326x2xbf16, #tpu.memory_space<vmem>>, vector<2x2xbf16>
      tpu.vector_store %arg8[%c287, %c0_178], %150 {strides = array<i32>} : memref<326x2xbf16, #tpu.memory_space<vmem>>, vector<2x2xbf16>,
      %c305 = arith.constant 305 : index
      %c0_179 = arith.constant 0 : index
      %166 = vector.load %arg8[%c305, %c0_179] : memref<326x2xbf16, #tpu.memory_space<vmem>>, vector<2x2xbf16>
      tpu.vector_store %arg8[%c305, %c0_179], %150 {strides = array<i32>} : memref<326x2xbf16, #tpu.memory_space<vmem>>, vector<2x2xbf16>,
      %cst_180 = arith.constant 0.000000e+00 : f32
      %167 = vector.broadcast %cst_180 : f32 to vector<288x64xf32>
      %c0_181 = arith.constant 0 : index
      %c0_182 = arith.constant 0 : index
      %168 = vector.load %arg8[%c0_181, %c0_182] : memref<326x2xbf16, #tpu.memory_space<vmem>>, vector<288x2xbf16>
      %c1_183 = arith.constant 1 : index
      %c0_184 = arith.constant 0 : index
      %169 = vector.load %arg8[%c1_183, %c0_184] : memref<326x2xbf16, #tpu.memory_space<vmem>>, vector<288x2xbf16>
      %c2_185 = arith.constant 2 : index
      %c0_186 = arith.constant 0 : index
      %170 = vector.load %arg8[%c2_185, %c0_186] : memref<326x2xbf16, #tpu.memory_space<vmem>>, vector<288x2xbf16>
      %171 = tpu.concatenate %168, %169, %170 in 1 : vector<288x2xbf16>, vector<288x2xbf16>, vector<288x2xbf16> -> vector<288x6xbf16>
      %c0_187 = arith.constant 0 : index
      %c0_188 = arith.constant 0 : index
      %c0_189 = arith.constant 0 : index
      %172 = vector.load %arg3[%c0_187, %c0_188, %c0_189] : memref<3x6x64xbf16, #tpu.memory_space<vmem>>, vector<1x6x64xbf16>
      %173 = vector.shape_cast %172 : vector<1x6x64xbf16> to vector<6x64xbf16>
      %cst_190 = arith.constant dense<0.000000e+00> : vector<288x64xf32>
      %174 = tpu.matmul %171, %173, %cst_190 {dimension_numbers = #tpu.dot_dimension_numbers<[1], [0], [0], [1], [0, 0, 1, 1], [], []>} : vector<288x6xbf16>, vector<6x64xbf16>, vector<288x64xf32> -> vector<288x64xf32>
      %175 = arith.addf %167, %174 : vector<288x64xf32>
      %c18_191 = arith.constant 18 : index
      %c0_192 = arith.constant 0 : index
      %176 = vector.load %arg8[%c18_191, %c0_192] : memref<326x2xbf16, #tpu.memory_space<vmem>>, vector<288x2xbf16>
      %c19_193 = arith.constant 19 : index
      %c0_194 = arith.constant 0 : index
      %177 = vector.load %arg8[%c19_193, %c0_194] : memref<326x2xbf16, #tpu.memory_space<vmem>>, vector<288x2xbf16>
      %c20_195 = arith.constant 20 : index
      %c0_196 = arith.constant 0 : index
      %178 = vector.load %arg8[%c20_195, %c0_196] : memref<326x2xbf16, #tpu.memory_space<vmem>>, vector<288x2xbf16>
      %179 = tpu.concatenate %176, %177, %178 in 1 : vector<288x2xbf16>, vector<288x2xbf16>, vector<288x2xbf16> -> vector<288x6xbf16>
      %c1_197 = arith.constant 1 : index
      %c0_198 = arith.constant 0 : index
      %c0_199 = arith.constant 0 : index
      %180 = vector.load %arg3[%c1_197, %c0_198, %c0_199] : memref<3x6x64xbf16, #tpu.memory_space<vmem>>, vector<1x6x64xbf16>
      %181 = vector.shape_cast %180 : vector<1x6x64xbf16> to vector<6x64xbf16>
      %cst_200 = arith.constant dense<0.000000e+00> : vector<288x64xf32>
      %182 = tpu.matmul %179, %181, %cst_200 {dimension_numbers = #tpu.dot_dimension_numbers<[1], [0], [0], [1], [0, 0, 1, 1], [], []>} : vector<288x6xbf16>, vector<6x64xbf16>, vector<288x64xf32> -> vector<288x64xf32>
      %183 = arith.addf %175, %182 : vector<288x64xf32>
      %c36_201 = arith.constant 36 : index
      %c0_202 = arith.constant 0 : index
      %184 = vector.load %arg8[%c36_201, %c0_202] : memref<326x2xbf16, #tpu.memory_space<vmem>>, vector<288x2xbf16>
      %c37_203 = arith.constant 37 : index
      %c0_204 = arith.constant 0 : index
      %185 = vector.load %arg8[%c37_203, %c0_204] : memref<326x2xbf16, #tpu.memory_space<vmem>>, vector<288x2xbf16>
      %c38_205 = arith.constant 38 : index
      %c0_206 = arith.constant 0 : index
      %186 = vector.load %arg8[%c38_205, %c0_206] : memref<326x2xbf16, #tpu.memory_space<vmem>>, vector<288x2xbf16>
      %187 = tpu.concatenate %184, %185, %186 in 1 : vector<288x2xbf16>, vector<288x2xbf16>, vector<288x2xbf16> -> vector<288x6xbf16>
      %c2_207 = arith.constant 2 : index
      %c0_208 = arith.constant 0 : index
      %c0_209 = arith.constant 0 : index
      %188 = vector.load %arg3[%c2_207, %c0_208, %c0_209] : memref<3x6x64xbf16, #tpu.memory_space<vmem>>, vector<1x6x64xbf16>
      %189 = vector.shape_cast %188 : vector<1x6x64xbf16> to vector<6x64xbf16>
      %cst_210 = arith.constant dense<0.000000e+00> : vector<288x64xf32>
      %190 = tpu.matmul %187, %189, %cst_210 {dimension_numbers = #tpu.dot_dimension_numbers<[1], [0], [0], [1], [0, 0, 1, 1], [], []>} : vector<288x6xbf16>, vector<6x64xbf16>, vector<288x64xf32> -> vector<288x64xf32>
      %191 = arith.addf %183, %190 : vector<288x64xf32>
      %c0_211 = arith.constant 0 : index
      %c0_212 = arith.constant 0 : index
      %192 = vector.load %arg4[%c0_211, %c0_212] : memref<1x64xf32, #tpu.memory_space<vmem>>, vector<1x64xf32>
      %193 = vector.broadcast %192 : vector<1x64xf32> to vector<288x64xf32>
      %194 = arith.addf %191, %193 : vector<288x64xf32>
      %cst_213 = arith.constant 0.000000e+00 : f32
      %195 = vector.broadcast %cst_213 : f32 to vector<288x64xf32>
      %196 = arith.maximumf %194, %195 : vector<288x64xf32>
      %197 = arith.truncf %196 : vector<288x64xf32> to vector<288x64xbf16>
      %c19_214 = arith.constant 19 : index
      %c0_215 = arith.constant 0 : index
      %198 = vector.load %arg9[%c19_214, %c0_215] : memref<326x64xbf16, #tpu.memory_space<vmem>>, vector<288x64xbf16>
      tpu.vector_store %arg9[%c19_214, %c0_215], %197 {strides = array<i32>} : memref<326x64xbf16, #tpu.memory_space<vmem>>, vector<288x64xbf16>,
      %cst_216 = arith.constant 0.000000e+00 : bf16
      %199 = vector.broadcast %cst_216 : bf16 to vector<19x64xbf16>
      %c0_217 = arith.constant 0 : index
      %c0_218 = arith.constant 0 : index
      %200 = vector.load %arg9[%c0_217, %c0_218] : memref<326x64xbf16, #tpu.memory_space<vmem>>, vector<19x64xbf16>
      tpu.vector_store %arg9[%c0_217, %c0_218], %199 {strides = array<i32>} : memref<326x64xbf16, #tpu.memory_space<vmem>>, vector<19x64xbf16>,
      %cst_219 = arith.constant 0.000000e+00 : bf16
      %201 = vector.broadcast %cst_219 : bf16 to vector<19x64xbf16>
      %c307_220 = arith.constant 307 : index
      %c0_221 = arith.constant 0 : index
      %202 = vector.load %arg9[%c307_220, %c0_221] : memref<326x64xbf16, #tpu.memory_space<vmem>>, vector<19x64xbf16>
      tpu.vector_store %arg9[%c307_220, %c0_221], %201 {strides = array<i32>} : memref<326x64xbf16, #tpu.memory_space<vmem>>, vector<19x64xbf16>,
      %cst_222 = arith.constant 0.000000e+00 : bf16
      %203 = vector.broadcast %cst_222 : bf16 to vector<2x64xbf16>
      %c35_223 = arith.constant 35 : index
      %c0_224 = arith.constant 0 : index
      %204 = vector.load %arg9[%c35_223, %c0_224] : memref<326x64xbf16, #tpu.memory_space<vmem>>, vector<2x64xbf16>
      tpu.vector_store %arg9[%c35_223, %c0_224], %203 {strides = array<i32>} : memref<326x64xbf16, #tpu.memory_space<vmem>>, vector<2x64xbf16>,
      %c53_225 = arith.constant 53 : index
      %c0_226 = arith.constant 0 : index
      %205 = vector.load %arg9[%c53_225, %c0_226] : memref<326x64xbf16, #tpu.memory_space<vmem>>, vector<2x64xbf16>
      tpu.vector_store %arg9[%c53_225, %c0_226], %203 {strides = array<i32>} : memref<326x64xbf16, #tpu.memory_space<vmem>>, vector<2x64xbf16>,
      %c71_227 = arith.constant 71 : index
      %c0_228 = arith.constant 0 : index
      %206 = vector.load %arg9[%c71_227, %c0_228] : memref<326x64xbf16, #tpu.memory_space<vmem>>, vector<2x64xbf16>
      tpu.vector_store %arg9[%c71_227, %c0_228], %203 {strides = array<i32>} : memref<326x64xbf16, #tpu.memory_space<vmem>>, vector<2x64xbf16>,
      %c89_229 = arith.constant 89 : index
      %c0_230 = arith.constant 0 : index
      %207 = vector.load %arg9[%c89_229, %c0_230] : memref<326x64xbf16, #tpu.memory_space<vmem>>, vector<2x64xbf16>
      tpu.vector_store %arg9[%c89_229, %c0_230], %203 {strides = array<i32>} : memref<326x64xbf16, #tpu.memory_space<vmem>>, vector<2x64xbf16>,
      %c107_231 = arith.constant 107 : index
      %c0_232 = arith.constant 0 : index
      %208 = vector.load %arg9[%c107_231, %c0_232] : memref<326x64xbf16, #tpu.memory_space<vmem>>, vector<2x64xbf16>
      tpu.vector_store %arg9[%c107_231, %c0_232], %203 {strides = array<i32>} : memref<326x64xbf16, #tpu.memory_space<vmem>>, vector<2x64xbf16>,
      %c125_233 = arith.constant 125 : index
      %c0_234 = arith.constant 0 : index
      %209 = vector.load %arg9[%c125_233, %c0_234] : memref<326x64xbf16, #tpu.memory_space<vmem>>, vector<2x64xbf16>
      tpu.vector_store %arg9[%c125_233, %c0_234], %203 {strides = array<i32>} : memref<326x64xbf16, #tpu.memory_space<vmem>>, vector<2x64xbf16>,
      %c143_235 = arith.constant 143 : index
      %c0_236 = arith.constant 0 : index
      %210 = vector.load %arg9[%c143_235, %c0_236] : memref<326x64xbf16, #tpu.memory_space<vmem>>, vector<2x64xbf16>
      tpu.vector_store %arg9[%c143_235, %c0_236], %203 {strides = array<i32>} : memref<326x64xbf16, #tpu.memory_space<vmem>>, vector<2x64xbf16>,
      %c161_237 = arith.constant 161 : index
      %c0_238 = arith.constant 0 : index
      %211 = vector.load %arg9[%c161_237, %c0_238] : memref<326x64xbf16, #tpu.memory_space<vmem>>, vector<2x64xbf16>
      tpu.vector_store %arg9[%c161_237, %c0_238], %203 {strides = array<i32>} : memref<326x64xbf16, #tpu.memory_space<vmem>>, vector<2x64xbf16>,
      %c179_239 = arith.constant 179 : index
      %c0_240 = arith.constant 0 : index
      %212 = vector.load %arg9[%c179_239, %c0_240] : memref<326x64xbf16, #tpu.memory_space<vmem>>, vector<2x64xbf16>
      tpu.vector_store %arg9[%c179_239, %c0_240], %203 {strides = array<i32>} : memref<326x64xbf16, #tpu.memory_space<vmem>>, vector<2x64xbf16>,
      %c197_241 = arith.constant 197 : index
      %c0_242 = arith.constant 0 : index
      %213 = vector.load %arg9[%c197_241, %c0_242] : memref<326x64xbf16, #tpu.memory_space<vmem>>, vector<2x64xbf16>
      tpu.vector_store %arg9[%c197_241, %c0_242], %203 {strides = array<i32>} : memref<326x64xbf16, #tpu.memory_space<vmem>>, vector<2x64xbf16>,
      %c215_243 = arith.constant 215 : index
      %c0_244 = arith.constant 0 : index
      %214 = vector.load %arg9[%c215_243, %c0_244] : memref<326x64xbf16, #tpu.memory_space<vmem>>, vector<2x64xbf16>
      tpu.vector_store %arg9[%c215_243, %c0_244], %203 {strides = array<i32>} : memref<326x64xbf16, #tpu.memory_space<vmem>>, vector<2x64xbf16>,
      %c233_245 = arith.constant 233 : index
      %c0_246 = arith.constant 0 : index
      %215 = vector.load %arg9[%c233_245, %c0_246] : memref<326x64xbf16, #tpu.memory_space<vmem>>, vector<2x64xbf16>
      tpu.vector_store %arg9[%c233_245, %c0_246], %203 {strides = array<i32>} : memref<326x64xbf16, #tpu.memory_space<vmem>>, vector<2x64xbf16>,
      %c251_247 = arith.constant 251 : index
      %c0_248 = arith.constant 0 : index
      %216 = vector.load %arg9[%c251_247, %c0_248] : memref<326x64xbf16, #tpu.memory_space<vmem>>, vector<2x64xbf16>
      tpu.vector_store %arg9[%c251_247, %c0_248], %203 {strides = array<i32>} : memref<326x64xbf16, #tpu.memory_space<vmem>>, vector<2x64xbf16>,
      %c269_249 = arith.constant 269 : index
      %c0_250 = arith.constant 0 : index
      %217 = vector.load %arg9[%c269_249, %c0_250] : memref<326x64xbf16, #tpu.memory_space<vmem>>, vector<2x64xbf16>
      tpu.vector_store %arg9[%c269_249, %c0_250], %203 {strides = array<i32>} : memref<326x64xbf16, #tpu.memory_space<vmem>>, vector<2x64xbf16>,
      %c287_251 = arith.constant 287 : index
      %c0_252 = arith.constant 0 : index
      %218 = vector.load %arg9[%c287_251, %c0_252] : memref<326x64xbf16, #tpu.memory_space<vmem>>, vector<2x64xbf16>
      tpu.vector_store %arg9[%c287_251, %c0_252], %203 {strides = array<i32>} : memref<326x64xbf16, #tpu.memory_space<vmem>>, vector<2x64xbf16>,
      %c305_253 = arith.constant 305 : index
      %c0_254 = arith.constant 0 : index
      %219 = vector.load %arg9[%c305_253, %c0_254] : memref<326x64xbf16, #tpu.memory_space<vmem>>, vector<2x64xbf16>
      tpu.vector_store %arg9[%c305_253, %c0_254], %203 {strides = array<i32>} : memref<326x64xbf16, #tpu.memory_space<vmem>>, vector<2x64xbf16>,
    } else {
    }
    %cst = arith.constant 0.000000e+00 : f32
    %3 = vector.broadcast %cst : f32 to vector<288x64xf32>
    %c0 = arith.constant 0 : index
    %c0_1 = arith.constant 0 : index
    %4 = vector.load %arg9[%c0, %c0_1] : memref<326x64xbf16, #tpu.memory_space<vmem>>, vector<288x64xbf16>
    %c1 = arith.constant 1 : index
    %c0_2 = arith.constant 0 : index
    %5 = vector.load %arg9[%c1, %c0_2] : memref<326x64xbf16, #tpu.memory_space<vmem>>, vector<288x64xbf16>
    %c2 = arith.constant 2 : index
    %c0_3 = arith.constant 0 : index
    %6 = vector.load %arg9[%c2, %c0_3] : memref<326x64xbf16, #tpu.memory_space<vmem>>, vector<288x64xbf16>
    %7 = tpu.concatenate %4, %5, %6 in 1 : vector<288x64xbf16>, vector<288x64xbf16>, vector<288x64xbf16> -> vector<288x192xbf16>
    %c0_4 = arith.constant 0 : index
    %c0_5 = arith.constant 0 : index
    %c0_6 = arith.constant 0 : index
    %8 = vector.load %arg5[%c0_4, %c0_5, %c0_6] : memref<3x192x64xbf16, #tpu.memory_space<vmem>>, vector<1x192x64xbf16>
    %9 = vector.shape_cast %8 : vector<1x192x64xbf16> to vector<192x64xbf16>
    %cst_7 = arith.constant dense<0.000000e+00> : vector<288x64xf32>
    %10 = tpu.matmul %7, %9, %cst_7 {dimension_numbers = #tpu.dot_dimension_numbers<[1], [0], [0], [1], [0, 0, 1, 1], [], []>} : vector<288x192xbf16>, vector<192x64xbf16>, vector<288x64xf32> -> vector<288x64xf32>
    %11 = arith.addf %3, %10 : vector<288x64xf32>
    %c18 = arith.constant 18 : index
    %c0_8 = arith.constant 0 : index
    %12 = vector.load %arg9[%c18, %c0_8] : memref<326x64xbf16, #tpu.memory_space<vmem>>, vector<288x64xbf16>
    %c19 = arith.constant 19 : index
    %c0_9 = arith.constant 0 : index
    %13 = vector.load %arg9[%c19, %c0_9] : memref<326x64xbf16, #tpu.memory_space<vmem>>, vector<288x64xbf16>
    %c20 = arith.constant 20 : index
    %c0_10 = arith.constant 0 : index
    %14 = vector.load %arg9[%c20, %c0_10] : memref<326x64xbf16, #tpu.memory_space<vmem>>, vector<288x64xbf16>
    %15 = tpu.concatenate %12, %13, %14 in 1 : vector<288x64xbf16>, vector<288x64xbf16>, vector<288x64xbf16> -> vector<288x192xbf16>
    %c1_11 = arith.constant 1 : index
    %c0_12 = arith.constant 0 : index
    %c0_13 = arith.constant 0 : index
    %16 = vector.load %arg5[%c1_11, %c0_12, %c0_13] : memref<3x192x64xbf16, #tpu.memory_space<vmem>>, vector<1x192x64xbf16>
    %17 = vector.shape_cast %16 : vector<1x192x64xbf16> to vector<192x64xbf16>
    %cst_14 = arith.constant dense<0.000000e+00> : vector<288x64xf32>
    %18 = tpu.matmul %15, %17, %cst_14 {dimension_numbers = #tpu.dot_dimension_numbers<[1], [0], [0], [1], [0, 0, 1, 1], [], []>} : vector<288x192xbf16>, vector<192x64xbf16>, vector<288x64xf32> -> vector<288x64xf32>
    %19 = arith.addf %11, %18 : vector<288x64xf32>
    %c36 = arith.constant 36 : index
    %c0_15 = arith.constant 0 : index
    %20 = vector.load %arg9[%c36, %c0_15] : memref<326x64xbf16, #tpu.memory_space<vmem>>, vector<288x64xbf16>
    %c37 = arith.constant 37 : index
    %c0_16 = arith.constant 0 : index
    %21 = vector.load %arg9[%c37, %c0_16] : memref<326x64xbf16, #tpu.memory_space<vmem>>, vector<288x64xbf16>
    %c38 = arith.constant 38 : index
    %c0_17 = arith.constant 0 : index
    %22 = vector.load %arg9[%c38, %c0_17] : memref<326x64xbf16, #tpu.memory_space<vmem>>, vector<288x64xbf16>
    %23 = tpu.concatenate %20, %21, %22 in 1 : vector<288x64xbf16>, vector<288x64xbf16>, vector<288x64xbf16> -> vector<288x192xbf16>
    %c2_18 = arith.constant 2 : index
    %c0_19 = arith.constant 0 : index
    %c0_20 = arith.constant 0 : index
    %24 = vector.load %arg5[%c2_18, %c0_19, %c0_20] : memref<3x192x64xbf16, #tpu.memory_space<vmem>>, vector<1x192x64xbf16>
    %25 = vector.shape_cast %24 : vector<1x192x64xbf16> to vector<192x64xbf16>
    %cst_21 = arith.constant dense<0.000000e+00> : vector<288x64xf32>
    %26 = tpu.matmul %23, %25, %cst_21 {dimension_numbers = #tpu.dot_dimension_numbers<[1], [0], [0], [1], [0, 0, 1, 1], [], []>} : vector<288x192xbf16>, vector<192x64xbf16>, vector<288x64xf32> -> vector<288x64xf32>
    %27 = arith.addf %19, %26 : vector<288x64xf32>
    %c0_22 = arith.constant 0 : index
    %c0_23 = arith.constant 0 : index
    %28 = vector.load %arg6[%c0_22, %c0_23] : memref<1x64xf32, #tpu.memory_space<vmem>>, vector<1x64xf32>
    %29 = vector.broadcast %28 : vector<1x64xf32> to vector<288x64xf32>
    %30 = arith.addf %27, %29 : vector<288x64xf32>
    %cst_24 = arith.constant 0.000000e+00 : f32
    %31 = vector.broadcast %cst_24 : f32 to vector<288x64xf32>
    %32 = arith.maximumf %30, %31 : vector<288x64xf32>
    %33 = arith.truncf %32 : vector<288x64xf32> to vector<288x64xbf16>
    %34 = vector.extract_strided_slice %33 {offsets = [0, 0], sizes = [16, 64], strides = [1, 1]} : vector<288x64xbf16> to vector<16x64xbf16>
    %c0_25 = arith.constant 0 : index
    %c0_26 = arith.constant 0 : index
    %c0_27 = arith.constant 0 : index
    %c0_28 = arith.constant 0 : index
    %35 = vector.load %arg7[%c0_25, %c0_26, %c0_27, %c0_28] : memref<1x16x16x64xbf16, #tpu.memory_space<vmem>>, vector<1x1x16x64xbf16>
    %36 = vector.shape_cast %35 : vector<1x1x16x64xbf16> to vector<16x64xbf16>
    %37 = vector.shape_cast %34 : vector<16x64xbf16> to vector<1x1x16x64xbf16>
    tpu.vector_store %arg7[%c0_25, %c0_26, %c0_27, %c0_28], %37 {strides = array<i32>} : memref<1x16x16x64xbf16, #tpu.memory_space<vmem>>, vector<1x1x16x64xbf16>,
    %38 = vector.extract_strided_slice %33 {offsets = [18, 0], sizes = [16, 64], strides = [1, 1]} : vector<288x64xbf16> to vector<16x64xbf16>
    %c0_29 = arith.constant 0 : index
    %c1_30 = arith.constant 1 : index
    %c0_31 = arith.constant 0 : index
    %c0_32 = arith.constant 0 : index
    %39 = vector.load %arg7[%c0_29, %c1_30, %c0_31, %c0_32] : memref<1x16x16x64xbf16, #tpu.memory_space<vmem>>, vector<1x1x16x64xbf16>
    %40 = vector.shape_cast %39 : vector<1x1x16x64xbf16> to vector<16x64xbf16>
    %41 = vector.shape_cast %38 : vector<16x64xbf16> to vector<1x1x16x64xbf16>
    tpu.vector_store %arg7[%c0_29, %c1_30, %c0_31, %c0_32], %41 {strides = array<i32>} : memref<1x16x16x64xbf16, #tpu.memory_space<vmem>>, vector<1x1x16x64xbf16>,
    %42 = vector.extract_strided_slice %33 {offsets = [36, 0], sizes = [16, 64], strides = [1, 1]} : vector<288x64xbf16> to vector<16x64xbf16>
    %c0_33 = arith.constant 0 : index
    %c2_34 = arith.constant 2 : index
    %c0_35 = arith.constant 0 : index
    %c0_36 = arith.constant 0 : index
    %43 = vector.load %arg7[%c0_33, %c2_34, %c0_35, %c0_36] : memref<1x16x16x64xbf16, #tpu.memory_space<vmem>>, vector<1x1x16x64xbf16>
    %44 = vector.shape_cast %43 : vector<1x1x16x64xbf16> to vector<16x64xbf16>
    %45 = vector.shape_cast %42 : vector<16x64xbf16> to vector<1x1x16x64xbf16>
    tpu.vector_store %arg7[%c0_33, %c2_34, %c0_35, %c0_36], %45 {strides = array<i32>} : memref<1x16x16x64xbf16, #tpu.memory_space<vmem>>, vector<1x1x16x64xbf16>,
    %46 = vector.extract_strided_slice %33 {offsets = [54, 0], sizes = [16, 64], strides = [1, 1]} : vector<288x64xbf16> to vector<16x64xbf16>
    %c0_37 = arith.constant 0 : index
    %c3 = arith.constant 3 : index
    %c0_38 = arith.constant 0 : index
    %c0_39 = arith.constant 0 : index
    %47 = vector.load %arg7[%c0_37, %c3, %c0_38, %c0_39] : memref<1x16x16x64xbf16, #tpu.memory_space<vmem>>, vector<1x1x16x64xbf16>
    %48 = vector.shape_cast %47 : vector<1x1x16x64xbf16> to vector<16x64xbf16>
    %49 = vector.shape_cast %46 : vector<16x64xbf16> to vector<1x1x16x64xbf16>
    tpu.vector_store %arg7[%c0_37, %c3, %c0_38, %c0_39], %49 {strides = array<i32>} : memref<1x16x16x64xbf16, #tpu.memory_space<vmem>>, vector<1x1x16x64xbf16>,
    %50 = vector.extract_strided_slice %33 {offsets = [72, 0], sizes = [16, 64], strides = [1, 1]} : vector<288x64xbf16> to vector<16x64xbf16>
    %c0_40 = arith.constant 0 : index
    %c4 = arith.constant 4 : index
    %c0_41 = arith.constant 0 : index
    %c0_42 = arith.constant 0 : index
    %51 = vector.load %arg7[%c0_40, %c4, %c0_41, %c0_42] : memref<1x16x16x64xbf16, #tpu.memory_space<vmem>>, vector<1x1x16x64xbf16>
    %52 = vector.shape_cast %51 : vector<1x1x16x64xbf16> to vector<16x64xbf16>
    %53 = vector.shape_cast %50 : vector<16x64xbf16> to vector<1x1x16x64xbf16>
    tpu.vector_store %arg7[%c0_40, %c4, %c0_41, %c0_42], %53 {strides = array<i32>} : memref<1x16x16x64xbf16, #tpu.memory_space<vmem>>, vector<1x1x16x64xbf16>,
    %54 = vector.extract_strided_slice %33 {offsets = [90, 0], sizes = [16, 64], strides = [1, 1]} : vector<288x64xbf16> to vector<16x64xbf16>
    %c0_43 = arith.constant 0 : index
    %c5 = arith.constant 5 : index
    %c0_44 = arith.constant 0 : index
    %c0_45 = arith.constant 0 : index
    %55 = vector.load %arg7[%c0_43, %c5, %c0_44, %c0_45] : memref<1x16x16x64xbf16, #tpu.memory_space<vmem>>, vector<1x1x16x64xbf16>
    %56 = vector.shape_cast %55 : vector<1x1x16x64xbf16> to vector<16x64xbf16>
    %57 = vector.shape_cast %54 : vector<16x64xbf16> to vector<1x1x16x64xbf16>
    tpu.vector_store %arg7[%c0_43, %c5, %c0_44, %c0_45], %57 {strides = array<i32>} : memref<1x16x16x64xbf16, #tpu.memory_space<vmem>>, vector<1x1x16x64xbf16>,
    %58 = vector.extract_strided_slice %33 {offsets = [108, 0], sizes = [16, 64], strides = [1, 1]} : vector<288x64xbf16> to vector<16x64xbf16>
    %c0_46 = arith.constant 0 : index
    %c6 = arith.constant 6 : index
    %c0_47 = arith.constant 0 : index
    %c0_48 = arith.constant 0 : index
    %59 = vector.load %arg7[%c0_46, %c6, %c0_47, %c0_48] : memref<1x16x16x64xbf16, #tpu.memory_space<vmem>>, vector<1x1x16x64xbf16>
    %60 = vector.shape_cast %59 : vector<1x1x16x64xbf16> to vector<16x64xbf16>
    %61 = vector.shape_cast %58 : vector<16x64xbf16> to vector<1x1x16x64xbf16>
    tpu.vector_store %arg7[%c0_46, %c6, %c0_47, %c0_48], %61 {strides = array<i32>} : memref<1x16x16x64xbf16, #tpu.memory_space<vmem>>, vector<1x1x16x64xbf16>,
    %62 = vector.extract_strided_slice %33 {offsets = [126, 0], sizes = [16, 64], strides = [1, 1]} : vector<288x64xbf16> to vector<16x64xbf16>
    %c0_49 = arith.constant 0 : index
    %c7 = arith.constant 7 : index
    %c0_50 = arith.constant 0 : index
    %c0_51 = arith.constant 0 : index
    %63 = vector.load %arg7[%c0_49, %c7, %c0_50, %c0_51] : memref<1x16x16x64xbf16, #tpu.memory_space<vmem>>, vector<1x1x16x64xbf16>
    %64 = vector.shape_cast %63 : vector<1x1x16x64xbf16> to vector<16x64xbf16>
    %65 = vector.shape_cast %62 : vector<16x64xbf16> to vector<1x1x16x64xbf16>
    tpu.vector_store %arg7[%c0_49, %c7, %c0_50, %c0_51], %65 {strides = array<i32>} : memref<1x16x16x64xbf16, #tpu.memory_space<vmem>>, vector<1x1x16x64xbf16>,
    %66 = vector.extract_strided_slice %33 {offsets = [144, 0], sizes = [16, 64], strides = [1, 1]} : vector<288x64xbf16> to vector<16x64xbf16>
    %c0_52 = arith.constant 0 : index
    %c8 = arith.constant 8 : index
    %c0_53 = arith.constant 0 : index
    %c0_54 = arith.constant 0 : index
    %67 = vector.load %arg7[%c0_52, %c8, %c0_53, %c0_54] : memref<1x16x16x64xbf16, #tpu.memory_space<vmem>>, vector<1x1x16x64xbf16>
    %68 = vector.shape_cast %67 : vector<1x1x16x64xbf16> to vector<16x64xbf16>
    %69 = vector.shape_cast %66 : vector<16x64xbf16> to vector<1x1x16x64xbf16>
    tpu.vector_store %arg7[%c0_52, %c8, %c0_53, %c0_54], %69 {strides = array<i32>} : memref<1x16x16x64xbf16, #tpu.memory_space<vmem>>, vector<1x1x16x64xbf16>,
    %70 = vector.extract_strided_slice %33 {offsets = [162, 0], sizes = [16, 64], strides = [1, 1]} : vector<288x64xbf16> to vector<16x64xbf16>
    %c0_55 = arith.constant 0 : index
    %c9 = arith.constant 9 : index
    %c0_56 = arith.constant 0 : index
    %c0_57 = arith.constant 0 : index
    %71 = vector.load %arg7[%c0_55, %c9, %c0_56, %c0_57] : memref<1x16x16x64xbf16, #tpu.memory_space<vmem>>, vector<1x1x16x64xbf16>
    %72 = vector.shape_cast %71 : vector<1x1x16x64xbf16> to vector<16x64xbf16>
    %73 = vector.shape_cast %70 : vector<16x64xbf16> to vector<1x1x16x64xbf16>
    tpu.vector_store %arg7[%c0_55, %c9, %c0_56, %c0_57], %73 {strides = array<i32>} : memref<1x16x16x64xbf16, #tpu.memory_space<vmem>>, vector<1x1x16x64xbf16>,
    %74 = vector.extract_strided_slice %33 {offsets = [180, 0], sizes = [16, 64], strides = [1, 1]} : vector<288x64xbf16> to vector<16x64xbf16>
    %c0_58 = arith.constant 0 : index
    %c10 = arith.constant 10 : index
    %c0_59 = arith.constant 0 : index
    %c0_60 = arith.constant 0 : index
    %75 = vector.load %arg7[%c0_58, %c10, %c0_59, %c0_60] : memref<1x16x16x64xbf16, #tpu.memory_space<vmem>>, vector<1x1x16x64xbf16>
    %76 = vector.shape_cast %75 : vector<1x1x16x64xbf16> to vector<16x64xbf16>
    %77 = vector.shape_cast %74 : vector<16x64xbf16> to vector<1x1x16x64xbf16>
    tpu.vector_store %arg7[%c0_58, %c10, %c0_59, %c0_60], %77 {strides = array<i32>} : memref<1x16x16x64xbf16, #tpu.memory_space<vmem>>, vector<1x1x16x64xbf16>,
    %78 = vector.extract_strided_slice %33 {offsets = [198, 0], sizes = [16, 64], strides = [1, 1]} : vector<288x64xbf16> to vector<16x64xbf16>
    %c0_61 = arith.constant 0 : index
    %c11 = arith.constant 11 : index
    %c0_62 = arith.constant 0 : index
    %c0_63 = arith.constant 0 : index
    %79 = vector.load %arg7[%c0_61, %c11, %c0_62, %c0_63] : memref<1x16x16x64xbf16, #tpu.memory_space<vmem>>, vector<1x1x16x64xbf16>
    %80 = vector.shape_cast %79 : vector<1x1x16x64xbf16> to vector<16x64xbf16>
    %81 = vector.shape_cast %78 : vector<16x64xbf16> to vector<1x1x16x64xbf16>
    tpu.vector_store %arg7[%c0_61, %c11, %c0_62, %c0_63], %81 {strides = array<i32>} : memref<1x16x16x64xbf16, #tpu.memory_space<vmem>>, vector<1x1x16x64xbf16>,
    %82 = vector.extract_strided_slice %33 {offsets = [216, 0], sizes = [16, 64], strides = [1, 1]} : vector<288x64xbf16> to vector<16x64xbf16>
    %c0_64 = arith.constant 0 : index
    %c12 = arith.constant 12 : index
    %c0_65 = arith.constant 0 : index
    %c0_66 = arith.constant 0 : index
    %83 = vector.load %arg7[%c0_64, %c12, %c0_65, %c0_66] : memref<1x16x16x64xbf16, #tpu.memory_space<vmem>>, vector<1x1x16x64xbf16>
    %84 = vector.shape_cast %83 : vector<1x1x16x64xbf16> to vector<16x64xbf16>
    %85 = vector.shape_cast %82 : vector<16x64xbf16> to vector<1x1x16x64xbf16>
    tpu.vector_store %arg7[%c0_64, %c12, %c0_65, %c0_66], %85 {strides = array<i32>} : memref<1x16x16x64xbf16, #tpu.memory_space<vmem>>, vector<1x1x16x64xbf16>,
    %86 = vector.extract_strided_slice %33 {offsets = [234, 0], sizes = [16, 64], strides = [1, 1]} : vector<288x64xbf16> to vector<16x64xbf16>
    %c0_67 = arith.constant 0 : index
    %c13 = arith.constant 13 : index
    %c0_68 = arith.constant 0 : index
    %c0_69 = arith.constant 0 : index
    %87 = vector.load %arg7[%c0_67, %c13, %c0_68, %c0_69] : memref<1x16x16x64xbf16, #tpu.memory_space<vmem>>, vector<1x1x16x64xbf16>
    %88 = vector.shape_cast %87 : vector<1x1x16x64xbf16> to vector<16x64xbf16>
    %89 = vector.shape_cast %86 : vector<16x64xbf16> to vector<1x1x16x64xbf16>
    tpu.vector_store %arg7[%c0_67, %c13, %c0_68, %c0_69], %89 {strides = array<i32>} : memref<1x16x16x64xbf16, #tpu.memory_space<vmem>>, vector<1x1x16x64xbf16>,
    %90 = vector.extract_strided_slice %33 {offsets = [252, 0], sizes = [16, 64], strides = [1, 1]} : vector<288x64xbf16> to vector<16x64xbf16>
    %c0_70 = arith.constant 0 : index
    %c14 = arith.constant 14 : index
    %c0_71 = arith.constant 0 : index
    %c0_72 = arith.constant 0 : index
    %91 = vector.load %arg7[%c0_70, %c14, %c0_71, %c0_72] : memref<1x16x16x64xbf16, #tpu.memory_space<vmem>>, vector<1x1x16x64xbf16>
    %92 = vector.shape_cast %91 : vector<1x1x16x64xbf16> to vector<16x64xbf16>
    %93 = vector.shape_cast %90 : vector<16x64xbf16> to vector<1x1x16x64xbf16>
    tpu.vector_store %arg7[%c0_70, %c14, %c0_71, %c0_72], %93 {strides = array<i32>} : memref<1x16x16x64xbf16, #tpu.memory_space<vmem>>, vector<1x1x16x64xbf16>,
    %94 = vector.extract_strided_slice %33 {offsets = [270, 0], sizes = [16, 64], strides = [1, 1]} : vector<288x64xbf16> to vector<16x64xbf16>
    %c0_73 = arith.constant 0 : index
    %c15 = arith.constant 15 : index
    %c0_74 = arith.constant 0 : index
    %c0_75 = arith.constant 0 : index
    %95 = vector.load %arg7[%c0_73, %c15, %c0_74, %c0_75] : memref<1x16x16x64xbf16, #tpu.memory_space<vmem>>, vector<1x1x16x64xbf16>
    %96 = vector.shape_cast %95 : vector<1x1x16x64xbf16> to vector<16x64xbf16>
    %97 = vector.shape_cast %94 : vector<16x64xbf16> to vector<1x1x16x64xbf16>
    tpu.vector_store %arg7[%c0_73, %c15, %c0_74, %c0_75], %97 {strides = array<i32>} : memref<1x16x16x64xbf16, #tpu.memory_space<vmem>>, vector<1x1x16x64xbf16>,
    return
  }
  func.func @transform_0(%arg0: i32, %arg1: i32) -> (i32, i32, i32, i32) {
    %c0_i32 = arith.constant 0 : i32
    %c0_i32_0 = arith.constant 0 : i32
    %c0_i32_1 = arith.constant 0 : i32
    %c0_i32_2 = arith.constant 0 : i32
    return %arg0, %c0_i32, %c0_i32_0, %c0_i32_1 : i32, i32, i32, i32
  }
  func.func @transform_1(%arg0: i32, %arg1: i32) -> (i32, i32, i32) {
    %c0_i32 = arith.constant 0 : i32
    %c0_i32_0 = arith.constant 0 : i32
    %c0_i32_1 = arith.constant 0 : i32
    %c0_i32_2 = arith.constant 0 : i32
    return %c0_i32, %c0_i32_0, %c0_i32_1 : i32, i32, i32
  }
  func.func @transform_2(%arg0: i32, %arg1: i32) -> (i32, i32) {
    %c0_i32 = arith.constant 0 : i32
    %c0_i32_0 = arith.constant 0 : i32
    %c0_i32_1 = arith.constant 0 : i32
    return %c0_i32, %c0_i32_0 : i32, i32
  }
  func.func @transform_3(%arg0: i32, %arg1: i32) -> (i32, i32, i32) {
    %c0_i32 = arith.constant 0 : i32
    %c0_i32_0 = arith.constant 0 : i32
    %c0_i32_1 = arith.constant 0 : i32
    return %c0_i32, %c0_i32_0, %arg1 : i32, i32, i32
  }
  func.func @transform_4(%arg0: i32, %arg1: i32) -> (i32, i32) {
    %c0_i32 = arith.constant 0 : i32
    %c0_i32_0 = arith.constant 0 : i32
    return %c0_i32, %arg1 : i32, i32
  }
  func.func @transform_5(%arg0: i32, %arg1: i32) -> (i32, i32, i32, i32) {
    %c0_i32 = arith.constant 0 : i32
    %c0_i32_0 = arith.constant 0 : i32
    %c0_i32_1 = arith.constant 0 : i32
    return %arg0, %c0_i32, %c0_i32_0, %arg1 : i32, i32, i32, i32
  }
}

</mosaic_0001>

<llo_original>
// kernel: tpu_custom_call.1
$region0: #{tpu_custom_call.1}
  #allocation0 [shape = 'u32[]', space=smem, size = 0x4, offset = 0x4, fixed_abs, tag = 'smem constant byte address 0x4 - core index']
  #allocation1 [shape = 'u32[72,128]{1,0:T(1,128)}', space=vmem, size = 0x9000, scoped, tag = 'internal scratch']
  #allocation2 [shape = 'bf16[326,2]{1,0:T(8,128)(2,1)}', space=vmem, size = 0x14800, scoped, tag = 'scratch operand']
  #allocation3 [shape = 'bf16[326,64]{1,0:T(8,128)(2,1)}', space=vmem, size = 0x14800, scoped, tag = 'scratch operand']
  %s0 = inlined_call_operand.vmem [shape: bf16[2,16,16,2], index: 0, kind: input, shape index: {}]
  %s1 = inlined_call_operand.vmem [shape: bf16[3,6,64], index: 1, kind: input, shape index: {}]
  %s2 = inlined_call_operand.vmem [shape: f32[1,64], index: 2, kind: input, shape index: {}]
  %s3 = inlined_call_operand.vmem [shape: bf16[3,192,64], index: 3, kind: input, shape index: {}]
  %s4 = inlined_call_operand.vmem [shape: f32[1,64], index: 4, kind: input, shape index: {}]
  %s5 = inlined_call_operand.hbm [shape: bf16[2,16,16,64], index: 5, kind: output, shape index: {}]
  %s6 = sld [smem:[#allocation0]]
  $region57: #{tpu_custom_call.1} parent=0
    _
  %s8 = ssub.s32 1, %s6
  %s9 = scalar_select 0, %s8, %s6
  $region1: #{tpu_custom_call.1} parent=0
    #allocation4 [shape = 'u8[131072]{0}', space=vmem, size = 0x20000, scoped, tag = 'output window, operand 0']
    #allocation5 [shape = 's32[2]{0}', space=sflag, size = 0x8, scoped, tag = 'scoped memory for tpu_custom_call.1']
    %10 = vsyncpa [#allocation5], 0
    %s11 = scalar_lea.sflag [#allocation5], 1
    %12 = vsyncpa %s11, 0
    loop: start=0, step=1, limit=4
    $region2: #{tpu_custom_call.1} parent=1 // loop_pre_header
      _
    $region3: #{tpu_custom_call.1} parent=1 // loop_header
      %s14 = sphi 0, %s18
      %p15 = scmp.ge.s32.totalorder %s14, 4
      %s21 = sphi 0, %s33
      %s22 = sphi 0, %s29
      %s23 = sphi 0, %s21
      %s24 = sphi 0, %s22
      %s25 = sphi 0, %s23
      %s26 = sphi 0, %s24
      %s36 = sphi 0, %s38
      %s39 = sphi 0, %s36
      %s40 = sphi 0, %s39
      %s56 = sphi 0, %s40
      %s60 = sphi 0, %s60
      %s62 = sphi 0, %s60
      %s63 = sphi 0, %s62
      %s77 = sphi 0, %s63
      %s81 = sphi 0, %s81
      %s83 = sphi 0, %s81
      %s84 = sphi 0, %s83
      %s98 = sphi 0, %s84
      %s104 = sphi 0, %s106
      %s107 = sphi 0, %s104
      %s108 = sphi 0, %s107
      %s124 = sphi 0, %s108
      %s130 = sphi 0, %s132
      %s133 = sphi 0, %s130
      %s134 = sphi 0, %s133
      %s150 = sphi 0, %s134
      %s158 = sphi 0, %s160
      %s161 = sphi 0, %s158
      %s162 = sphi 0, %s161
      %s178 = sphi 0, %s162
    $region4: #{tpu_custom_call.1} parent=1 // loop_header_branch
      %17 = sbr.rel (%p15) target = $region8
    $region5: #{tpu_custom_call.1} parent=1 // loop_body
      %s19 = ssub.s32 %s14, 1
      %s20 = ssub.s32 %s14, 2
      %s27 = sadd.s32 1, %s22
      %p28 = scmp.ge.s32.totalorder %s27, 1
      %s29 = scalar_select %p28, 0, %s27
      %s30 = sadd.s32 1, %s21
      %s31 = scalar_select %p28, %s30, %s21
      %p32 = scmp.ge.s32.totalorder %s31, 2
      %s33 = scalar_select %p32, 0, %s31
      %s34 = ssub.s32 %s21, %s33
      %p35 = scmp.eq.s32.totalorder %s34, 0
      %s37 = sadd.s32 %s36, 1
      %s38 = scalar_select %p35, %s36, %s37
      %p41 = pneg %p35
      %p42 = scmp.eq.s32.totalorder %s14, 1
      %p43 = por %p41, %p42
      %p44 = scmp.ne.s32.totalorder %s36, %s39
      %p45 = scmp.eq.s32.totalorder %s14, 0
      %p46 = por %p44, %p45
      %p47 = scmp.ne.s32.totalorder %s36, %s39
      %p48 = scmp.eq.s32.totalorder %s19, 1
      %p49 = por %p47, %p48
      %p50 = scmp.ne.s32.totalorder %s39, %s40
      %p51 = scmp.eq.s32.totalorder %s19, 0
      %p52 = por %p50, %p51
      %p53 = scmp.ne.s32.totalorder %s39, %s40
      %p54 = scmp.eq.s32.totalorder %s20, 1
      %p55 = por %p53, %p54
      %p57 = scmp.ne.s32.totalorder %s40, %s56
      %p58 = scmp.eq.s32.totalorder %s20, 0
      %p59 = por %p57, %p58
      %s61 = sadd.s32 %s60, 1
      %p64 = scmp.eq.s32.totalorder %s14, 1
      %p65 = scmp.ne.s32.totalorder %s60, %s62
      %p66 = scmp.eq.s32.totalorder %s14, 0
      %p67 = por %p65, %p66
      %p68 = scmp.ne.s32.totalorder %s60, %s62
      %p69 = scmp.eq.s32.totalorder %s19, 1
      %p70 = por %p68, %p69
      %p71 = scmp.ne.s32.totalorder %s62, %s63
      %p72 = scmp.eq.s32.totalorder %s19, 0
      %p73 = por %p71, %p72
      %p74 = scmp.ne.s32.totalorder %s62, %s63
      %p75 = scmp.eq.s32.totalorder %s20, 1
      %p76 = por %p74, %p75
      %p78 = scmp.ne.s32.totalorder %s63, %s77
      %p79 = scmp.eq.s32.totalorder %s20, 0
      %p80 = por %p78, %p79
      %s82 = sadd.s32 %s81, 1
      %p85 = scmp.eq.s32.totalorder %s14, 1
      %p86 = scmp.ne.s32.totalorder %s81, %s83
      %p87 = scmp.eq.s32.totalorder %s14, 0
      %p88 = por %p86, %p87
      %p89 = scmp.ne.s32.totalorder %s81, %s83
      %p90 = scmp.eq.s32.totalorder %s19, 1
      %p91 = por %p89, %p90
      %p92 = scmp.ne.s32.totalorder %s83, %s84
      %p93 = scmp.eq.s32.totalorder %s19, 0
      %p94 = por %p92, %p93
      %p95 = scmp.ne.s32.totalorder %s83, %s84
      %p96 = scmp.eq.s32.totalorder %s20, 1
      %p97 = por %p95, %p96
      %p99 = scmp.ne.s32.totalorder %s84, %s98
      %p100 = scmp.eq.s32.totalorder %s20, 0
      %p101 = por %p99, %p100
      %s102 = ssub.s32 %s22, %s29
      %p103 = scmp.eq.s32.totalorder %s102, 0
      %s105 = sadd.s32 %s104, 1
      %s106 = scalar_select %p103, %s104, %s105
      %p109 = pneg %p103
      %p110 = scmp.eq.s32.totalorder %s14, 1
      %p111 = por %p109, %p110
      %p112 = scmp.ne.s32.totalorder %s104, %s107
      %p113 = scmp.eq.s32.totalorder %s14, 0
      %p114 = por %p112, %p113
      %p115 = scmp.ne.s32.totalorder %s104, %s107
      %p116 = scmp.eq.s32.totalorder %s19, 1
      %p117 = por %p115, %p116
      %p118 = scmp.ne.s32.totalorder %s107, %s108
      %p119 = scmp.eq.s32.totalorder %s19, 0
      %p120 = por %p118, %p119
      %p121 = scmp.ne.s32.totalorder %s107, %s108
      %p122 = scmp.eq.s32.totalorder %s20, 1
      %p123 = por %p121, %p122
      %p125 = scmp.ne.s32.totalorder %s108, %s124
      %p126 = scmp.eq.s32.totalorder %s20, 0
      %p127 = por %p125, %p126
      %s128 = ssub.s32 %s22, %s29
      %p129 = scmp.eq.s32.totalorder %s128, 0
      %s131 = sadd.s32 %s130, 1
      %s132 = scalar_select %p129, %s130, %s131
      %p135 = pneg %p129
      %p136 = scmp.eq.s32.totalorder %s14, 1
      %p137 = por %p135, %p136
      %p138 = scmp.ne.s32.totalorder %s130, %s133
      %p139 = scmp.eq.s32.totalorder %s14, 0
      %p140 = por %p138, %p139
      %p141 = scmp.ne.s32.totalorder %s130, %s133
      %p142 = scmp.eq.s32.totalorder %s19, 1
      %p143 = por %p141, %p142
      %p144 = scmp.ne.s32.totalorder %s133, %s134
      %p145 = scmp.eq.s32.totalorder %s19, 0
      %p146 = por %p144, %p145
      %p147 = scmp.ne.s32.totalorder %s133, %s134
      %p148 = scmp.eq.s32.totalorder %s20, 1
      %p149 = por %p147, %p148
      %p151 = scmp.ne.s32.totalorder %s134, %s150
      %p152 = scmp.eq.s32.totalorder %s20, 0
      %p153 = por %p151, %p152
      %s154 = ssub.s32 %s21, %s33
      %s155 = ssub.s32 %s22, %s29
      %s156 = sor.u32 %s154, %s155
      %p157 = scmp.eq.s32.totalorder %s156, 0
      %s159 = sadd.s32 %s158, 1
      %s160 = scalar_select %p157, %s158, %s159
      %p163 = pneg %p157
      %p164 = scmp.eq.s32.totalorder %s14, 1
      %p165 = por %p163, %p164
      %p166 = scmp.ne.s32.totalorder %s158, %s161
      %p167 = scmp.eq.s32.totalorder %s14, 0
      %p168 = por %p166, %p167
      %p169 = scmp.ne.s32.totalorder %s158, %s161
      %p170 = scmp.eq.s32.totalorder %s19, 1
      %p171 = por %p169, %p170
      %p172 = scmp.ne.s32.totalorder %s161, %s162
      %p173 = scmp.eq.s32.totalorder %s19, 0
      %p174 = por %p172, %p173
      %p175 = scmp.ne.s32.totalorder %s161, %s162
      %p176 = scmp.eq.s32.totalorder %s20, 1
      %p177 = por %p175, %p176
      %p179 = scmp.ne.s32.totalorder %s162, %s178
      %p180 = scmp.eq.s32.totalorder %s20, 0
      %p181 = por %p179, %p180
      %p182 = scmp.le.s32.totalorder 1, %s14
      %p183 = scmp.lt.s32.totalorder %s14, 3
      %p184 = pnand %p182, %p183
      %p185 = pneg %p184
      // Predicated region
      $region9: #{tpu_custom_call.1} parent=5 // pred_check
        _
      $region10: #{tpu_custom_call.1} parent=5 // pred_check_branch
        %187 = sbr.rel (%p184) target = $region12
      $region11: #{tpu_custom_call.1} parent=5 // pred_region
        %s188 = ssub.s32 %s14, 1
        // Predicated region
        $region13: #{tpu_custom_call.1} parent=11 // pred_check
          %p189 = pneg %p73
        $region14: #{tpu_custom_call.1} parent=11 // pred_check_branch
          %191 = sbr.rel (%p189) target = $region16
        $region15: #{tpu_custom_call.1} parent=11 // pred_region
          _
        $region16: #{tpu_custom_call.1} parent=11 // pred_fallthru
          _
        // Predicated region
        $region17: #{tpu_custom_call.1} parent=11 // pred_check
          %p192 = pneg %p94
        $region18: #{tpu_custom_call.1} parent=11 // pred_check_branch
          %194 = sbr.rel (%p192) target = $region20
        $region19: #{tpu_custom_call.1} parent=11 // pred_region
          _
        $region20: #{tpu_custom_call.1} parent=11 // pred_fallthru
          _
        // Predicated region
        $region21: #{tpu_custom_call.1} parent=11 // pred_check
          %p195 = pneg %p120
        $region22: #{tpu_custom_call.1} parent=11 // pred_check_branch
          %197 = sbr.rel (%p195) target = $region24
        $region23: #{tpu_custom_call.1} parent=11 // pred_region
          %p198 = scmp.lt.s32.totalorder %s24, 0
          %s199 = scalar_select %p198, %s24, 0
          %s200 = smul.addr %s199, 4
          %s201 = scalar_lea.vmem %s3, %s200
        $region24: #{tpu_custom_call.1} parent=11 // pred_fallthru
          _
        // Predicated region
        $region25: #{tpu_custom_call.1} parent=11 // pred_check
          %p202 = pneg %p146
        $region26: #{tpu_custom_call.1} parent=11 // pred_check_branch
          %204 = sbr.rel (%p202) target = $region28
        $region27: #{tpu_custom_call.1} parent=11 // pred_region
          %p205 = scmp.lt.s32.totalorder %s24, 0
          %s206 = scalar_select %p205, %s24, 0
          %s207 = scalar_lea.vmem %s4, %s206
        $region28: #{tpu_custom_call.1} parent=11 // pred_fallthru
          _
      $region12: #{tpu_custom_call.1} parent=5 // pred_fallthru
        _
      %p208 = scmp.lt.s32.totalorder %s14, 2
      // Predicated region
      $region29: #{tpu_custom_call.1} parent=5 // pred_check
        %p209 = pneg %p208
      $region30: #{tpu_custom_call.1} parent=5 // pred_check_branch
        %211 = sbr.rel (%p209) target = $region32
      $region31: #{tpu_custom_call.1} parent=5 // pred_region
        // Predicated region
        $region33: #{tpu_custom_call.1} parent=31 // pred_check
          %p212 = pneg %p46
        $region34: #{tpu_custom_call.1} parent=31 // pred_check_branch
          %214 = sbr.rel (%p212) target = $region36
        $region35: #{tpu_custom_call.1} parent=31 // pred_region
          %p215 = scmp.lt.s32.totalorder %s21, 1
          %s216 = scalar_select %p215, %s21, 1
          %s217 = smul.addr %s216, 32
          %s218 = smul.addr %s217, 4
          %s219 = scalar_lea.vmem %s0, %s218
        $region36: #{tpu_custom_call.1} parent=31 // pred_fallthru
          _
      $region32: #{tpu_custom_call.1} parent=5 // pred_fallthru
        _
      %p220 = scmp.le.s32.totalorder 1, %s14
      %p221 = scmp.lt.s32.totalorder %s14, 3
      %p222 = pnand %p220, %p221
      %p223 = pneg %p222
      // Predicated region
      $region37: #{tpu_custom_call.1} parent=5 // pred_check
        _
      $region38: #{tpu_custom_call.1} parent=5 // pred_check_branch
        %225 = sbr.rel (%p222) target = $region40
      $region39: #{tpu_custom_call.1} parent=5 // pred_region
        %s226 = ssub.s32 %s14, 1
        %p227 = scmp.lt.s32.totalorder %s23, 1
        %s228 = scalar_select %p227, %s23, 1
        %s229 = smul.addr %s228, 32
        %s230 = smul.addr %s229, 4
        %s231 = scalar_lea.vmem %s0, %s230
        %p232 = pneg %p52
        %p233 = pneg %p49
        %p234 = pneg %p73
        %p235 = pneg %p70
        %p236 = pneg %p94
        %p237 = pneg %p91
        %p238 = scmp.lt.s32.totalorder %s24, 0
        %s239 = scalar_select %p238, %s24, 0
        %s240 = smul.addr %s239, 4
        %s241 = scalar_lea.vmem %s3, %s240
        %p242 = pneg %p120
        %p243 = pneg %p117
        %p244 = scmp.lt.s32.totalorder %s24, 0
        %s245 = scalar_select %p244, %s24, 0
        %s246 = scalar_lea.vmem %s4, %s245
        %p247 = pneg %p146
        %p248 = pneg %p143
        %p249 = pneg %p174
        %p250 = pneg %p171
        %s251 = sand.u32 %s161, 1
        %s252 = scalar_lea.sflag [#allocation5], %s251
        %s253 = sand.u32 %s161, 1
        %s254 = smul.addr %s253, 128
        %s255 = scalar_lea.vmem [#allocation4], %s254
        %p256 = scmp.lt.s32.totalorder %s23, 1
        %s257 = scalar_select %p256, %s23, 1
        %s258 = smul.addr %s257, 32
        %s259 = smul.addr %s258, 4
        %s260 = scalar_lea.vmem %s0, %s259
        %p261 = scmp.lt.s32.totalorder %s24, 0
        %s262 = scalar_select %p261, %s24, 0
        %s263 = smul.addr %s262, 4
        %s264 = scalar_lea.vmem %s3, %s263
        %p265 = scmp.lt.s32.totalorder %s24, 0
        %s266 = scalar_select %p265, %s24, 0
        %s267 = scalar_lea.vmem %s4, %s266
        %p269 = scmp.eq.s32.totalorder %s24, 0
        // Predicated region
        $region41: #{tpu_custom_call.1} parent=39 // pred_check
          %p270 = pneg %p269
        $region42: #{tpu_custom_call.1} parent=39 // pred_check_branch
          %272 = sbr.rel (%p270) target = $region44
        $region43: #{tpu_custom_call.1} parent=39 // pred_region
          %v273 = vld [vmem:[%s260] sm:$0xf]
          %v274 = vld [vmem:[%s260 + $0x4] sm:$0xf]
          %vm275 = vsmask.f32 1280
          %vm276 = vsmask.f32 5392
          %vm277 = vmor %vm275, %vm276
          %v279 = vshrl.u32 %v273, 16
          %v281 = vrot.slane %v279, 6
          %v282 = vshll.u32 %v273, 16
          %v284 = vrot.slane %v282, 7
          %v285 = vor.u32 %v281, %v284
          %v286 = vrot.slane %v285, 4
          %v288 = vshrl.u32 %v274, 16
          %v290 = vrot.slane %v288, 6
          %v291 = vshll.u32 %v274, 16
          %v293 = vrot.slane %v291, 7
          %v294 = vor.u32 %v290, %v293
          %v295 = vsel %vm277, %v286, %v294
          %v296 = vrot.slane %v294, 4
          %vm300 = vcmask 11265
          %vm301 = vsmask.f32 7942
          %vm302 = vmand %vm300, %vm301
          %v303 = vld [vmem:[#allocation2 + $0x8] sm:$0xe]
          %v304 = vsel %vm302, %v285, %v303
          %305 = vst [vmem:[#allocation2 + $0x8] sm:$0xe] %v304
          %vm306 = vcmask 11264
          %307 = vst.msk [vmem:[#allocation2 + $0xc] sm:$0xf] %vm306, %v295
          %vm308 = vcmask 9216
          %vm309 = vmand %vm308, %vm275
          %v310 = vld [vmem:[#allocation2 + $0x10] sm:$0x3]
          %v311 = vsel %vm309, %v296, %v310
          %312 = vst [vmem:[#allocation2 + $0x10] sm:$0x3] %v311
          %s313 = scalar_lea.vmem %s260, 8
          %v314 = vld [vmem:[%s313] sm:$0xf]
          %v315 = vld [vmem:[%s313 + $0x4] sm:$0xf]
          %vm316 = vsmask.f32 2304
          %vm317 = vsmask.f32 6416
          %vm318 = vmor %vm316, %vm317
          %v320 = vshrl.u32 %v314, 16
          %v322 = vrot.slane %v320, 5
          %v323 = vshll.u32 %v314, 16
          %v325 = vrot.slane %v323, 6
          %v326 = vor.u32 %v322, %v325
          %v327 = vrot.slane %v326, 4
          %v329 = vshrl.u32 %v315, 16
          %v331 = vrot.slane %v329, 5
          %v332 = vshll.u32 %v315, 16
          %v334 = vrot.slane %v332, 6
          %v335 = vor.u32 %v331, %v334
          %v336 = vsel %vm318, %v327, %v335
          %v337 = vrot.slane %v335, 4
          %vm341 = vcmask 11266
          %vm342 = vsmask.f32 7946
          %vm343 = vmand %vm341, %vm342
          %v344 = vld [vmem:[#allocation2 + $0x10] sm:$0xc]
          %v345 = vsel %vm343, %v326, %v344
          %346 = vst [vmem:[#allocation2 + $0x10] sm:$0xc] %v345
          %347 = vst.msk [vmem:[#allocation2 + $0x14] sm:$0xf] %vm306, %v336
          %vm348 = vcmask 10240
          %vm349 = vmand %vm348, %vm316
          %v350 = vld [vmem:[#allocation2 + $0x18] sm:$0x7]
          %v351 = vsel %vm349, %v337, %v350
          %352 = vst [vmem:[#allocation2 + $0x18] sm:$0x7] %v351
          %s353 = scalar_lea.vmem %s260, 16
          %v354 = vld [vmem:[%s353] sm:$0xf]
          %v355 = vld [vmem:[%s353 + $0x4] sm:$0xf]
          %vm356 = vsmask.f32 3328
          %vm357 = vsmask.f32 7440
          %vm358 = vmor %vm356, %vm357
          %v360 = vshll.u32 %v354, 16
          %v362 = vrot.slane %v360, 5
          %v363 = vshrl.u32 %v354, 16
          %v365 = vrot.slane %v363, 4
          %v366 = vor.u32 %v365, %v362
          %v367 = vrot.slane %v366, 4
          %v369 = vshll.u32 %v355, 16
          %v371 = vrot.slane %v369, 5
          %v372 = vsel %vm358, %v367, %v371
          %v373 = vshrl.u32 %v355, 16
          %v375 = vrot.slane %v373, 4
          %v376 = vor.u32 %v375, %v371
          %v377 = vrot.slane %v376, 4
          %vm381 = vcmask 11267
          %vm382 = vsmask.f32 7950
          %vm383 = vmand %vm381, %vm382
          %v384 = vld [vmem:[#allocation2 + $0x18] sm:$0x8]
          %v385 = vsel %vm383, %v362, %v384
          %386 = vst [vmem:[#allocation2 + $0x18] sm:$0x8] %v385
          %387 = vst.msk [vmem:[#allocation2 + $0x1c] sm:$0xf] %vm306, %v372
          %vm388 = vcmask 11264
          %vm389 = vmand %vm388, %vm356
          %v390 = vld [vmem:[#allocation2 + $0x20] sm:$0xf]
          %v391 = vsel %vm389, %v377, %v390
          %392 = vst [vmem:[#allocation2 + $0x20] sm:$0xf] %v391
          %s393 = scalar_lea.vmem %s260, 24
          %v394 = vld [vmem:[%s393] sm:$0xf]
          %v395 = vld [vmem:[%s393 + $0x4] sm:$0xf]
          %vm396 = vsmask.f32 256
          %vm397 = vsmask.f32 4368
          %vm398 = vmor %vm396, %vm397
          %v400 = vshrl.u32 %v394, 16
          %v402 = vrot.slane %v400, 7
          %v403 = vshll.u32 %v394, 16
          %v405 = vor.u32 %v402, %v403
          %v406 = vrot.slane %v402, 4
          %v408 = vshrl.u32 %v395, 16
          %v410 = vrot.slane %v408, 7
          %v411 = vshll.u32 %v395, 16
          %v413 = vor.u32 %v410, %v411
          %v414 = vsel %vm398, %v406, %v413
          %v415 = vrot.slane %v410, 4
          %vm419 = vsmask.f32 7938
          %vm420 = vmand %vm388, %vm419
          %v421 = vld [vmem:[#allocation2 + $0x24] sm:$0xf]
          %v422 = vsel %vm420, %v405, %v421
          %423 = vst [vmem:[#allocation2 + $0x24] sm:$0xf] %v422
          %424 = vst.msk [vmem:[#allocation2 + $0x28] sm:$0xf] %vm306, %v414
          %vm425 = vcmask 8192
          %vm426 = vmand %vm425, %vm396
          %v427 = vld [vmem:[#allocation2 + $0x2c] sm:$0x1]
          %v428 = vsel %vm426, %v415, %v427
          %429 = vst [vmem:[#allocation2 + $0x2c] sm:$0x1] %v428
          %s430 = scalar_lea.vmem %s260, 32
          %v431 = vld [vmem:[%s430] sm:$0xf]
          %v432 = vld [vmem:[%s430 + $0x4] sm:$0xf]
          %v434 = vshrl.u32 %v431, 16
          %v436 = vrot.slane %v434, 6
          %v437 = vshll.u32 %v431, 16
          %v439 = vrot.slane %v437, 7
          %v440 = vor.u32 %v436, %v439
          %v441 = vrot.slane %v440, 4
          %v443 = vshrl.u32 %v432, 16
          %v445 = vrot.slane %v443, 6
          %v446 = vshll.u32 %v432, 16
          %v448 = vrot.slane %v446, 7
          %v449 = vor.u32 %v445, %v448
          %v450 = vsel %vm277, %v441, %v449
          %v451 = vrot.slane %v449, 4
          %v455 = vld [vmem:[#allocation2 + $0x2c] sm:$0xe]
          %v456 = vsel %vm302, %v440, %v455
          %457 = vst [vmem:[#allocation2 + $0x2c] sm:$0xe] %v456
          %458 = vst.msk [vmem:[#allocation2 + $0x30] sm:$0xf] %vm306, %v450
          %v459 = vld [vmem:[#allocation2 + $0x34] sm:$0x3]
          %v460 = vsel %vm309, %v451, %v459
          %461 = vst [vmem:[#allocation2 + $0x34] sm:$0x3] %v460
          %s462 = scalar_lea.vmem %s260, 40
          %v463 = vld [vmem:[%s462] sm:$0xf]
          %v464 = vld [vmem:[%s462 + $0x4] sm:$0xf]
          %v466 = vshrl.u32 %v463, 16
          %v468 = vrot.slane %v466, 5
          %v469 = vshll.u32 %v463, 16
          %v471 = vrot.slane %v469, 6
          %v472 = vor.u32 %v468, %v471
          %v473 = vrot.slane %v472, 4
          %v475 = vshrl.u32 %v464, 16
          %v477 = vrot.slane %v475, 5
          %v478 = vshll.u32 %v464, 16
          %v480 = vrot.slane %v478, 6
          %v481 = vor.u32 %v477, %v480
          %v482 = vsel %vm318, %v473, %v481
          %v483 = vrot.slane %v481, 4
          %v487 = vld [vmem:[#allocation2 + $0x34] sm:$0xc]
          %v488 = vsel %vm343, %v472, %v487
          %489 = vst [vmem:[#allocation2 + $0x34] sm:$0xc] %v488
          %490 = vst.msk [vmem:[#allocation2 + $0x38] sm:$0xf] %vm306, %v482
          %v491 = vld [vmem:[#allocation2 + $0x3c] sm:$0x7]
          %v492 = vsel %vm349, %v483, %v491
          %493 = vst [vmem:[#allocation2 + $0x3c] sm:$0x7] %v492
          %s494 = scalar_lea.vmem %s260, 48
          %v495 = vld [vmem:[%s494] sm:$0xf]
          %v496 = vld [vmem:[%s494 + $0x4] sm:$0xf]
          %v498 = vshll.u32 %v495, 16
          %v500 = vrot.slane %v498, 5
          %v501 = vshrl.u32 %v495, 16
          %v503 = vrot.slane %v501, 4
          %v504 = vor.u32 %v503, %v500
          %v505 = vrot.slane %v504, 4
          %v507 = vshll.u32 %v496, 16
          %v509 = vrot.slane %v507, 5
          %v510 = vsel %vm358, %v505, %v509
          %v511 = vshrl.u32 %v496, 16
          %v513 = vrot.slane %v511, 4
          %v514 = vor.u32 %v513, %v509
          %v515 = vrot.slane %v514, 4
          %v519 = vld [vmem:[#allocation2 + $0x3c] sm:$0x8]
          %v520 = vsel %vm383, %v500, %v519
          %521 = vst [vmem:[#allocation2 + $0x3c] sm:$0x8] %v520
          %522 = vst.msk [vmem:[#allocation2 + $0x40] sm:$0xf] %vm306, %v510
          %v523 = vld [vmem:[#allocation2 + $0x44] sm:$0xf]
          %v524 = vsel %vm389, %v515, %v523
          %525 = vst [vmem:[#allocation2 + $0x44] sm:$0xf] %v524
          %s526 = scalar_lea.vmem %s260, 56
          %v527 = vld [vmem:[%s526] sm:$0xf]
          %v528 = vld [vmem:[%s526 + $0x4] sm:$0xf]
          %v530 = vshrl.u32 %v527, 16
          %v532 = vrot.slane %v530, 7
          %v533 = vshll.u32 %v527, 16
          %v535 = vor.u32 %v532, %v533
          %v536 = vrot.slane %v532, 4
          %v538 = vshrl.u32 %v528, 16
          %v540 = vrot.slane %v538, 7
          %v541 = vshll.u32 %v528, 16
          %v543 = vor.u32 %v540, %v541
          %v544 = vsel %vm398, %v536, %v543
          %v545 = vrot.slane %v540, 4
          %v549 = vld [vmem:[#allocation2 + $0x48] sm:$0xf]
          %v550 = vsel %vm420, %v535, %v549
          %551 = vst [vmem:[#allocation2 + $0x48] sm:$0xf] %v550
          %552 = vst.msk [vmem:[#allocation2 + $0x4c] sm:$0xf] %vm306, %v544
          %v553 = vld [vmem:[#allocation2 + $0x50] sm:$0x1]
          %v554 = vsel %vm426, %v545, %v553
          %555 = vst [vmem:[#allocation2 + $0x50] sm:$0x1] %v554
          %s556 = scalar_lea.vmem %s260, 64
          %v557 = vld [vmem:[%s556] sm:$0xf]
          %v558 = vld [vmem:[%s556 + $0x4] sm:$0xf]
          %v560 = vshrl.u32 %v557, 16
          %v562 = vrot.slane %v560, 6
          %v563 = vshll.u32 %v557, 16
          %v565 = vrot.slane %v563, 7
          %v566 = vor.u32 %v562, %v565
          %v567 = vrot.slane %v566, 4
          %v569 = vshrl.u32 %v558, 16
          %v571 = vrot.slane %v569, 6
          %v572 = vshll.u32 %v558, 16
          %v574 = vrot.slane %v572, 7
          %v575 = vor.u32 %v571, %v574
          %v576 = vsel %vm277, %v567, %v575
          %v577 = vrot.slane %v575, 4
          %v581 = vld [vmem:[#allocation2 + $0x50] sm:$0xe]
          %v582 = vsel %vm302, %v566, %v581
          %583 = vst [vmem:[#allocation2 + $0x50] sm:$0xe] %v582
          %584 = vst.msk [vmem:[#allocation2 + $0x54] sm:$0xf] %vm306, %v576
          %v585 = vld [vmem:[#allocation2 + $0x58] sm:$0x3]
          %v586 = vsel %vm309, %v577, %v585
          %587 = vst [vmem:[#allocation2 + $0x58] sm:$0x3] %v586
          %s588 = scalar_lea.vmem %s260, 72
          %v589 = vld [vmem:[%s588] sm:$0xf]
          %v590 = vld [vmem:[%s588 + $0x4] sm:$0xf]
          %v592 = vshrl.u32 %v589, 16
          %v594 = vrot.slane %v592, 5
          %v595 = vshll.u32 %v589, 16
          %v597 = vrot.slane %v595, 6
          %v598 = vor.u32 %v594, %v597
          %v599 = vrot.slane %v598, 4
          %v601 = vshrl.u32 %v590, 16
          %v603 = vrot.slane %v601, 5
          %v604 = vshll.u32 %v590, 16
          %v606 = vrot.slane %v604, 6
          %v607 = vor.u32 %v603, %v606
          %v608 = vsel %vm318, %v599, %v607
          %v609 = vrot.slane %v607, 4
          %v613 = vld [vmem:[#allocation2 + $0x58] sm:$0xc]
          %v614 = vsel %vm343, %v598, %v613
          %615 = vst [vmem:[#allocation2 + $0x58] sm:$0xc] %v614
          %616 = vst.msk [vmem:[#allocation2 + $0x5c] sm:$0xf] %vm306, %v608
          %v617 = vld [vmem:[#allocation2 + $0x60] sm:$0x7]
          %v618 = vsel %vm349, %v609, %v617
          %619 = vst [vmem:[#allocation2 + $0x60] sm:$0x7] %v618
          %s620 = scalar_lea.vmem %s260, 80
          %v621 = vld [vmem:[%s620] sm:$0xf]
          %v622 = vld [vmem:[%s620 + $0x4] sm:$0xf]
          %v624 = vshll.u32 %v621, 16
          %v626 = vrot.slane %v624, 5
          %v627 = vshrl.u32 %v621, 16
          %v629 = vrot.slane %v627, 4
          %v630 = vor.u32 %v629, %v626
          %v631 = vrot.slane %v630, 4
          %v633 = vshll.u32 %v622, 16
          %v635 = vrot.slane %v633, 5
          %v636 = vsel %vm358, %v631, %v635
          %v637 = vshrl.u32 %v622, 16
          %v639 = vrot.slane %v637, 4
          %v640 = vor.u32 %v639, %v635
          %v641 = vrot.slane %v640, 4
          %v645 = vld [vmem:[#allocation2 + $0x60] sm:$0x8]
          %v646 = vsel %vm383, %v626, %v645
          %647 = vst [vmem:[#allocation2 + $0x60] sm:$0x8] %v646
          %648 = vst.msk [vmem:[#allocation2 + $0x64] sm:$0xf] %vm306, %v636
          %v649 = vld [vmem:[#allocation2 + $0x68] sm:$0xf]
          %v650 = vsel %vm389, %v641, %v649
          %651 = vst [vmem:[#allocation2 + $0x68] sm:$0xf] %v650
          %s652 = scalar_lea.vmem %s260, 88
          %v653 = vld [vmem:[%s652] sm:$0xf]
          %v654 = vld [vmem:[%s652 + $0x4] sm:$0xf]
          %v656 = vshrl.u32 %v653, 16
          %v658 = vrot.slane %v656, 7
          %v659 = vshll.u32 %v653, 16
          %v661 = vor.u32 %v658, %v659
          %v662 = vrot.slane %v658, 4
          %v664 = vshrl.u32 %v654, 16
          %v666 = vrot.slane %v664, 7
          %v667 = vshll.u32 %v654, 16
          %v669 = vor.u32 %v666, %v667
          %v670 = vsel %vm398, %v662, %v669
          %v671 = vrot.slane %v666, 4
          %v675 = vld [vmem:[#allocation2 + $0x6c] sm:$0xf]
          %v676 = vsel %vm420, %v661, %v675
          %677 = vst [vmem:[#allocation2 + $0x6c] sm:$0xf] %v676
          %678 = vst.msk [vmem:[#allocation2 + $0x70] sm:$0xf] %vm306, %v670
          %v679 = vld [vmem:[#allocation2 + $0x74] sm:$0x1]
          %v680 = vsel %vm426, %v671, %v679
          %681 = vst [vmem:[#allocation2 + $0x74] sm:$0x1] %v680
          %s682 = scalar_lea.vmem %s260, 96
          %v683 = vld [vmem:[%s682] sm:$0xf]
          %v684 = vld [vmem:[%s682 + $0x4] sm:$0xf]
          %v686 = vshrl.u32 %v683, 16
          %v688 = vrot.slane %v686, 6
          %v689 = vshll.u32 %v683, 16
          %v691 = vrot.slane %v689, 7
          %v692 = vor.u32 %v688, %v691
          %v693 = vrot.slane %v692, 4
          %v695 = vshrl.u32 %v684, 16
          %v697 = vrot.slane %v695, 6
          %v698 = vshll.u32 %v684, 16
          %v700 = vrot.slane %v698, 7
          %v701 = vor.u32 %v697, %v700
          %v702 = vsel %vm277, %v693, %v701
          %v703 = vrot.slane %v701, 4
          %v707 = vld [vmem:[#allocation2 + $0x74] sm:$0xe]
          %v708 = vsel %vm302, %v692, %v707
          %709 = vst [vmem:[#allocation2 + $0x74] sm:$0xe] %v708
          %710 = vst.msk [vmem:[#allocation2 + $0x78] sm:$0xf] %vm306, %v702
          %v711 = vld [vmem:[#allocation2 + $0x7c] sm:$0x3]
          %v712 = vsel %vm309, %v703, %v711
          %713 = vst [vmem:[#allocation2 + $0x7c] sm:$0x3] %v712
          %s714 = scalar_lea.vmem %s260, 104
          %v715 = vld [vmem:[%s714] sm:$0xf]
          %v716 = vld [vmem:[%s714 + $0x4] sm:$0xf]
          %v718 = vshrl.u32 %v715, 16
          %v720 = vrot.slane %v718, 5
          %v721 = vshll.u32 %v715, 16
          %v723 = vrot.slane %v721, 6
          %v724 = vor.u32 %v720, %v723
          %v725 = vrot.slane %v724, 4
          %v727 = vshrl.u32 %v716, 16
          %v729 = vrot.slane %v727, 5
          %v730 = vshll.u32 %v716, 16
          %v732 = vrot.slane %v730, 6
          %v733 = vor.u32 %v729, %v732
          %v734 = vsel %vm318, %v725, %v733
          %v735 = vrot.slane %v733, 4
          %v739 = vld [vmem:[#allocation2 + $0x7c] sm:$0xc]
          %v740 = vsel %vm343, %v724, %v739
          %741 = vst [vmem:[#allocation2 + $0x7c] sm:$0xc] %v740
          %742 = vst.msk [vmem:[#allocation2 + $0x80] sm:$0xf] %vm306, %v734
          %v743 = vld [vmem:[#allocation2 + $0x84] sm:$0x7]
          %v744 = vsel %vm349, %v735, %v743
          %745 = vst [vmem:[#allocation2 + $0x84] sm:$0x7] %v744
          %s746 = scalar_lea.vmem %s260, 112
          %v747 = vld [vmem:[%s746] sm:$0xf]
          %v748 = vld [vmem:[%s746 + $0x4] sm:$0xf]
          %v750 = vshll.u32 %v747, 16
          %v752 = vrot.slane %v750, 5
          %v753 = vshrl.u32 %v747, 16
          %v755 = vrot.slane %v753, 4
          %v756 = vor.u32 %v755, %v752
          %v757 = vrot.slane %v756, 4
          %v759 = vshll.u32 %v748, 16
          %v761 = vrot.slane %v759, 5
          %v762 = vsel %vm358, %v757, %v761
          %v763 = vshrl.u32 %v748, 16
          %v765 = vrot.slane %v763, 4
          %v766 = vor.u32 %v765, %v761
          %v767 = vrot.slane %v766, 4
          %v771 = vld [vmem:[#allocation2 + $0x84] sm:$0x8]
          %v772 = vsel %vm383, %v752, %v771
          %773 = vst [vmem:[#allocation2 + $0x84] sm:$0x8] %v772
          %774 = vst.msk [vmem:[#allocation2 + $0x88] sm:$0xf] %vm306, %v762
          %v775 = vld [vmem:[#allocation2 + $0x8c] sm:$0xf]
          %v776 = vsel %vm389, %v767, %v775
          %777 = vst [vmem:[#allocation2 + $0x8c] sm:$0xf] %v776
          %s778 = scalar_lea.vmem %s260, 120
          %v779 = vld [vmem:[%s778] sm:$0xf]
          %v780 = vld [vmem:[%s778 + $0x4] sm:$0xf]
          %v782 = vshrl.u32 %v779, 16
          %v784 = vrot.slane %v782, 7
          %v785 = vshll.u32 %v779, 16
          %v787 = vor.u32 %v784, %v785
          %v788 = vrot.slane %v784, 4
          %v790 = vshrl.u32 %v780, 16
          %v792 = vrot.slane %v790, 7
          %v793 = vshll.u32 %v780, 16
          %v795 = vor.u32 %v792, %v793
          %v796 = vsel %vm398, %v788, %v795
          %v797 = vrot.slane %v792, 4
          %v801 = vld [vmem:[#allocation2 + $0x90] sm:$0xf]
          %v802 = vsel %vm420, %v787, %v801
          %803 = vst [vmem:[#allocation2 + $0x90] sm:$0xf] %v802
          %804 = vst.msk [vmem:[#allocation2 + $0x94] sm:$0xf] %vm306, %v796
          %v805 = vld [vmem:[#allocation2 + $0x98] sm:$0x1]
          %v806 = vsel %vm426, %v797, %v805
          %807 = vst [vmem:[#allocation2 + $0x98] sm:$0x1] %v806
          %808 = vst.msk [vmem:[#allocation2] sm:$0xf] %vm306, 0
          %809 = vst.msk [vmem:[#allocation2 + $0x4] sm:$0xf] %vm306, 0
          %v810 = vld [vmem:[#allocation2 + $0x8] sm:$0x3]
          %v811 = vsel %vm309, 0, %v810
          %812 = vst [vmem:[#allocation2 + $0x8] sm:$0x3] %v811
          %v813 = vld [vmem:[#allocation2 + $0x98] sm:$0xe]
          %v814 = vsel %vm302, 0, %v813
          %815 = vst [vmem:[#allocation2 + $0x98] sm:$0xe] %v814
          %816 = vst.msk [vmem:[#allocation2 + $0x9c] sm:$0xf] %vm306, 0
          %vm817 = vcmask 10240
          %818 = vst.msk [vmem:[#allocation2 + $0xa0] sm:$0x7] %vm817, 0
          %vm819 = vcmask 10241
          %vm820 = vsmask.f32 2310
          %vm821 = vmand %vm819, %vm820
          %v822 = vld [vmem:[#allocation2 + $0x10] sm:$0x6]
          %v823 = vsel %vm821, 0, %v822
          %824 = vst [vmem:[#allocation2 + $0x10] sm:$0x6] %v823
          %vm825 = vsmask.f32 3338
          %vm826 = vmand %vm341, %vm825
          %v827 = vld [vmem:[#allocation2 + $0x18] sm:$0xc]
          %v828 = vsel %vm826, 0, %v827
          %829 = vst [vmem:[#allocation2 + $0x18] sm:$0xc] %v828
          %v830 = vld [vmem:[#allocation2 + $0x20] sm:$0x8]
          %v831 = vsel %vm383, 0, %v830
          %832 = vst [vmem:[#allocation2 + $0x20] sm:$0x8] %v831
          %v833 = vld [vmem:[#allocation2 + $0x24] sm:$0x1]
          %v834 = vsel %vm426, 0, %v833
          %835 = vst [vmem:[#allocation2 + $0x24] sm:$0x1] %v834
          %vm836 = vsmask.f32 1282
          %vm837 = vmand %vm308, %vm836
          %v838 = vld [vmem:[#allocation2 + $0x2c] sm:$0x3]
          %v839 = vsel %vm837, 0, %v838
          %840 = vst [vmem:[#allocation2 + $0x2c] sm:$0x3] %v839
          %v841 = vld [vmem:[#allocation2 + $0x34] sm:$0x6]
          %v842 = vsel %vm821, 0, %v841
          %843 = vst [vmem:[#allocation2 + $0x34] sm:$0x6] %v842
          %v844 = vld [vmem:[#allocation2 + $0x3c] sm:$0xc]
          %v845 = vsel %vm826, 0, %v844
          %846 = vst [vmem:[#allocation2 + $0x3c] sm:$0xc] %v845
          %v847 = vld [vmem:[#allocation2 + $0x44] sm:$0x8]
          %v848 = vsel %vm383, 0, %v847
          %849 = vst [vmem:[#allocation2 + $0x44] sm:$0x8] %v848
          %v850 = vld [vmem:[#allocation2 + $0x48] sm:$0x1]
          %v851 = vsel %vm426, 0, %v850
          %852 = vst [vmem:[#allocation2 + $0x48] sm:$0x1] %v851
          %v853 = vld [vmem:[#allocation2 + $0x50] sm:$0x3]
          %v854 = vsel %vm837, 0, %v853
          %855 = vst [vmem:[#allocation2 + $0x50] sm:$0x3] %v854
          %v856 = vld [vmem:[#allocation2 + $0x58] sm:$0x6]
          %v857 = vsel %vm821, 0, %v856
          %858 = vst [vmem:[#allocation2 + $0x58] sm:$0x6] %v857
          %v859 = vld [vmem:[#allocation2 + $0x60] sm:$0xc]
          %v860 = vsel %vm826, 0, %v859
          %861 = vst [vmem:[#allocation2 + $0x60] sm:$0xc] %v860
          %v862 = vld [vmem:[#allocation2 + $0x68] sm:$0x8]
          %v863 = vsel %vm383, 0, %v862
          %864 = vst [vmem:[#allocation2 + $0x68] sm:$0x8] %v863
          %v865 = vld [vmem:[#allocation2 + $0x6c] sm:$0x1]
          %v866 = vsel %vm426, 0, %v865
          %867 = vst [vmem:[#allocation2 + $0x6c] sm:$0x1] %v866
          %v868 = vld [vmem:[#allocation2 + $0x74] sm:$0x3]
          %v869 = vsel %vm837, 0, %v868
          %870 = vst [vmem:[#allocation2 + $0x74] sm:$0x3] %v869
          %v871 = vld [vmem:[#allocation2 + $0x7c] sm:$0x6]
          %v872 = vsel %vm821, 0, %v871
          %873 = vst [vmem:[#allocation2 + $0x7c] sm:$0x6] %v872
          %v874 = vld [vmem:[#allocation2 + $0x84] sm:$0xc]
          %v875 = vsel %vm826, 0, %v874
          %876 = vst [vmem:[#allocation2 + $0x84] sm:$0xc] %v875
          %v877 = vld [vmem:[#allocation2 + $0x8c] sm:$0x8]
          %v878 = vsel %vm383, 0, %v877
          %879 = vst [vmem:[#allocation2 + $0x8c] sm:$0x8] %v878
          %v880 = vld [vmem:[#allocation2 + $0x90] sm:$0x1]
          %v881 = vsel %vm426, 0, %v880
          %882 = vst [vmem:[#allocation2 + $0x90] sm:$0x1] %v881
          %v883 = vld [vmem:[#allocation2 + $0x98] sm:$0x3]
          %v884 = vsel %vm837, 0, %v883
          %885 = vst [vmem:[#allocation2 + $0x98] sm:$0x3] %v884
          %v886 = vld [vmem:[#allocation2] sm:$0xf]
          %v887 = vld [vmem:[#allocation2 + $0x4] sm:$0xf]
          %v888 = vld [vmem:[#allocation2 + $0x8] sm:$0xf]
          %v889 = vld [vmem:[#allocation2 + $0xc] sm:$0xf]
          %v890 = vld [vmem:[#allocation2 + $0x10] sm:$0xf]
          %v891 = vld [vmem:[#allocation2 + $0x14] sm:$0xf]
          %v892 = vld [vmem:[#allocation2 + $0x18] sm:$0xf]
          %v893 = vld [vmem:[#allocation2 + $0x1c] sm:$0xf]
          %v894 = vld [vmem:[#allocation2 + $0x20] sm:$0xf]
          %v895 = vld [vmem:[#allocation2 + $0x24] sm:$0xf]
          %v896 = vld [vmem:[#allocation2 + $0x28] sm:$0xf]
          %v897 = vld [vmem:[#allocation2 + $0x2c] sm:$0xf]
          %v898 = vld [vmem:[#allocation2 + $0x30] sm:$0xf]
          %v899 = vld [vmem:[#allocation2 + $0x34] sm:$0xf]
          %v900 = vld [vmem:[#allocation2 + $0x38] sm:$0xf]
          %v901 = vld [vmem:[#allocation2 + $0x3c] sm:$0xf]
          %v902 = vld [vmem:[#allocation2 + $0x40] sm:$0xf]
          %v903 = vld [vmem:[#allocation2 + $0x44] sm:$0xf]
          %v904 = vld [vmem:[#allocation2 + $0x48] sm:$0xf]
          %v905 = vld [vmem:[#allocation2 + $0x4c] sm:$0xf]
          %v906 = vld [vmem:[#allocation2 + $0x50] sm:$0xf]
          %v907 = vld [vmem:[#allocation2 + $0x54] sm:$0xf]
          %v908 = vld [vmem:[#allocation2 + $0x58] sm:$0xf]
          %v909 = vld [vmem:[#allocation2 + $0x5c] sm:$0xf]
          %v910 = vld [vmem:[#allocation2 + $0x60] sm:$0xf]
          %v911 = vld [vmem:[#allocation2 + $0x64] sm:$0xf]
          %v912 = vld [vmem:[#allocation2 + $0x68] sm:$0xf]
          %v913 = vld [vmem:[#allocation2 + $0x6c] sm:$0xf]
          %v914 = vld [vmem:[#allocation2 + $0x70] sm:$0xf]
          %v915 = vld [vmem:[#allocation2 + $0x74] sm:$0xf]
          %v916 = vld [vmem:[#allocation2 + $0x78] sm:$0xf]
          %v917 = vld [vmem:[#allocation2 + $0x7c] sm:$0xf]
          %v918 = vld [vmem:[#allocation2 + $0x80] sm:$0xf]
          %v919 = vld [vmem:[#allocation2 + $0x84] sm:$0xf]
          %v920 = vld [vmem:[#allocation2 + $0x88] sm:$0xf]
          %v921 = vld [vmem:[#allocation2 + $0x8c] sm:$0xf]
          %v922 = vld [vmem:[#allocation2 + $0x90] sm:$0x1]
          %v923 = vld [vmem:[#allocation2] sm:$0xe]
          %v960 = vunpack.c.l.b16 %v886
          %v961 = vunpack.c.l.b16 %v887
          %v962 = vunpack.c.l.b16 %v888
          %v963 = vunpack.c.l.b16 %v889
          %v964 = vunpack.c.l.b16 %v890
          %v965 = vunpack.c.l.b16 %v891
          %v966 = vunpack.c.l.b16 %v892
          %v967 = vunpack.c.l.b16 %v893
          %v968 = vunpack.c.l.b16 %v894
          %v969 = vunpack.c.l.b16 %v895
          %v970 = vunpack.c.l.b16 %v896
          %v971 = vunpack.c.l.b16 %v897
          %v972 = vunpack.c.l.b16 %v898
          %v973 = vunpack.c.l.b16 %v899
          %v974 = vunpack.c.l.b16 %v900
          %v975 = vunpack.c.l.b16 %v901
          %v976 = vunpack.c.l.b16 %v902
          %v977 = vunpack.c.l.b16 %v903
          %v978 = vunpack.c.l.b16 %v904
          %v979 = vunpack.c.l.b16 %v905
          %v980 = vunpack.c.l.b16 %v906
          %v981 = vunpack.c.l.b16 %v907
          %v982 = vunpack.c.l.b16 %v908
          %v983 = vunpack.c.l.b16 %v909
          %v984 = vunpack.c.l.b16 %v910
          %v985 = vunpack.c.l.b16 %v911
          %v986 = vunpack.c.l.b16 %v912
          %v987 = vunpack.c.l.b16 %v913
          %v988 = vunpack.c.l.b16 %v914
          %v989 = vunpack.c.l.b16 %v915
          %v990 = vunpack.c.l.b16 %v916
          %v991 = vunpack.c.l.b16 %v917
          %v992 = vunpack.c.l.b16 %v918
          %v993 = vunpack.c.l.b16 %v919
          %v994 = vunpack.c.l.b16 %v920
          %v995 = vunpack.c.l.b16 %v921
          %v996 = vpack.c.b16 %v961, %v960
          %v997 = vpack.c.b16 %v963, %v962
          %v998 = vpack.c.b16 %v965, %v964
          %v999 = vpack.c.b16 %v967, %v966
          %v1000 = vpack.c.b16 %v969, %v968
          %v1001 = vpack.c.b16 %v971, %v970
          %v1002 = vpack.c.b16 %v973, %v972
          %v1003 = vpack.c.b16 %v975, %v974
          %v1004 = vpack.c.b16 %v977, %v976
          %v1005 = vpack.c.b16 %v979, %v978
          %v1006 = vpack.c.b16 %v981, %v980
          %v1007 = vpack.c.b16 %v983, %v982
          %v1008 = vpack.c.b16 %v985, %v984
          %v1009 = vpack.c.b16 %v987, %v986
          %v1010 = vpack.c.b16 %v989, %v988
          %v1011 = vpack.c.b16 %v991, %v990
          %v1012 = vpack.c.b16 %v993, %v992
          %v1013 = vpack.c.b16 %v995, %v994
          %v1015 = vunpack.c.l.b16 %v922
          %v1016 = vpack.c.b16 %v1015, %v1015
          %vm1017 = vsmask.f32 7424
          %v1019 = vshrl.u32 %v996, 16
          %v1021 = vshll.u32 %v996, 16
          %v1023 = vrot.slane %v1021, 1
          %v1024 = vor.u32 %v1019, %v1023
          %v1026 = vshll.u32 %v997, 16
          %v1028 = vrot.slane %v1026, 1
          %v1029 = vsel %vm1017, %v1024, %v1028
          %v1030 = vshrl.u32 %v997, 16
          %v1032 = vor.u32 %v1030, %v1028
          %v1034 = vshll.u32 %v998, 16
          %v1036 = vrot.slane %v1034, 1
          %v1037 = vsel %vm1017, %v1032, %v1036
          %v1038 = vshrl.u32 %v998, 16
          %v1040 = vor.u32 %v1038, %v1036
          %v1042 = vshll.u32 %v999, 16
          %v1044 = vrot.slane %v1042, 1
          %v1045 = vsel %vm1017, %v1040, %v1044
          %v1046 = vshrl.u32 %v999, 16
          %v1048 = vor.u32 %v1046, %v1044
          %v1050 = vshll.u32 %v1000, 16
          %v1052 = vrot.slane %v1050, 1
          %v1053 = vsel %vm1017, %v1048, %v1052
          %v1054 = vshrl.u32 %v1000, 16
          %v1056 = vor.u32 %v1054, %v1052
          %v1058 = vshll.u32 %v1001, 16
          %v1060 = vrot.slane %v1058, 1
          %v1061 = vsel %vm1017, %v1056, %v1060
          %v1062 = vshrl.u32 %v1001, 16
          %v1064 = vor.u32 %v1062, %v1060
          %v1066 = vshll.u32 %v1002, 16
          %v1068 = vrot.slane %v1066, 1
          %v1069 = vsel %vm1017, %v1064, %v1068
          %v1070 = vshrl.u32 %v1002, 16
          %v1072 = vor.u32 %v1070, %v1068
          %v1074 = vshll.u32 %v1003, 16
          %v1076 = vrot.slane %v1074, 1
          %v1077 = vsel %vm1017, %v1072, %v1076
          %v1078 = vshrl.u32 %v1003, 16
          %v1080 = vor.u32 %v1078, %v1076
          %v1082 = vshll.u32 %v1004, 16
          %v1084 = vrot.slane %v1082, 1
          %v1085 = vsel %vm1017, %v1080, %v1084
          %v1086 = vshrl.u32 %v1004, 16
          %v1088 = vor.u32 %v1086, %v1084
          %v1090 = vshll.u32 %v1005, 16
          %v1092 = vrot.slane %v1090, 1
          %v1093 = vsel %vm1017, %v1088, %v1092
          %v1094 = vshrl.u32 %v1005, 16
          %v1096 = vor.u32 %v1094, %v1092
          %v1098 = vshll.u32 %v1006, 16
          %v1100 = vrot.slane %v1098, 1
          %v1101 = vsel %vm1017, %v1096, %v1100
          %v1102 = vshrl.u32 %v1006, 16
          %v1104 = vor.u32 %v1102, %v1100
          %v1106 = vshll.u32 %v1007, 16
          %v1108 = vrot.slane %v1106, 1
          %v1109 = vsel %vm1017, %v1104, %v1108
          %v1110 = vshrl.u32 %v1007, 16
          %v1112 = vor.u32 %v1110, %v1108
          %v1114 = vshll.u32 %v1008, 16
          %v1116 = vrot.slane %v1114, 1
          %v1117 = vsel %vm1017, %v1112, %v1116
          %v1118 = vshrl.u32 %v1008, 16
          %v1120 = vor.u32 %v1118, %v1116
          %v1122 = vshll.u32 %v1009, 16
          %v1124 = vrot.slane %v1122, 1
          %v1125 = vsel %vm1017, %v1120, %v1124
          %v1126 = vshrl.u32 %v1009, 16
          %v1128 = vor.u32 %v1126, %v1124
          %v1130 = vshll.u32 %v1010, 16
          %v1132 = vrot.slane %v1130, 1
          %v1133 = vsel %vm1017, %v1128, %v1132
          %v1134 = vshrl.u32 %v1010, 16
          %v1136 = vor.u32 %v1134, %v1132
          %v1138 = vshll.u32 %v1011, 16
          %v1140 = vrot.slane %v1138, 1
          %v1141 = vsel %vm1017, %v1136, %v1140
          %v1142 = vshrl.u32 %v1011, 16
          %v1144 = vor.u32 %v1142, %v1140
          %v1146 = vshll.u32 %v1012, 16
          %v1148 = vrot.slane %v1146, 1
          %v1149 = vsel %vm1017, %v1144, %v1148
          %v1150 = vshrl.u32 %v1012, 16
          %v1152 = vor.u32 %v1150, %v1148
          %v1154 = vshll.u32 %v1013, 16
          %v1156 = vrot.slane %v1154, 1
          %v1157 = vsel %vm1017, %v1152, %v1156
          %v1158 = vshrl.u32 %v1013, 16
          %v1160 = vor.u32 %v1158, %v1156
          %v1162 = vshll.u32 %v1016, 16
          %v1164 = vrot.slane %v1162, 1
          %v1165 = vsel %vm1017, %v1160, %v1164
          %1166 = vrot.lane.b32.xlu0 %v1029, 2
          %v1167 = vpop.permute.xlu0 %1166
          %1168 = vrot.lane.b32.xlu0 %v1037, 2
          %v1169 = vpop.permute.xlu0 %1168
          %1170 = vrot.lane.b32.xlu0 %v1045, 2
          %v1171 = vpop.permute.xlu0 %1170
          %1172 = vrot.lane.b32.xlu0 %v1053, 2
          %v1173 = vpop.permute.xlu0 %1172
          %1174 = vrot.lane.b32.xlu0 %v1061, 2
          %v1175 = vpop.permute.xlu0 %1174
          %1176 = vrot.lane.b32.xlu0 %v1069, 2
          %v1177 = vpop.permute.xlu0 %1176
          %1178 = vrot.lane.b32.xlu0 %v1077, 2
          %v1179 = vpop.permute.xlu0 %1178
          %1180 = vrot.lane.b32.xlu0 %v1085, 2
          %v1181 = vpop.permute.xlu0 %1180
          %1182 = vrot.lane.b32.xlu0 %v1093, 2
          %v1183 = vpop.permute.xlu0 %1182
          %1184 = vrot.lane.b32.xlu0 %v1101, 2
          %v1185 = vpop.permute.xlu0 %1184
          %1186 = vrot.lane.b32.xlu0 %v1109, 2
          %v1187 = vpop.permute.xlu0 %1186
          %1188 = vrot.lane.b32.xlu0 %v1117, 2
          %v1189 = vpop.permute.xlu0 %1188
          %1190 = vrot.lane.b32.xlu0 %v1125, 2
          %v1191 = vpop.permute.xlu0 %1190
          %1192 = vrot.lane.b32.xlu0 %v1133, 2
          %v1193 = vpop.permute.xlu0 %1192
          %1194 = vrot.lane.b32.xlu0 %v1141, 2
          %v1195 = vpop.permute.xlu0 %1194
          %1196 = vrot.lane.b32.xlu0 %v1149, 2
          %v1197 = vpop.permute.xlu0 %1196
          %1198 = vrot.lane.b32.xlu0 %v1157, 2
          %v1199 = vpop.permute.xlu0 %1198
          %1200 = vrot.lane.b32.xlu0 %v1165, 2
          %v1201 = vpop.permute.xlu0 %1200
          %v1203 = vunpack.c.l.b16 %v923
          %v1204 = vpack.c.b16 %v961, %v1203
          %vm1205 = vcmask 1046528
          %v1206 = vrot.slane %v1204, 1
          %v1207 = vrot.slane %v997, 1
          %v1208 = vsel %vm1205, %v1206, %v1207
          %v1209 = vrot.slane %v998, 1
          %v1210 = vsel %vm1205, %v1207, %v1209
          %v1211 = vrot.slane %v999, 1
          %v1212 = vsel %vm1205, %v1209, %v1211
          %v1213 = vrot.slane %v1000, 1
          %v1214 = vsel %vm1205, %v1211, %v1213
          %v1215 = vrot.slane %v1001, 1
          %v1216 = vsel %vm1205, %v1213, %v1215
          %v1217 = vrot.slane %v1002, 1
          %v1218 = vsel %vm1205, %v1215, %v1217
          %v1219 = vrot.slane %v1003, 1
          %v1220 = vsel %vm1205, %v1217, %v1219
          %v1221 = vrot.slane %v1004, 1
          %v1222 = vsel %vm1205, %v1219, %v1221
          %v1223 = vrot.slane %v1005, 1
          %v1224 = vsel %vm1205, %v1221, %v1223
          %v1225 = vrot.slane %v1006, 1
          %v1226 = vsel %vm1205, %v1223, %v1225
          %v1227 = vrot.slane %v1007, 1
          %v1228 = vsel %vm1205, %v1225, %v1227
          %v1229 = vrot.slane %v1008, 1
          %v1230 = vsel %vm1205, %v1227, %v1229
          %v1231 = vrot.slane %v1009, 1
          %v1232 = vsel %vm1205, %v1229, %v1231
          %v1233 = vrot.slane %v1010, 1
          %v1234 = vsel %vm1205, %v1231, %v1233
          %v1235 = vrot.slane %v1011, 1
          %v1236 = vsel %vm1205, %v1233, %v1235
          %v1237 = vrot.slane %v1012, 1
          %v1238 = vsel %vm1205, %v1235, %v1237
          %v1239 = vrot.slane %v1013, 1
          %v1240 = vsel %vm1205, %v1237, %v1239
          %v1241 = vrot.slane %v1016, 1
          %v1242 = vsel %vm1205, %v1239, %v1241
          %1243 = vrot.lane.b32.xlu0 %v1208, 4
          %v1244 = vpop.permute.xlu0 %1243
          %1245 = vrot.lane.b32.xlu0 %v1210, 4
          %v1246 = vpop.permute.xlu0 %1245
          %1247 = vrot.lane.b32.xlu0 %v1212, 4
          %v1248 = vpop.permute.xlu0 %1247
          %1249 = vrot.lane.b32.xlu0 %v1214, 4
          %v1250 = vpop.permute.xlu0 %1249
          %1251 = vrot.lane.b32.xlu0 %v1216, 4
          %v1252 = vpop.permute.xlu0 %1251
          %1253 = vrot.lane.b32.xlu0 %v1218, 4
          %v1254 = vpop.permute.xlu0 %1253
          %1255 = vrot.lane.b32.xlu0 %v1220, 4
          %v1256 = vpop.permute.xlu0 %1255
          %1257 = vrot.lane.b32.xlu0 %v1222, 4
          %v1258 = vpop.permute.xlu0 %1257
          %1259 = vrot.lane.b32.xlu0 %v1224, 4
          %v1260 = vpop.permute.xlu0 %1259
          %1261 = vrot.lane.b32.xlu0 %v1226, 4
          %v1262 = vpop.permute.xlu0 %1261
          %1263 = vrot.lane.b32.xlu0 %v1228, 4
          %v1264 = vpop.permute.xlu0 %1263
          %1265 = vrot.lane.b32.xlu0 %v1230, 4
          %v1266 = vpop.permute.xlu0 %1265
          %1267 = vrot.lane.b32.xlu0 %v1232, 4
          %v1268 = vpop.permute.xlu0 %1267
          %1269 = vrot.lane.b32.xlu0 %v1234, 4
          %v1270 = vpop.permute.xlu0 %1269
          %1271 = vrot.lane.b32.xlu0 %v1236, 4
          %v1272 = vpop.permute.xlu0 %1271
          %1273 = vrot.lane.b32.xlu0 %v1238, 4
          %v1274 = vpop.permute.xlu0 %1273
          %1275 = vrot.lane.b32.xlu0 %v1240, 4
          %v1276 = vpop.permute.xlu0 %1275
          %1277 = vrot.lane.b32.xlu0 %v1242, 4
          %v1278 = vpop.permute.xlu0 %1277
          %vm1279 = vcmask 15360
          %v1281 = vsel %vm1279, %v996, %v1167
          %v1283 = vsel %vm1279, %v997, %v1169
          %v1285 = vsel %vm1279, %v998, %v1171
          %v1287 = vsel %vm1279, %v999, %v1173
          %v1289 = vsel %vm1279, %v1000, %v1175
          %v1291 = vsel %vm1279, %v1001, %v1177
          %v1293 = vsel %vm1279, %v1002, %v1179
          %v1295 = vsel %vm1279, %v1003, %v1181
          %v1297 = vsel %vm1279, %v1004, %v1183
          %v1299 = vsel %vm1279, %v1005, %v1185
          %v1301 = vsel %vm1279, %v1006, %v1187
          %v1303 = vsel %vm1279, %v1007, %v1189
          %v1305 = vsel %vm1279, %v1008, %v1191
          %v1307 = vsel %vm1279, %v1009, %v1193
          %v1309 = vsel %vm1279, %v1010, %v1195
          %v1311 = vsel %vm1279, %v1011, %v1197
          %v1313 = vsel %vm1279, %v1012, %v1199
          %v1315 = vsel %vm1279, %v1013, %v1201
          %vm1316 = vcmask 31744
          %v1318 = vsel %vm1316, %v1281, %v1244
          %v1320 = vsel %vm1316, %v1283, %v1246
          %v1322 = vsel %vm1316, %v1285, %v1248
          %v1324 = vsel %vm1316, %v1287, %v1250
          %v1326 = vsel %vm1316, %v1289, %v1252
          %v1328 = vsel %vm1316, %v1291, %v1254
          %v1330 = vsel %vm1316, %v1293, %v1256
          %v1332 = vsel %vm1316, %v1295, %v1258
          %v1334 = vsel %vm1316, %v1297, %v1260
          %v1336 = vsel %vm1316, %v1299, %v1262
          %v1338 = vsel %vm1316, %v1301, %v1264
          %v1340 = vsel %vm1316, %v1303, %v1266
          %v1342 = vsel %vm1316, %v1305, %v1268
          %v1344 = vsel %vm1316, %v1307, %v1270
          %v1346 = vsel %vm1316, %v1309, %v1272
          %v1348 = vsel %vm1316, %v1311, %v1274
          %v1350 = vsel %vm1316, %v1313, %v1276
          %v1352 = vsel %vm1316, %v1315, %v1278
          %v1353 = vld [vmem:[%s1] sm:$0x7]
          %v1354 = vld [vmem:[#allocation2 + $0x8] sm:$0xe]
          %v1355 = vld [vmem:[#allocation2 + $0x90] sm:$0xf]
          %v1356 = vld [vmem:[#allocation2 + $0x94] sm:$0xf]
          %v1357 = vld [vmem:[#allocation2 + $0x98] sm:$0x1]
          %v1358 = vld [vmem:[#allocation2 + $0x98] sm:$0x3]
          %v1359 = vld [vmem:[#allocation2 + $0x8] sm:$0xc]
          %v1364 = vunpack.c.l.b16 %v1354
          %v1365 = vunpack.c.l.b16 %v1355
          %v1366 = vunpack.c.l.b16 %v1356
          %v1367 = vunpack.c.l.b16 %v1357
          %v1368 = vpack.c.b16 %v963, %v1364
          %v1369 = vpack.c.b16 %v1366, %v1365
          %v1370 = vpack.c.b16 %v1367, %v1367
          %v1372 = vunpack.c.l.b16 %v1358
          %v1373 = vpack.c.b16 %v1372, %v1372
          %v1375 = vshrl.u32 %v1368, 16
          %v1377 = vshll.u32 %v1368, 16
          %v1379 = vrot.slane %v1377, 1
          %v1380 = vor.u32 %v1375, %v1379
          %v1381 = vsel %vm1017, %v1380, %v1036
          %v1383 = vshll.u32 %v1369, 16
          %v1385 = vrot.slane %v1383, 1
          %v1386 = vsel %vm1017, %v1160, %v1385
          %v1387 = vshrl.u32 %v1369, 16
          %v1389 = vor.u32 %v1387, %v1385
          %v1391 = vshll.u32 %v1373, 16
          %v1393 = vrot.slane %v1391, 1
          %v1394 = vsel %vm1017, %v1389, %v1393
          %v1395 = vshrl.u32 %v1373, 16
          %v1397 = vor.u32 %v1395, %v1393
          %1398 = vrot.lane.b32.xlu0 %v1381, 2
          %v1399 = vpop.permute.xlu0 %1398
          %1400 = vrot.lane.b32.xlu0 %v1386, 2
          %v1401 = vpop.permute.xlu0 %1400
          %1402 = vrot.lane.b32.xlu0 %v1394, 2
          %v1403 = vpop.permute.xlu0 %1402
          %1404 = vrot.lane.b32.xlu0 %v1397, 2
          %v1405 = vpop.permute.xlu0 %1404
          %v1407 = vunpack.c.l.b16 %v1359
          %v1408 = vpack.c.b16 %v963, %v1407
          %v1409 = vrot.slane %v1408, 1
          %v1410 = vsel %vm1205, %v1409, %v1209
          %v1411 = vrot.slane %v1369, 1
          %v1412 = vsel %vm1205, %v1239, %v1411
          %v1413 = vrot.slane %v1373, 1
          %v1414 = vsel %vm1205, %v1411, %v1413
          %1415 = vrot.lane.b32.xlu0 %v1410, 4
          %v1416 = vpop.permute.xlu0 %1415
          %1417 = vrot.lane.b32.xlu0 %v1412, 4
          %v1418 = vpop.permute.xlu0 %1417
          %1419 = vrot.lane.b32.xlu0 %v1414, 4
          %v1420 = vpop.permute.xlu0 %1419
          %1421 = vrot.lane.b32.xlu0 %v1413, 4
          %v1422 = vpop.permute.xlu0 %1421
          %v1424 = vsel %vm1279, %v1368, %v1399
          %v1426 = vsel %vm1279, %v1013, %v1401
          %v1428 = vsel %vm1279, %v1369, %v1403
          %v1431 = vsel %vm1279, %v1370, %v1405
          %v1433 = vsel %vm1316, %v1424, %v1416
          %v1435 = vsel %vm1316, %v1426, %v1418
          %v1437 = vsel %vm1316, %v1428, %v1420
          %v1439 = vsel %vm1316, %v1431, %v1422
          %s1440 = scalar_lea.vmem %s1, 4
          %v1441 = vld [vmem:[%s1440] sm:$0x7]
          %v1461 = vrot.slane %v1433, 1
          %v1462 = vrot.slane %v1322, 1
          %v1463 = vsel %vm1205, %v1461, %v1462
          %v1464 = vrot.slane %v1324, 1
          %v1465 = vsel %vm1205, %v1462, %v1464
          %v1466 = vrot.slane %v1326, 1
          %v1467 = vsel %vm1205, %v1464, %v1466
          %v1468 = vrot.slane %v1328, 1
          %v1469 = vsel %vm1205, %v1466, %v1468
          %v1470 = vrot.slane %v1330, 1
          %v1471 = vsel %vm1205, %v1468, %v1470
          %v1472 = vrot.slane %v1332, 1
          %v1473 = vsel %vm1205, %v1470, %v1472
          %v1474 = vrot.slane %v1334, 1
          %v1475 = vsel %vm1205, %v1472, %v1474
          %v1476 = vrot.slane %v1336, 1
          %v1477 = vsel %vm1205, %v1474, %v1476
          %v1478 = vrot.slane %v1338, 1
          %v1479 = vsel %vm1205, %v1476, %v1478
          %v1480 = vrot.slane %v1340, 1
          %v1481 = vsel %vm1205, %v1478, %v1480
          %v1482 = vrot.slane %v1342, 1
          %v1483 = vsel %vm1205, %v1480, %v1482
          %v1484 = vrot.slane %v1344, 1
          %v1485 = vsel %vm1205, %v1482, %v1484
          %v1486 = vrot.slane %v1346, 1
          %v1487 = vsel %vm1205, %v1484, %v1486
          %v1488 = vrot.slane %v1348, 1
          %v1489 = vsel %vm1205, %v1486, %v1488
          %v1490 = vrot.slane %v1350, 1
          %v1491 = vsel %vm1205, %v1488, %v1490
          %v1492 = vrot.slane %v1435, 1
          %v1493 = vsel %vm1205, %v1490, %v1492
          %v1494 = vrot.slane %v1437, 1
          %v1495 = vsel %vm1205, %v1492, %v1494
          %v1496 = vrot.slane %v1439, 1
          %v1497 = vsel %vm1205, %v1494, %v1496
          %vm1498 = vcmask 48128
          %v1500 = vsel %vm1498, %v1463, 0
          %v1503 = vsel %vm1498, %v1465, 0
          %v1506 = vsel %vm1498, %v1467, 0
          %v1509 = vsel %vm1498, %v1469, 0
          %v1512 = vsel %vm1498, %v1471, 0
          %v1515 = vsel %vm1498, %v1473, 0
          %v1518 = vsel %vm1498, %v1475, 0
          %v1521 = vsel %vm1498, %v1477, 0
          %v1524 = vsel %vm1498, %v1479, 0
          %v1527 = vsel %vm1498, %v1481, 0
          %v1530 = vsel %vm1498, %v1483, 0
          %v1533 = vsel %vm1498, %v1485, 0
          %v1536 = vsel %vm1498, %v1487, 0
          %v1539 = vsel %vm1498, %v1489, 0
          %v1542 = vsel %vm1498, %v1491, 0
          %v1545 = vsel %vm1498, %v1493, 0
          %v1548 = vsel %vm1498, %v1495, 0
          %v1551 = vsel %vm1498, %v1497, 0
          %vm1553 = vcmask 1042432
          %v1555 = vsel %vm1553, %v1441, 0
          %1557 = vmatpush.bf16.msra.mxu0 0
          %1558 = vmatpush.bf16.msra.mxu0 0
          %1559 = vmatpush.bf16.msra.mxu0 0
          %1560 = vmatpush.bf16.msra.mxu0 0
          %1561 = vmatpush.bf16.msra.mxu0 0
          %1562 = vmatpush.bf16.msra.mxu0 0
          %1563 = vmatpush.bf16.msra.mxu0 0
          %1564 = vmatpush.bf16.msra.mxu0 %v1555
          %1565 = vmatmul.bf16.gmra.mxu0 %v1500
          %v1566 = vpop.f32.mrf.mxu0
          %v1567 = vadd.f32 0.0, %v1566
          %v1568 = vpop.f32.mrf.mxu0
          %v1569 = vadd.f32 0.0, %v1568
          %1570 = vmatmul.bf16.gmra.mxu0 %v1503
          %v1571 = vpop.f32.mrf.mxu0
          %v1572 = vadd.f32 0.0, %v1571
          %v1573 = vpop.f32.mrf.mxu0
          %v1574 = vadd.f32 0.0, %v1573
          %1575 = vmatmul.bf16.gmra.mxu0 %v1506
          %v1576 = vpop.f32.mrf.mxu0
          %v1577 = vadd.f32 0.0, %v1576
          %v1578 = vpop.f32.mrf.mxu0
          %v1579 = vadd.f32 0.0, %v1578
          %1580 = vmatmul.bf16.gmra.mxu0 %v1509
          %v1581 = vpop.f32.mrf.mxu0
          %v1582 = vadd.f32 0.0, %v1581
          %v1583 = vpop.f32.mrf.mxu0
          %v1584 = vadd.f32 0.0, %v1583
          %1585 = vmatmul.bf16.gmra.mxu0 %v1512
          %v1586 = vpop.f32.mrf.mxu0
          %v1587 = vadd.f32 0.0, %v1586
          %v1588 = vpop.f32.mrf.mxu0
          %v1589 = vadd.f32 0.0, %v1588
          %1590 = vmatmul.bf16.gmra.mxu0 %v1515
          %v1591 = vpop.f32.mrf.mxu0
          %v1592 = vadd.f32 0.0, %v1591
          %v1593 = vpop.f32.mrf.mxu0
          %v1594 = vadd.f32 0.0, %v1593
          %1595 = vmatmul.bf16.gmra.mxu0 %v1518
          %v1596 = vpop.f32.mrf.mxu0
          %v1597 = vadd.f32 0.0, %v1596
          %v1598 = vpop.f32.mrf.mxu0
          %v1599 = vadd.f32 0.0, %v1598
          %1600 = vmatmul.bf16.gmra.mxu0 %v1521
          %v1601 = vpop.f32.mrf.mxu0
          %v1602 = vadd.f32 0.0, %v1601
          %v1603 = vpop.f32.mrf.mxu0
          %v1604 = vadd.f32 0.0, %v1603
          %1605 = vmatmul.bf16.gmra.mxu0 %v1524
          %v1606 = vpop.f32.mrf.mxu0
          %v1607 = vadd.f32 0.0, %v1606
          %v1608 = vpop.f32.mrf.mxu0
          %v1609 = vadd.f32 0.0, %v1608
          %1610 = vmatmul.bf16.gmra.mxu0 %v1527
          %v1611 = vpop.f32.mrf.mxu0
          %v1612 = vadd.f32 0.0, %v1611
          %v1613 = vpop.f32.mrf.mxu0
          %v1614 = vadd.f32 0.0, %v1613
          %1615 = vmatmul.bf16.gmra.mxu0 %v1530
          %v1616 = vpop.f32.mrf.mxu0
          %v1617 = vadd.f32 0.0, %v1616
          %v1618 = vpop.f32.mrf.mxu0
          %v1619 = vadd.f32 0.0, %v1618
          %1620 = vmatmul.bf16.gmra.mxu0 %v1533
          %v1621 = vpop.f32.mrf.mxu0
          %v1622 = vadd.f32 0.0, %v1621
          %v1623 = vpop.f32.mrf.mxu0
          %v1624 = vadd.f32 0.0, %v1623
          %1625 = vmatmul.bf16.gmra.mxu0 %v1536
          %v1626 = vpop.f32.mrf.mxu0
          %v1627 = vadd.f32 0.0, %v1626
          %v1628 = vpop.f32.mrf.mxu0
          %v1629 = vadd.f32 0.0, %v1628
          %1630 = vmatmul.bf16.gmra.mxu0 %v1539
          %v1631 = vpop.f32.mrf.mxu0
          %v1632 = vadd.f32 0.0, %v1631
          %v1633 = vpop.f32.mrf.mxu0
          %v1634 = vadd.f32 0.0, %v1633
          %1635 = vmatmul.bf16.gmra.mxu0 %v1542
          %v1636 = vpop.f32.mrf.mxu0
          %v1637 = vadd.f32 0.0, %v1636
          %v1638 = vpop.f32.mrf.mxu0
          %v1639 = vadd.f32 0.0, %v1638
          %1640 = vmatmul.bf16.gmra.mxu0 %v1545
          %v1641 = vpop.f32.mrf.mxu0
          %v1642 = vadd.f32 0.0, %v1641
          %v1643 = vpop.f32.mrf.mxu0
          %v1644 = vadd.f32 0.0, %v1643
          %1645 = vmatmul.bf16.gmra.mxu0 %v1548
          %v1646 = vpop.f32.mrf.mxu0
          %v1647 = vadd.f32 0.0, %v1646
          %v1648 = vpop.f32.mrf.mxu0
          %v1649 = vadd.f32 0.0, %v1648
          %1650 = vmatmul.bf16.gmra.mxu0 %v1551
          %v1651 = vpop.f32.mrf.mxu0
          %v1652 = vadd.f32 0.0, %v1651
          %v1653 = vpop.f32.mrf.mxu0
          %v1654 = vadd.f32 0.0, %v1653
          %1655 = vdwg.mxu0
          %v1656 = vsel %vm1498, %v1318, 0
          %v1658 = vsel %vm1498, %v1320, 0
          %v1660 = vsel %vm1498, %v1322, 0
          %v1662 = vsel %vm1498, %v1324, 0
          %v1664 = vsel %vm1498, %v1326, 0
          %v1666 = vsel %vm1498, %v1328, 0
          %v1668 = vsel %vm1498, %v1330, 0
          %v1670 = vsel %vm1498, %v1332, 0
          %v1672 = vsel %vm1498, %v1334, 0
          %v1674 = vsel %vm1498, %v1336, 0
          %v1676 = vsel %vm1498, %v1338, 0
          %v1678 = vsel %vm1498, %v1340, 0
          %v1680 = vsel %vm1498, %v1342, 0
          %v1682 = vsel %vm1498, %v1344, 0
          %v1684 = vsel %vm1498, %v1346, 0
          %v1686 = vsel %vm1498, %v1348, 0
          %v1688 = vsel %vm1498, %v1350, 0
          %v1690 = vsel %vm1498, %v1352, 0
          %v1693 = vsel %vm1553, %v1353, 0
          %1695 = vmatpush.bf16.msra.mxu0 0
          %1696 = vmatpush.bf16.msra.mxu0 0
          %1697 = vmatpush.bf16.msra.mxu0 0
          %1698 = vmatpush.bf16.msra.mxu0 0
          %1699 = vmatpush.bf16.msra.mxu0 0
          %1700 = vmatpush.bf16.msra.mxu0 0
          %1701 = vmatpush.bf16.msra.mxu0 0
          %1702 = vmatpush.bf16.msra.mxu0 %v1693
          %1703 = vmatmul.bf16.gmra.mxu0 %v1656
          %v1704 = vpop.f32.mrf.mxu0
          %v1705 = vadd.f32 %v1567, %v1704
          %v1706 = vpop.f32.mrf.mxu0
          %v1707 = vadd.f32 %v1569, %v1706
          %1708 = vmatmul.bf16.gmra.mxu0 %v1658
          %v1709 = vpop.f32.mrf.mxu0
          %v1710 = vadd.f32 %v1572, %v1709
          %v1711 = vpop.f32.mrf.mxu0
          %v1712 = vadd.f32 %v1574, %v1711
          %1713 = vmatmul.bf16.gmra.mxu0 %v1660
          %v1714 = vpop.f32.mrf.mxu0
          %v1715 = vadd.f32 %v1577, %v1714
          %v1716 = vpop.f32.mrf.mxu0
          %v1717 = vadd.f32 %v1579, %v1716
          %1718 = vmatmul.bf16.gmra.mxu0 %v1662
          %v1719 = vpop.f32.mrf.mxu0
          %v1720 = vadd.f32 %v1582, %v1719
          %v1721 = vpop.f32.mrf.mxu0
          %v1722 = vadd.f32 %v1584, %v1721
          %1723 = vmatmul.bf16.gmra.mxu0 %v1664
          %v1724 = vpop.f32.mrf.mxu0
          %v1725 = vadd.f32 %v1587, %v1724
          %v1726 = vpop.f32.mrf.mxu0
          %v1727 = vadd.f32 %v1589, %v1726
          %1728 = vmatmul.bf16.gmra.mxu0 %v1666
          %v1729 = vpop.f32.mrf.mxu0
          %v1730 = vadd.f32 %v1592, %v1729
          %v1731 = vpop.f32.mrf.mxu0
          %v1732 = vadd.f32 %v1594, %v1731
          %1733 = vmatmul.bf16.gmra.mxu0 %v1668
          %v1734 = vpop.f32.mrf.mxu0
          %v1735 = vadd.f32 %v1597, %v1734
          %v1736 = vpop.f32.mrf.mxu0
          %v1737 = vadd.f32 %v1599, %v1736
          %1738 = vmatmul.bf16.gmra.mxu0 %v1670
          %v1739 = vpop.f32.mrf.mxu0
          %v1740 = vadd.f32 %v1602, %v1739
          %v1741 = vpop.f32.mrf.mxu0
          %v1742 = vadd.f32 %v1604, %v1741
          %1743 = vmatmul.bf16.gmra.mxu0 %v1672
          %v1744 = vpop.f32.mrf.mxu0
          %v1745 = vadd.f32 %v1607, %v1744
          %v1746 = vpop.f32.mrf.mxu0
          %v1747 = vadd.f32 %v1609, %v1746
          %1748 = vmatmul.bf16.gmra.mxu0 %v1674
          %v1749 = vpop.f32.mrf.mxu0
          %v1750 = vadd.f32 %v1612, %v1749
          %v1751 = vpop.f32.mrf.mxu0
          %v1752 = vadd.f32 %v1614, %v1751
          %1753 = vmatmul.bf16.gmra.mxu0 %v1676
          %v1754 = vpop.f32.mrf.mxu0
          %v1755 = vadd.f32 %v1617, %v1754
          %v1756 = vpop.f32.mrf.mxu0
          %v1757 = vadd.f32 %v1619, %v1756
          %1758 = vmatmul.bf16.gmra.mxu0 %v1678
          %v1759 = vpop.f32.mrf.mxu0
          %v1760 = vadd.f32 %v1622, %v1759
          %v1761 = vpop.f32.mrf.mxu0
          %v1762 = vadd.f32 %v1624, %v1761
          %1763 = vmatmul.bf16.gmra.mxu0 %v1680
          %v1764 = vpop.f32.mrf.mxu0
          %v1765 = vadd.f32 %v1627, %v1764
          %v1766 = vpop.f32.mrf.mxu0
          %v1767 = vadd.f32 %v1629, %v1766
          %1768 = vmatmul.bf16.gmra.mxu0 %v1682
          %v1769 = vpop.f32.mrf.mxu0
          %v1770 = vadd.f32 %v1632, %v1769
          %v1771 = vpop.f32.mrf.mxu0
          %v1772 = vadd.f32 %v1634, %v1771
          %1773 = vmatmul.bf16.gmra.mxu0 %v1684
          %v1774 = vpop.f32.mrf.mxu0
          %v1775 = vadd.f32 %v1637, %v1774
          %v1776 = vpop.f32.mrf.mxu0
          %v1777 = vadd.f32 %v1639, %v1776
          %1778 = vmatmul.bf16.gmra.mxu0 %v1686
          %v1779 = vpop.f32.mrf.mxu0
          %v1780 = vadd.f32 %v1642, %v1779
          %v1781 = vpop.f32.mrf.mxu0
          %v1782 = vadd.f32 %v1644, %v1781
          %1783 = vmatmul.bf16.gmra.mxu0 %v1688
          %v1784 = vpop.f32.mrf.mxu0
          %v1785 = vadd.f32 %v1647, %v1784
          %v1786 = vpop.f32.mrf.mxu0
          %v1787 = vadd.f32 %v1649, %v1786
          %1788 = vmatmul.bf16.gmra.mxu0 %v1690
          %v1789 = vpop.f32.mrf.mxu0
          %v1790 = vadd.f32 %v1652, %v1789
          %v1791 = vpop.f32.mrf.mxu0
          %v1792 = vadd.f32 %v1654, %v1791
          %1793 = vdwg.mxu0
          %v1794 = vld [vmem:[#allocation2 + $0x10] sm:$0xc]
          %v1795 = vld [vmem:[#allocation2 + $0x14] sm:$0xf]
          %v1796 = vld [vmem:[#allocation2 + $0x18] sm:$0xf]
          %v1797 = vld [vmem:[#allocation2 + $0x1c] sm:$0xf]
          %v1798 = vld [vmem:[#allocation2 + $0x20] sm:$0xf]
          %v1799 = vld [vmem:[#allocation2 + $0x24] sm:$0xf]
          %v1800 = vld [vmem:[#allocation2 + $0x28] sm:$0xf]
          %v1801 = vld [vmem:[#allocation2 + $0x2c] sm:$0xf]
          %v1802 = vld [vmem:[#allocation2 + $0x30] sm:$0xf]
          %v1803 = vld [vmem:[#allocation2 + $0x34] sm:$0xf]
          %v1804 = vld [vmem:[#allocation2 + $0x38] sm:$0xf]
          %v1805 = vld [vmem:[#allocation2 + $0x3c] sm:$0xf]
          %v1806 = vld [vmem:[#allocation2 + $0x40] sm:$0xf]
          %v1807 = vld [vmem:[#allocation2 + $0x44] sm:$0xf]
          %v1808 = vld [vmem:[#allocation2 + $0x48] sm:$0xf]
          %v1809 = vld [vmem:[#allocation2 + $0x4c] sm:$0xf]
          %v1810 = vld [vmem:[#allocation2 + $0x50] sm:$0xf]
          %v1811 = vld [vmem:[#allocation2 + $0x54] sm:$0xf]
          %v1812 = vld [vmem:[#allocation2 + $0x58] sm:$0xf]
          %v1813 = vld [vmem:[#allocation2 + $0x5c] sm:$0xf]
          %v1814 = vld [vmem:[#allocation2 + $0x60] sm:$0xf]
          %v1815 = vld [vmem:[#allocation2 + $0x64] sm:$0xf]
          %v1816 = vld [vmem:[#allocation2 + $0x68] sm:$0xf]
          %v1817 = vld [vmem:[#allocation2 + $0x6c] sm:$0xf]
          %v1818 = vld [vmem:[#allocation2 + $0x70] sm:$0xf]
          %v1819 = vld [vmem:[#allocation2 + $0x74] sm:$0xf]
          %v1820 = vld [vmem:[#allocation2 + $0x78] sm:$0xf]
          %v1821 = vld [vmem:[#allocation2 + $0x7c] sm:$0xf]
          %v1822 = vld [vmem:[#allocation2 + $0x80] sm:$0xf]
          %v1823 = vld [vmem:[#allocation2 + $0x84] sm:$0xf]
          %v1824 = vld [vmem:[#allocation2 + $0x88] sm:$0xf]
          %v1825 = vld [vmem:[#allocation2 + $0x8c] sm:$0xf]
          %v1826 = vld [vmem:[#allocation2 + $0x90] sm:$0xf]
          %v1827 = vld [vmem:[#allocation2 + $0x94] sm:$0xf]
          %v1828 = vld [vmem:[#allocation2 + $0x98] sm:$0xf]
          %v1829 = vld [vmem:[#allocation2 + $0x9c] sm:$0xf]
          %v1830 = vld [vmem:[#allocation2 + $0xa0] sm:$0x3]
          %v1831 = vld [vmem:[#allocation2 + $0xa0] sm:$0x7]
          %v1832 = vld [vmem:[#allocation2 + $0x10] sm:$0x8]
          %v1870 = vunpack.c.l.b16 %v1794
          %v1871 = vunpack.c.l.b16 %v1795
          %v1872 = vunpack.c.l.b16 %v1796
          %v1873 = vunpack.c.l.b16 %v1797
          %v1874 = vunpack.c.l.b16 %v1798
          %v1875 = vunpack.c.l.b16 %v1799
          %v1876 = vunpack.c.l.b16 %v1800
          %v1877 = vunpack.c.l.b16 %v1801
          %v1878 = vunpack.c.l.b16 %v1802
          %v1879 = vunpack.c.l.b16 %v1803
          %v1880 = vunpack.c.l.b16 %v1804
          %v1881 = vunpack.c.l.b16 %v1805
          %v1882 = vunpack.c.l.b16 %v1806
          %v1883 = vunpack.c.l.b16 %v1807
          %v1884 = vunpack.c.l.b16 %v1808
          %v1885 = vunpack.c.l.b16 %v1809
          %v1886 = vunpack.c.l.b16 %v1810
          %v1887 = vunpack.c.l.b16 %v1811
          %v1888 = vunpack.c.l.b16 %v1812
          %v1889 = vunpack.c.l.b16 %v1813
          %v1890 = vunpack.c.l.b16 %v1814
          %v1891 = vunpack.c.l.b16 %v1815
          %v1892 = vunpack.c.l.b16 %v1816
          %v1893 = vunpack.c.l.b16 %v1817
          %v1894 = vunpack.c.l.b16 %v1818
          %v1895 = vunpack.c.l.b16 %v1819
          %v1896 = vunpack.c.l.b16 %v1820
          %v1897 = vunpack.c.l.b16 %v1821
          %v1898 = vunpack.c.l.b16 %v1822
          %v1899 = vunpack.c.l.b16 %v1823
          %v1900 = vunpack.c.l.b16 %v1824
          %v1901 = vunpack.c.l.b16 %v1825
          %v1902 = vunpack.c.l.b16 %v1826
          %v1903 = vunpack.c.l.b16 %v1827
          %v1904 = vunpack.c.l.b16 %v1828
          %v1905 = vunpack.c.l.b16 %v1829
          %v1906 = vunpack.c.l.b16 %v1830
          %v1907 = vpack.c.b16 %v1871, %v1870
          %v1908 = vpack.c.b16 %v1873, %v1872
          %v1909 = vpack.c.b16 %v1875, %v1874
          %v1910 = vpack.c.b16 %v1877, %v1876
          %v1911 = vpack.c.b16 %v1879, %v1878
          %v1912 = vpack.c.b16 %v1881, %v1880
          %v1913 = vpack.c.b16 %v1883, %v1882
          %v1914 = vpack.c.b16 %v1885, %v1884
          %v1915 = vpack.c.b16 %v1887, %v1886
          %v1916 = vpack.c.b16 %v1889, %v1888
          %v1917 = vpack.c.b16 %v1891, %v1890
          %v1918 = vpack.c.b16 %v1893, %v1892
          %v1919 = vpack.c.b16 %v1895, %v1894
          %v1920 = vpack.c.b16 %v1897, %v1896
          %v1921 = vpack.c.b16 %v1899, %v1898
          %v1922 = vpack.c.b16 %v1901, %v1900
          %v1923 = vpack.c.b16 %v1903, %v1902
          %v1924 = vpack.c.b16 %v1905, %v1904
          %v1925 = vpack.c.b16 %v1906, %v1906
          %v1927 = vunpack.c.l.b16 %v1831
          %v1928 = vpack.c.b16 %v1927, %v1927
          %v1930 = vshrl.u32 %v1907, 16
          %v1932 = vshll.u32 %v1907, 16
          %v1934 = vrot.slane %v1932, 1
          %v1935 = vor.u32 %v1930, %v1934
          %v1937 = vshll.u32 %v1908, 16
          %v1939 = vrot.slane %v1937, 1
          %v1940 = vsel %vm1017, %v1935, %v1939
          %v1941 = vshrl.u32 %v1908, 16
          %v1943 = vor.u32 %v1941, %v1939
          %v1945 = vshll.u32 %v1909, 16
          %v1947 = vrot.slane %v1945, 1
          %v1948 = vsel %vm1017, %v1943, %v1947
          %v1949 = vshrl.u32 %v1909, 16
          %v1951 = vor.u32 %v1949, %v1947
          %v1953 = vshll.u32 %v1910, 16
          %v1955 = vrot.slane %v1953, 1
          %v1956 = vsel %vm1017, %v1951, %v1955
          %v1957 = vshrl.u32 %v1910, 16
          %v1959 = vor.u32 %v1957, %v1955
          %v1961 = vshll.u32 %v1911, 16
          %v1963 = vrot.slane %v1961, 1
          %v1964 = vsel %vm1017, %v1959, %v1963
          %v1965 = vshrl.u32 %v1911, 16
          %v1967 = vor.u32 %v1965, %v1963
          %v1969 = vshll.u32 %v1912, 16
          %v1971 = vrot.slane %v1969, 1
          %v1972 = vsel %vm1017, %v1967, %v1971
          %v1973 = vshrl.u32 %v1912, 16
          %v1975 = vor.u32 %v1973, %v1971
          %v1977 = vshll.u32 %v1913, 16
          %v1979 = vrot.slane %v1977, 1
          %v1980 = vsel %vm1017, %v1975, %v1979
          %v1981 = vshrl.u32 %v1913, 16
          %v1983 = vor.u32 %v1981, %v1979
          %v1985 = vshll.u32 %v1914, 16
          %v1987 = vrot.slane %v1985, 1
          %v1988 = vsel %vm1017, %v1983, %v1987
          %v1989 = vshrl.u32 %v1914, 16
          %v1991 = vor.u32 %v1989, %v1987
          %v1993 = vshll.u32 %v1915, 16
          %v1995 = vrot.slane %v1993, 1
          %v1996 = vsel %vm1017, %v1991, %v1995
          %v1997 = vshrl.u32 %v1915, 16
          %v1999 = vor.u32 %v1997, %v1995
          %v2001 = vshll.u32 %v1916, 16
          %v2003 = vrot.slane %v2001, 1
          %v2004 = vsel %vm1017, %v1999, %v2003
          %v2005 = vshrl.u32 %v1916, 16
          %v2007 = vor.u32 %v2005, %v2003
          %v2009 = vshll.u32 %v1917, 16
          %v2011 = vrot.slane %v2009, 1
          %v2012 = vsel %vm1017, %v2007, %v2011
          %v2013 = vshrl.u32 %v1917, 16
          %v2015 = vor.u32 %v2013, %v2011
          %v2017 = vshll.u32 %v1918, 16
          %v2019 = vrot.slane %v2017, 1
          %v2020 = vsel %vm1017, %v2015, %v2019
          %v2021 = vshrl.u32 %v1918, 16
          %v2023 = vor.u32 %v2021, %v2019
          %v2025 = vshll.u32 %v1919, 16
          %v2027 = vrot.slane %v2025, 1
          %v2028 = vsel %vm1017, %v2023, %v2027
          %v2029 = vshrl.u32 %v1919, 16
          %v2031 = vor.u32 %v2029, %v2027
          %v2033 = vshll.u32 %v1920, 16
          %v2035 = vrot.slane %v2033, 1
          %v2036 = vsel %vm1017, %v2031, %v2035
          %v2037 = vshrl.u32 %v1920, 16
          %v2039 = vor.u32 %v2037, %v2035
          %v2041 = vshll.u32 %v1921, 16
          %v2043 = vrot.slane %v2041, 1
          %v2044 = vsel %vm1017, %v2039, %v2043
          %v2045 = vshrl.u32 %v1921, 16
          %v2047 = vor.u32 %v2045, %v2043
          %v2049 = vshll.u32 %v1922, 16
          %v2051 = vrot.slane %v2049, 1
          %v2052 = vsel %vm1017, %v2047, %v2051
          %v2053 = vshrl.u32 %v1922, 16
          %v2055 = vor.u32 %v2053, %v2051
          %v2057 = vshll.u32 %v1923, 16
          %v2059 = vrot.slane %v2057, 1
          %v2060 = vsel %vm1017, %v2055, %v2059
          %v2061 = vshrl.u32 %v1923, 16
          %v2063 = vor.u32 %v2061, %v2059
          %v2065 = vshll.u32 %v1924, 16
          %v2067 = vrot.slane %v2065, 1
          %v2068 = vsel %vm1017, %v2063, %v2067
          %v2069 = vshrl.u32 %v1924, 16
          %v2071 = vor.u32 %v2069, %v2067
          %v2073 = vshll.u32 %v1928, 16
          %v2075 = vrot.slane %v2073, 1
          %v2076 = vsel %vm1017, %v2071, %v2075
          %v2077 = vshrl.u32 %v1928, 16
          %v2079 = vor.u32 %v2077, %v2075
          %2080 = vrot.lane.b32.xlu0 %v1940, 2
          %v2081 = vpop.permute.xlu0 %2080
          %2082 = vrot.lane.b32.xlu0 %v1948, 2
          %v2083 = vpop.permute.xlu0 %2082
          %2084 = vrot.lane.b32.xlu0 %v1956, 2
          %v2085 = vpop.permute.xlu0 %2084
          %2086 = vrot.lane.b32.xlu0 %v1964, 2
          %v2087 = vpop.permute.xlu0 %2086
          %2088 = vrot.lane.b32.xlu0 %v1972, 2
          %v2089 = vpop.permute.xlu0 %2088
          %2090 = vrot.lane.b32.xlu0 %v1980, 2
          %v2091 = vpop.permute.xlu0 %2090
          %2092 = vrot.lane.b32.xlu0 %v1988, 2
          %v2093 = vpop.permute.xlu0 %2092
          %2094 = vrot.lane.b32.xlu0 %v1996, 2
          %v2095 = vpop.permute.xlu0 %2094
          %2096 = vrot.lane.b32.xlu0 %v2004, 2
          %v2097 = vpop.permute.xlu0 %2096
          %2098 = vrot.lane.b32.xlu0 %v2012, 2
          %v2099 = vpop.permute.xlu0 %2098
          %2100 = vrot.lane.b32.xlu0 %v2020, 2
          %v2101 = vpop.permute.xlu0 %2100
          %2102 = vrot.lane.b32.xlu0 %v2028, 2
          %v2103 = vpop.permute.xlu0 %2102
          %2104 = vrot.lane.b32.xlu0 %v2036, 2
          %v2105 = vpop.permute.xlu0 %2104
          %2106 = vrot.lane.b32.xlu0 %v2044, 2
          %v2107 = vpop.permute.xlu0 %2106
          %2108 = vrot.lane.b32.xlu0 %v2052, 2
          %v2109 = vpop.permute.xlu0 %2108
          %2110 = vrot.lane.b32.xlu0 %v2060, 2
          %v2111 = vpop.permute.xlu0 %2110
          %2112 = vrot.lane.b32.xlu0 %v2068, 2
          %v2113 = vpop.permute.xlu0 %2112
          %2114 = vrot.lane.b32.xlu0 %v2076, 2
          %v2115 = vpop.permute.xlu0 %2114
          %2116 = vrot.lane.b32.xlu0 %v2079, 2
          %v2117 = vpop.permute.xlu0 %2116
          %v2119 = vunpack.c.l.b16 %v1832
          %v2120 = vpack.c.b16 %v1871, %v2119
          %v2121 = vrot.slane %v2120, 1
          %v2122 = vrot.slane %v1908, 1
          %v2123 = vsel %vm1205, %v2121, %v2122
          %v2124 = vrot.slane %v1909, 1
          %v2125 = vsel %vm1205, %v2122, %v2124
          %v2126 = vrot.slane %v1910, 1
          %v2127 = vsel %vm1205, %v2124, %v2126
          %v2128 = vrot.slane %v1911, 1
          %v2129 = vsel %vm1205, %v2126, %v2128
          %v2130 = vrot.slane %v1912, 1
          %v2131 = vsel %vm1205, %v2128, %v2130
          %v2132 = vrot.slane %v1913, 1
          %v2133 = vsel %vm1205, %v2130, %v2132
          %v2134 = vrot.slane %v1914, 1
          %v2135 = vsel %vm1205, %v2132, %v2134
          %v2136 = vrot.slane %v1915, 1
          %v2137 = vsel %vm1205, %v2134, %v2136
          %v2138 = vrot.slane %v1916, 1
          %v2139 = vsel %vm1205, %v2136, %v2138
          %v2140 = vrot.slane %v1917, 1
          %v2141 = vsel %vm1205, %v2138, %v2140
          %v2142 = vrot.slane %v1918, 1
          %v2143 = vsel %vm1205, %v2140, %v2142
          %v2144 = vrot.slane %v1919, 1
          %v2145 = vsel %vm1205, %v2142, %v2144
          %v2146 = vrot.slane %v1920, 1
          %v2147 = vsel %vm1205, %v2144, %v2146
          %v2148 = vrot.slane %v1921, 1
          %v2149 = vsel %vm1205, %v2146, %v2148
          %v2150 = vrot.slane %v1922, 1
          %v2151 = vsel %vm1205, %v2148, %v2150
          %v2152 = vrot.slane %v1923, 1
          %v2153 = vsel %vm1205, %v2150, %v2152
          %v2154 = vrot.slane %v1924, 1
          %v2155 = vsel %vm1205, %v2152, %v2154
          %v2156 = vrot.slane %v1928, 1
          %v2157 = vsel %vm1205, %v2154, %v2156
          %2158 = vrot.lane.b32.xlu0 %v2123, 4
          %v2159 = vpop.permute.xlu0 %2158
          %2160 = vrot.lane.b32.xlu0 %v2125, 4
          %v2161 = vpop.permute.xlu0 %2160
          %2162 = vrot.lane.b32.xlu0 %v2127, 4
          %v2163 = vpop.permute.xlu0 %2162
          %2164 = vrot.lane.b32.xlu0 %v2129, 4
          %v2165 = vpop.permute.xlu0 %2164
          %2166 = vrot.lane.b32.xlu0 %v2131, 4
          %v2167 = vpop.permute.xlu0 %2166
          %2168 = vrot.lane.b32.xlu0 %v2133, 4
          %v2169 = vpop.permute.xlu0 %2168
          %2170 = vrot.lane.b32.xlu0 %v2135, 4
          %v2171 = vpop.permute.xlu0 %2170
          %2172 = vrot.lane.b32.xlu0 %v2137, 4
          %v2173 = vpop.permute.xlu0 %2172
          %2174 = vrot.lane.b32.xlu0 %v2139, 4
          %v2175 = vpop.permute.xlu0 %2174
          %2176 = vrot.lane.b32.xlu0 %v2141, 4
          %v2177 = vpop.permute.xlu0 %2176
          %2178 = vrot.lane.b32.xlu0 %v2143, 4
          %v2179 = vpop.permute.xlu0 %2178
          %2180 = vrot.lane.b32.xlu0 %v2145, 4
          %v2181 = vpop.permute.xlu0 %2180
          %2182 = vrot.lane.b32.xlu0 %v2147, 4
          %v2183 = vpop.permute.xlu0 %2182
          %2184 = vrot.lane.b32.xlu0 %v2149, 4
          %v2185 = vpop.permute.xlu0 %2184
          %2186 = vrot.lane.b32.xlu0 %v2151, 4
          %v2187 = vpop.permute.xlu0 %2186
          %2188 = vrot.lane.b32.xlu0 %v2153, 4
          %v2189 = vpop.permute.xlu0 %2188
          %2190 = vrot.lane.b32.xlu0 %v2155, 4
          %v2191 = vpop.permute.xlu0 %2190
          %2192 = vrot.lane.b32.xlu0 %v2157, 4
          %v2193 = vpop.permute.xlu0 %2192
          %2194 = vrot.lane.b32.xlu0 %v2156, 4
          %v2195 = vpop.permute.xlu0 %2194
          %v2197 = vsel %vm1279, %v1907, %v2081
          %v2199 = vsel %vm1279, %v1908, %v2083
          %v2201 = vsel %vm1279, %v1909, %v2085
          %v2203 = vsel %vm1279, %v1910, %v2087
          %v2205 = vsel %vm1279, %v1911, %v2089
          %v2207 = vsel %vm1279, %v1912, %v2091
          %v2209 = vsel %vm1279, %v1913, %v2093
          %v2211 = vsel %vm1279, %v1914, %v2095
          %v2213 = vsel %vm1279, %v1915, %v2097
          %v2215 = vsel %vm1279, %v1916, %v2099
          %v2217 = vsel %vm1279, %v1917, %v2101
          %v2219 = vsel %vm1279, %v1918, %v2103
          %v2221 = vsel %vm1279, %v1919, %v2105
          %v2223 = vsel %vm1279, %v1920, %v2107
          %v2225 = vsel %vm1279, %v1921, %v2109
          %v2227 = vsel %vm1279, %v1922, %v2111
          %v2229 = vsel %vm1279, %v1923, %v2113
          %v2231 = vsel %vm1279, %v1924, %v2115
          %v2234 = vsel %vm1279, %v1925, %v2117
          %v2236 = vsel %vm1316, %v2197, %v2159
          %v2238 = vsel %vm1316, %v2199, %v2161
          %v2240 = vsel %vm1316, %v2201, %v2163
          %v2242 = vsel %vm1316, %v2203, %v2165
          %v2244 = vsel %vm1316, %v2205, %v2167
          %v2246 = vsel %vm1316, %v2207, %v2169
          %v2248 = vsel %vm1316, %v2209, %v2171
          %v2250 = vsel %vm1316, %v2211, %v2173
          %v2252 = vsel %vm1316, %v2213, %v2175
          %v2254 = vsel %vm1316, %v2215, %v2177
          %v2256 = vsel %vm1316, %v2217, %v2179
          %v2258 = vsel %vm1316, %v2219, %v2181
          %v2260 = vsel %vm1316, %v2221, %v2183
          %v2262 = vsel %vm1316, %v2223, %v2185
          %v2264 = vsel %vm1316, %v2225, %v2187
          %v2266 = vsel %vm1316, %v2227, %v2189
          %v2268 = vsel %vm1316, %v2229, %v2191
          %v2270 = vsel %vm1316, %v2231, %v2193
          %v2272 = vsel %vm1316, %v2234, %v2195
          %s2273 = scalar_lea.vmem %s1, 8
          %v2274 = vld [vmem:[%s2273] sm:$0x7]
          %vm2294 = vcmask 1045504
          %v2295 = vrot.slane %v2236, 2
          %v2296 = vrot.slane %v2238, 2
          %v2297 = vsel %vm2294, %v2295, %v2296
          %v2298 = vrot.slane %v2240, 2
          %v2299 = vsel %vm2294, %v2296, %v2298
          %v2300 = vrot.slane %v2242, 2
          %v2301 = vsel %vm2294, %v2298, %v2300
          %v2302 = vrot.slane %v2244, 2
          %v2303 = vsel %vm2294, %v2300, %v2302
          %v2304 = vrot.slane %v2246, 2
          %v2305 = vsel %vm2294, %v2302, %v2304
          %v2306 = vrot.slane %v2248, 2
          %v2307 = vsel %vm2294, %v2304, %v2306
          %v2308 = vrot.slane %v2250, 2
          %v2309 = vsel %vm2294, %v2306, %v2308
          %v2310 = vrot.slane %v2252, 2
          %v2311 = vsel %vm2294, %v2308, %v2310
          %v2312 = vrot.slane %v2254, 2
          %v2313 = vsel %vm2294, %v2310, %v2312
          %v2314 = vrot.slane %v2256, 2
          %v2315 = vsel %vm2294, %v2312, %v2314
          %v2316 = vrot.slane %v2258, 2
          %v2317 = vsel %vm2294, %v2314, %v2316
          %v2318 = vrot.slane %v2260, 2
          %v2319 = vsel %vm2294, %v2316, %v2318
          %v2320 = vrot.slane %v2262, 2
          %v2321 = vsel %vm2294, %v2318, %v2320
          %v2322 = vrot.slane %v2264, 2
          %v2323 = vsel %vm2294, %v2320, %v2322
          %v2324 = vrot.slane %v2266, 2
          %v2325 = vsel %vm2294, %v2322, %v2324
          %v2326 = vrot.slane %v2268, 2
          %v2327 = vsel %vm2294, %v2324, %v2326
          %v2328 = vrot.slane %v2270, 2
          %v2329 = vsel %vm2294, %v2326, %v2328
          %v2330 = vrot.slane %v2272, 2
          %v2331 = vsel %vm2294, %v2328, %v2330
          %v2333 = vsel %vm1498, %v2297, 0
          %v2336 = vsel %vm1498, %v2299, 0
          %v2339 = vsel %vm1498, %v2301, 0
          %v2342 = vsel %vm1498, %v2303, 0
          %v2345 = vsel %vm1498, %v2305, 0
          %v2348 = vsel %vm1498, %v2307, 0
          %v2351 = vsel %vm1498, %v2309, 0
          %v2354 = vsel %vm1498, %v2311, 0
          %v2357 = vsel %vm1498, %v2313, 0
          %v2360 = vsel %vm1498, %v2315, 0
          %v2363 = vsel %vm1498, %v2317, 0
          %v2366 = vsel %vm1498, %v2319, 0
          %v2369 = vsel %vm1498, %v2321, 0
          %v2372 = vsel %vm1498, %v2323, 0
          %v2375 = vsel %vm1498, %v2325, 0
          %v2378 = vsel %vm1498, %v2327, 0
          %v2381 = vsel %vm1498, %v2329, 0
          %v2384 = vsel %vm1498, %v2331, 0
          %v2387 = vsel %vm1553, %v2274, 0
          %2389 = vmatpush.bf16.msra.mxu0 0
          %2390 = vmatpush.bf16.msra.mxu0 0
          %2391 = vmatpush.bf16.msra.mxu0 0
          %2392 = vmatpush.bf16.msra.mxu0 0
          %2393 = vmatpush.bf16.msra.mxu0 0
          %2394 = vmatpush.bf16.msra.mxu0 0
          %2395 = vmatpush.bf16.msra.mxu0 0
          %2396 = vmatpush.bf16.msra.mxu0 %v2387
          %2397 = vmatmul.bf16.gmra.mxu0 %v2333
          %v2398 = vpop.f32.mrf.mxu0
          %v2399 = vadd.f32 0.0, %v2398
          %v2400 = vpop.f32.mrf.mxu0
          %v2401 = vadd.f32 0.0, %v2400
          %2402 = vmatmul.bf16.gmra.mxu0 %v2336
          %v2403 = vpop.f32.mrf.mxu0
          %v2404 = vadd.f32 0.0, %v2403
          %v2405 = vpop.f32.mrf.mxu0
          %v2406 = vadd.f32 0.0, %v2405
          %2407 = vmatmul.bf16.gmra.mxu0 %v2339
          %v2408 = vpop.f32.mrf.mxu0
          %v2409 = vadd.f32 0.0, %v2408
          %v2410 = vpop.f32.mrf.mxu0
          %v2411 = vadd.f32 0.0, %v2410
          %2412 = vmatmul.bf16.gmra.mxu0 %v2342
          %v2413 = vpop.f32.mrf.mxu0
          %v2414 = vadd.f32 0.0, %v2413
          %v2415 = vpop.f32.mrf.mxu0
          %v2416 = vadd.f32 0.0, %v2415
          %2417 = vmatmul.bf16.gmra.mxu0 %v2345
          %v2418 = vpop.f32.mrf.mxu0
          %v2419 = vadd.f32 0.0, %v2418
          %v2420 = vpop.f32.mrf.mxu0
          %v2421 = vadd.f32 0.0, %v2420
          %2422 = vmatmul.bf16.gmra.mxu0 %v2348
          %v2423 = vpop.f32.mrf.mxu0
          %v2424 = vadd.f32 0.0, %v2423
          %v2425 = vpop.f32.mrf.mxu0
          %v2426 = vadd.f32 0.0, %v2425
          %2427 = vmatmul.bf16.gmra.mxu0 %v2351
          %v2428 = vpop.f32.mrf.mxu0
          %v2429 = vadd.f32 0.0, %v2428
          %v2430 = vpop.f32.mrf.mxu0
          %v2431 = vadd.f32 0.0, %v2430
          %2432 = vmatmul.bf16.gmra.mxu0 %v2354
          %v2433 = vpop.f32.mrf.mxu0
          %v2434 = vadd.f32 0.0, %v2433
          %v2435 = vpop.f32.mrf.mxu0
          %v2436 = vadd.f32 0.0, %v2435
          %2437 = vmatmul.bf16.gmra.mxu0 %v2357
          %v2438 = vpop.f32.mrf.mxu0
          %v2439 = vadd.f32 0.0, %v2438
          %v2440 = vpop.f32.mrf.mxu0
          %v2441 = vadd.f32 0.0, %v2440
          %2442 = vmatmul.bf16.gmra.mxu0 %v2360
          %v2443 = vpop.f32.mrf.mxu0
          %v2444 = vadd.f32 0.0, %v2443
          %v2445 = vpop.f32.mrf.mxu0
          %v2446 = vadd.f32 0.0, %v2445
          %2447 = vmatmul.bf16.gmra.mxu0 %v2363
          %v2448 = vpop.f32.mrf.mxu0
          %v2449 = vadd.f32 0.0, %v2448
          %v2450 = vpop.f32.mrf.mxu0
          %v2451 = vadd.f32 0.0, %v2450
          %2452 = vmatmul.bf16.gmra.mxu0 %v2366
          %v2453 = vpop.f32.mrf.mxu0
          %v2454 = vadd.f32 0.0, %v2453
          %v2455 = vpop.f32.mrf.mxu0
          %v2456 = vadd.f32 0.0, %v2455
          %2457 = vmatmul.bf16.gmra.mxu0 %v2369
          %v2458 = vpop.f32.mrf.mxu0
          %v2459 = vadd.f32 0.0, %v2458
          %v2460 = vpop.f32.mrf.mxu0
          %v2461 = vadd.f32 0.0, %v2460
          %2462 = vmatmul.bf16.gmra.mxu0 %v2372
          %v2463 = vpop.f32.mrf.mxu0
          %v2464 = vadd.f32 0.0, %v2463
          %v2465 = vpop.f32.mrf.mxu0
          %v2466 = vadd.f32 0.0, %v2465
          %2467 = vmatmul.bf16.gmra.mxu0 %v2375
          %v2468 = vpop.f32.mrf.mxu0
          %v2469 = vadd.f32 0.0, %v2468
          %v2470 = vpop.f32.mrf.mxu0
          %v2471 = vadd.f32 0.0, %v2470
          %2472 = vmatmul.bf16.gmra.mxu0 %v2378
          %v2473 = vpop.f32.mrf.mxu0
          %v2474 = vadd.f32 0.0, %v2473
          %v2475 = vpop.f32.mrf.mxu0
          %v2476 = vadd.f32 0.0, %v2475
          %2477 = vmatmul.bf16.gmra.mxu0 %v2381
          %v2478 = vpop.f32.mrf.mxu0
          %v2479 = vadd.f32 0.0, %v2478
          %v2480 = vpop.f32.mrf.mxu0
          %v2481 = vadd.f32 0.0, %v2480
          %2482 = vmatmul.bf16.gmra.mxu0 %v2384
          %v2483 = vpop.f32.mrf.mxu0
          %v2484 = vadd.f32 0.0, %v2483
          %v2485 = vpop.f32.mrf.mxu0
          %v2486 = vadd.f32 0.0, %v2485
          %2487 = vdwg.mxu0
          %v2488 = vadd.f32 %v1705, %v2399
          %v2489 = vadd.f32 %v1707, %v2401
          %v2490 = vadd.f32 %v1710, %v2404
          %v2491 = vadd.f32 %v1712, %v2406
          %v2492 = vadd.f32 %v1715, %v2409
          %v2493 = vadd.f32 %v1717, %v2411
          %v2494 = vadd.f32 %v1720, %v2414
          %v2495 = vadd.f32 %v1722, %v2416
          %v2496 = vadd.f32 %v1725, %v2419
          %v2497 = vadd.f32 %v1727, %v2421
          %v2498 = vadd.f32 %v1730, %v2424
          %v2499 = vadd.f32 %v1732, %v2426
          %v2500 = vadd.f32 %v1735, %v2429
          %v2501 = vadd.f32 %v1737, %v2431
          %v2502 = vadd.f32 %v1740, %v2434
          %v2503 = vadd.f32 %v1742, %v2436
          %v2504 = vadd.f32 %v1745, %v2439
          %v2505 = vadd.f32 %v1747, %v2441
          %v2506 = vadd.f32 %v1750, %v2444
          %v2507 = vadd.f32 %v1752, %v2446
          %v2508 = vadd.f32 %v1755, %v2449
          %v2509 = vadd.f32 %v1757, %v2451
          %v2510 = vadd.f32 %v1760, %v2454
          %v2511 = vadd.f32 %v1762, %v2456
          %v2512 = vadd.f32 %v1765, %v2459
          %v2513 = vadd.f32 %v1767, %v2461
          %v2514 = vadd.f32 %v1770, %v2464
          %v2515 = vadd.f32 %v1772, %v2466
          %v2516 = vadd.f32 %v1775, %v2469
          %v2517 = vadd.f32 %v1777, %v2471
          %v2518 = vadd.f32 %v1780, %v2474
          %v2519 = vadd.f32 %v1782, %v2476
          %v2520 = vadd.f32 %v1785, %v2479
          %v2521 = vadd.f32 %v1787, %v2481
          %v2522 = vadd.f32 %v1790, %v2484
          %v2523 = vadd.f32 %v1792, %v2486
          %v2524 = vld [vmem:[%s2] sm:$0x1]
          %v2526 = vperm.slane %v2524, 0
          %v2528 = vadd.f32 %v2488, %v2526
          %v2529 = vadd.f32 %v2489, %v2526
          %v2530 = vadd.f32 %v2490, %v2526
          %v2531 = vadd.f32 %v2491, %v2526
          %v2532 = vadd.f32 %v2492, %v2526
          %v2533 = vadd.f32 %v2493, %v2526
          %v2534 = vadd.f32 %v2494, %v2526
          %v2535 = vadd.f32 %v2495, %v2526
          %v2536 = vadd.f32 %v2496, %v2526
          %v2537 = vadd.f32 %v2497, %v2526
          %v2538 = vadd.f32 %v2498, %v2526
          %v2539 = vadd.f32 %v2499, %v2526
          %v2540 = vadd.f32 %v2500, %v2526
          %v2541 = vadd.f32 %v2501, %v2526
          %v2542 = vadd.f32 %v2502, %v2526
          %v2543 = vadd.f32 %v2503, %v2526
          %v2544 = vadd.f32 %v2504, %v2526
          %v2545 = vadd.f32 %v2505, %v2526
          %v2546 = vadd.f32 %v2506, %v2526
          %v2547 = vadd.f32 %v2507, %v2526
          %v2548 = vadd.f32 %v2508, %v2526
          %v2549 = vadd.f32 %v2509, %v2526
          %v2550 = vadd.f32 %v2510, %v2526
          %v2551 = vadd.f32 %v2511, %v2526
          %v2552 = vadd.f32 %v2512, %v2526
          %v2553 = vadd.f32 %v2513, %v2526
          %v2554 = vadd.f32 %v2514, %v2526
          %v2555 = vadd.f32 %v2515, %v2526
          %v2556 = vadd.f32 %v2516, %v2526
          %v2557 = vadd.f32 %v2517, %v2526
          %v2558 = vadd.f32 %v2518, %v2526
          %v2559 = vadd.f32 %v2519, %v2526
          %v2560 = vadd.f32 %v2520, %v2526
          %v2561 = vadd.f32 %v2521, %v2526
          %v2562 = vadd.f32 %v2522, %v2526
          %v2563 = vadd.f32 %v2523, %v2526
          %v2564 = vmax.f32 %v2528, 0.0
          %v2565 = vmax.f32 %v2529, 0.0
          %v2566 = vmax.f32 %v2530, 0.0
          %v2567 = vmax.f32 %v2531, 0.0
          %v2568 = vmax.f32 %v2532, 0.0
          %v2569 = vmax.f32 %v2533, 0.0
          %v2570 = vmax.f32 %v2534, 0.0
          %v2571 = vmax.f32 %v2535, 0.0
          %v2572 = vmax.f32 %v2536, 0.0
          %v2573 = vmax.f32 %v2537, 0.0
          %v2574 = vmax.f32 %v2538, 0.0
          %v2575 = vmax.f32 %v2539, 0.0
          %v2576 = vmax.f32 %v2540, 0.0
          %v2577 = vmax.f32 %v2541, 0.0
          %v2578 = vmax.f32 %v2542, 0.0
          %v2579 = vmax.f32 %v2543, 0.0
          %v2580 = vmax.f32 %v2544, 0.0
          %v2581 = vmax.f32 %v2545, 0.0
          %v2582 = vmax.f32 %v2546, 0.0
          %v2583 = vmax.f32 %v2547, 0.0
          %v2584 = vmax.f32 %v2548, 0.0
          %v2585 = vmax.f32 %v2549, 0.0
          %v2586 = vmax.f32 %v2550, 0.0
          %v2587 = vmax.f32 %v2551, 0.0
          %v2588 = vmax.f32 %v2552, 0.0
          %v2589 = vmax.f32 %v2553, 0.0
          %v2590 = vmax.f32 %v2554, 0.0
          %v2591 = vmax.f32 %v2555, 0.0
          %v2592 = vmax.f32 %v2556, 0.0
          %v2593 = vmax.f32 %v2557, 0.0
          %v2594 = vmax.f32 %v2558, 0.0
          %v2595 = vmax.f32 %v2559, 0.0
          %v2596 = vmax.f32 %v2560, 0.0
          %v2597 = vmax.f32 %v2561, 0.0
          %v2598 = vmax.f32 %v2562, 0.0
          %v2599 = vmax.f32 %v2563, 0.0
          %v2600 = vpack.c.bf16 %v2564, %v2564
          %v2601 = vpack.c.bf16 %v2565, %v2565
          %v2602 = vpack.c.bf16 %v2566, %v2566
          %v2603 = vpack.c.bf16 %v2567, %v2567
          %v2604 = vpack.c.bf16 %v2568, %v2568
          %v2605 = vpack.c.bf16 %v2569, %v2569
          %v2606 = vpack.c.bf16 %v2570, %v2570
          %v2607 = vpack.c.bf16 %v2571, %v2571
          %v2608 = vpack.c.bf16 %v2572, %v2572
          %v2609 = vpack.c.bf16 %v2573, %v2573
          %v2610 = vpack.c.bf16 %v2574, %v2574
          %v2611 = vpack.c.bf16 %v2575, %v2575
          %v2612 = vpack.c.bf16 %v2576, %v2576
          %v2613 = vpack.c.bf16 %v2577, %v2577
          %v2614 = vpack.c.bf16 %v2578, %v2578
          %v2615 = vpack.c.bf16 %v2579, %v2579
          %v2616 = vpack.c.bf16 %v2580, %v2580
          %v2617 = vpack.c.bf16 %v2581, %v2581
          %v2618 = vpack.c.bf16 %v2582, %v2582
          %v2619 = vpack.c.bf16 %v2583, %v2583
          %v2620 = vpack.c.bf16 %v2584, %v2584
          %v2621 = vpack.c.bf16 %v2585, %v2585
          %v2622 = vpack.c.bf16 %v2586, %v2586
          %v2623 = vpack.c.bf16 %v2587, %v2587
          %v2624 = vpack.c.bf16 %v2588, %v2588
          %v2625 = vpack.c.bf16 %v2589, %v2589
          %v2626 = vpack.c.bf16 %v2590, %v2590
          %v2627 = vpack.c.bf16 %v2591, %v2591
          %v2628 = vpack.c.bf16 %v2592, %v2592
          %v2629 = vpack.c.bf16 %v2593, %v2593
          %v2630 = vpack.c.bf16 %v2594, %v2594
          %v2631 = vpack.c.bf16 %v2595, %v2595
          %v2632 = vpack.c.bf16 %v2596, %v2596
          %v2633 = vpack.c.bf16 %v2597, %v2597
          %v2634 = vpack.c.bf16 %v2598, %v2598
          %v2635 = vpack.c.bf16 %v2599, %v2599
          %v2637 = vshrl.u32 %v2600, 16
          %v2639 = vrot.slane %v2637, 6
          %v2640 = vshll.u32 %v2600, 16
          %v2642 = vrot.slane %v2640, 7
          %v2643 = vor.u32 %v2639, %v2642
          %v2644 = vrot.slane %v2643, 4
          %v2646 = vshrl.u32 %v2601, 16
          %v2648 = vrot.slane %v2646, 6
          %v2649 = vshll.u32 %v2601, 16
          %v2651 = vrot.slane %v2649, 7
          %v2652 = vor.u32 %v2648, %v2651
          %v2653 = vsel %vm277, %v2644, %v2652
          %v2654 = vrot.slane %v2652, 4
          %v2656 = vshrl.u32 %v2602, 16
          %v2658 = vrot.slane %v2656, 6
          %v2659 = vshll.u32 %v2602, 16
          %v2661 = vrot.slane %v2659, 7
          %v2662 = vor.u32 %v2658, %v2661
          %v2663 = vsel %vm277, %v2654, %v2662
          %v2664 = vrot.slane %v2662, 4
          %v2666 = vshrl.u32 %v2603, 16
          %v2668 = vrot.slane %v2666, 6
          %v2669 = vshll.u32 %v2603, 16
          %v2671 = vrot.slane %v2669, 7
          %v2672 = vor.u32 %v2668, %v2671
          %v2673 = vsel %vm277, %v2664, %v2672
          %v2674 = vrot.slane %v2672, 4
          %v2676 = vshrl.u32 %v2604, 16
          %v2678 = vrot.slane %v2676, 6
          %v2679 = vshll.u32 %v2604, 16
          %v2681 = vrot.slane %v2679, 7
          %v2682 = vor.u32 %v2678, %v2681
          %v2683 = vsel %vm277, %v2674, %v2682
          %v2684 = vrot.slane %v2682, 4
          %v2686 = vshrl.u32 %v2605, 16
          %v2688 = vrot.slane %v2686, 6
          %v2689 = vshll.u32 %v2605, 16
          %v2691 = vrot.slane %v2689, 7
          %v2692 = vor.u32 %v2688, %v2691
          %v2693 = vsel %vm277, %v2684, %v2692
          %v2694 = vrot.slane %v2692, 4
          %v2696 = vshrl.u32 %v2606, 16
          %v2698 = vrot.slane %v2696, 6
          %v2699 = vshll.u32 %v2606, 16
          %v2701 = vrot.slane %v2699, 7
          %v2702 = vor.u32 %v2698, %v2701
          %v2703 = vsel %vm277, %v2694, %v2702
          %v2704 = vrot.slane %v2702, 4
          %v2706 = vshrl.u32 %v2607, 16
          %v2708 = vrot.slane %v2706, 6
          %v2709 = vshll.u32 %v2607, 16
          %v2711 = vrot.slane %v2709, 7
          %v2712 = vor.u32 %v2708, %v2711
          %v2713 = vsel %vm277, %v2704, %v2712
          %v2714 = vrot.slane %v2712, 4
          %v2716 = vshrl.u32 %v2608, 16
          %v2718 = vrot.slane %v2716, 6
          %v2719 = vshll.u32 %v2608, 16
          %v2721 = vrot.slane %v2719, 7
          %v2722 = vor.u32 %v2718, %v2721
          %v2723 = vsel %vm277, %v2714, %v2722
          %v2724 = vrot.slane %v2722, 4
          %v2726 = vshrl.u32 %v2609, 16
          %v2728 = vrot.slane %v2726, 6
          %v2729 = vshll.u32 %v2609, 16
          %v2731 = vrot.slane %v2729, 7
          %v2732 = vor.u32 %v2728, %v2731
          %v2733 = vsel %vm277, %v2724, %v2732
          %v2734 = vrot.slane %v2732, 4
          %v2736 = vshrl.u32 %v2610, 16
          %v2738 = vrot.slane %v2736, 6
          %v2739 = vshll.u32 %v2610, 16
          %v2741 = vrot.slane %v2739, 7
          %v2742 = vor.u32 %v2738, %v2741
          %v2743 = vsel %vm277, %v2734, %v2742
          %v2744 = vrot.slane %v2742, 4
          %v2746 = vshrl.u32 %v2611, 16
          %v2748 = vrot.slane %v2746, 6
          %v2749 = vshll.u32 %v2611, 16
          %v2751 = vrot.slane %v2749, 7
          %v2752 = vor.u32 %v2748, %v2751
          %v2753 = vsel %vm277, %v2744, %v2752
          %v2754 = vrot.slane %v2752, 4
          %v2756 = vshrl.u32 %v2612, 16
          %v2758 = vrot.slane %v2756, 6
          %v2759 = vshll.u32 %v2612, 16
          %v2761 = vrot.slane %v2759, 7
          %v2762 = vor.u32 %v2758, %v2761
          %v2763 = vsel %vm277, %v2754, %v2762
          %v2764 = vrot.slane %v2762, 4
          %v2766 = vshrl.u32 %v2613, 16
          %v2768 = vrot.slane %v2766, 6
          %v2769 = vshll.u32 %v2613, 16
          %v2771 = vrot.slane %v2769, 7
          %v2772 = vor.u32 %v2768, %v2771
          %v2773 = vsel %vm277, %v2764, %v2772
          %v2774 = vrot.slane %v2772, 4
          %v2776 = vshrl.u32 %v2614, 16
          %v2778 = vrot.slane %v2776, 6
          %v2779 = vshll.u32 %v2614, 16
          %v2781 = vrot.slane %v2779, 7
          %v2782 = vor.u32 %v2778, %v2781
          %v2783 = vsel %vm277, %v2774, %v2782
          %v2784 = vrot.slane %v2782, 4
          %v2786 = vshrl.u32 %v2615, 16
          %v2788 = vrot.slane %v2786, 6
          %v2789 = vshll.u32 %v2615, 16
          %v2791 = vrot.slane %v2789, 7
          %v2792 = vor.u32 %v2788, %v2791
          %v2793 = vsel %vm277, %v2784, %v2792
          %v2794 = vrot.slane %v2792, 4
          %v2796 = vshrl.u32 %v2616, 16
          %v2798 = vrot.slane %v2796, 6
          %v2799 = vshll.u32 %v2616, 16
          %v2801 = vrot.slane %v2799, 7
          %v2802 = vor.u32 %v2798, %v2801
          %v2803 = vsel %vm277, %v2794, %v2802
          %v2804 = vrot.slane %v2802, 4
          %v2806 = vshrl.u32 %v2617, 16
          %v2808 = vrot.slane %v2806, 6
          %v2809 = vshll.u32 %v2617, 16
          %v2811 = vrot.slane %v2809, 7
          %v2812 = vor.u32 %v2808, %v2811
          %v2813 = vsel %vm277, %v2804, %v2812
          %v2814 = vrot.slane %v2812, 4
          %v2816 = vshrl.u32 %v2618, 16
          %v2818 = vrot.slane %v2816, 6
          %v2819 = vshll.u32 %v2618, 16
          %v2821 = vrot.slane %v2819, 7
          %v2822 = vor.u32 %v2818, %v2821
          %v2823 = vsel %vm277, %v2814, %v2822
          %v2824 = vrot.slane %v2822, 4
          %v2826 = vshrl.u32 %v2619, 16
          %v2828 = vrot.slane %v2826, 6
          %v2829 = vshll.u32 %v2619, 16
          %v2831 = vrot.slane %v2829, 7
          %v2832 = vor.u32 %v2828, %v2831
          %v2833 = vsel %vm277, %v2824, %v2832
          %v2834 = vrot.slane %v2832, 4
          %v2836 = vshrl.u32 %v2620, 16
          %v2838 = vrot.slane %v2836, 6
          %v2839 = vshll.u32 %v2620, 16
          %v2841 = vrot.slane %v2839, 7
          %v2842 = vor.u32 %v2838, %v2841
          %v2843 = vsel %vm277, %v2834, %v2842
          %v2844 = vrot.slane %v2842, 4
          %v2846 = vshrl.u32 %v2621, 16
          %v2848 = vrot.slane %v2846, 6
          %v2849 = vshll.u32 %v2621, 16
          %v2851 = vrot.slane %v2849, 7
          %v2852 = vor.u32 %v2848, %v2851
          %v2853 = vsel %vm277, %v2844, %v2852
          %v2854 = vrot.slane %v2852, 4
          %v2856 = vshrl.u32 %v2622, 16
          %v2858 = vrot.slane %v2856, 6
          %v2859 = vshll.u32 %v2622, 16
          %v2861 = vrot.slane %v2859, 7
          %v2862 = vor.u32 %v2858, %v2861
          %v2863 = vsel %vm277, %v2854, %v2862
          %v2864 = vrot.slane %v2862, 4
          %v2866 = vshrl.u32 %v2623, 16
          %v2868 = vrot.slane %v2866, 6
          %v2869 = vshll.u32 %v2623, 16
          %v2871 = vrot.slane %v2869, 7
          %v2872 = vor.u32 %v2868, %v2871
          %v2873 = vsel %vm277, %v2864, %v2872
          %v2874 = vrot.slane %v2872, 4
          %v2876 = vshrl.u32 %v2624, 16
          %v2878 = vrot.slane %v2876, 6
          %v2879 = vshll.u32 %v2624, 16
          %v2881 = vrot.slane %v2879, 7
          %v2882 = vor.u32 %v2878, %v2881
          %v2883 = vsel %vm277, %v2874, %v2882
          %v2884 = vrot.slane %v2882, 4
          %v2886 = vshrl.u32 %v2625, 16
          %v2888 = vrot.slane %v2886, 6
          %v2889 = vshll.u32 %v2625, 16
          %v2891 = vrot.slane %v2889, 7
          %v2892 = vor.u32 %v2888, %v2891
          %v2893 = vsel %vm277, %v2884, %v2892
          %v2894 = vrot.slane %v2892, 4
          %v2896 = vshrl.u32 %v2626, 16
          %v2898 = vrot.slane %v2896, 6
          %v2899 = vshll.u32 %v2626, 16
          %v2901 = vrot.slane %v2899, 7
          %v2902 = vor.u32 %v2898, %v2901
          %v2903 = vsel %vm277, %v2894, %v2902
          %v2904 = vrot.slane %v2902, 4
          %v2906 = vshrl.u32 %v2627, 16
          %v2908 = vrot.slane %v2906, 6
          %v2909 = vshll.u32 %v2627, 16
          %v2911 = vrot.slane %v2909, 7
          %v2912 = vor.u32 %v2908, %v2911
          %v2913 = vsel %vm277, %v2904, %v2912
          %v2914 = vrot.slane %v2912, 4
          %v2916 = vshrl.u32 %v2628, 16
          %v2918 = vrot.slane %v2916, 6
          %v2919 = vshll.u32 %v2628, 16
          %v2921 = vrot.slane %v2919, 7
          %v2922 = vor.u32 %v2918, %v2921
          %v2923 = vsel %vm277, %v2914, %v2922
          %v2924 = vrot.slane %v2922, 4
          %v2926 = vshrl.u32 %v2629, 16
          %v2928 = vrot.slane %v2926, 6
          %v2929 = vshll.u32 %v2629, 16
          %v2931 = vrot.slane %v2929, 7
          %v2932 = vor.u32 %v2928, %v2931
          %v2933 = vsel %vm277, %v2924, %v2932
          %v2934 = vrot.slane %v2932, 4
          %v2936 = vshrl.u32 %v2630, 16
          %v2938 = vrot.slane %v2936, 6
          %v2939 = vshll.u32 %v2630, 16
          %v2941 = vrot.slane %v2939, 7
          %v2942 = vor.u32 %v2938, %v2941
          %v2943 = vsel %vm277, %v2934, %v2942
          %v2944 = vrot.slane %v2942, 4
          %v2946 = vshrl.u32 %v2631, 16
          %v2948 = vrot.slane %v2946, 6
          %v2949 = vshll.u32 %v2631, 16
          %v2951 = vrot.slane %v2949, 7
          %v2952 = vor.u32 %v2948, %v2951
          %v2953 = vsel %vm277, %v2944, %v2952
          %v2954 = vrot.slane %v2952, 4
          %v2956 = vshrl.u32 %v2632, 16
          %v2958 = vrot.slane %v2956, 6
          %v2959 = vshll.u32 %v2632, 16
          %v2961 = vrot.slane %v2959, 7
          %v2962 = vor.u32 %v2958, %v2961
          %v2963 = vsel %vm277, %v2954, %v2962
          %v2964 = vrot.slane %v2962, 4
          %v2966 = vshrl.u32 %v2633, 16
          %v2968 = vrot.slane %v2966, 6
          %v2969 = vshll.u32 %v2633, 16
          %v2971 = vrot.slane %v2969, 7
          %v2972 = vor.u32 %v2968, %v2971
          %v2973 = vsel %vm277, %v2964, %v2972
          %v2974 = vrot.slane %v2972, 4
          %v2976 = vshrl.u32 %v2634, 16
          %v2978 = vrot.slane %v2976, 6
          %v2979 = vshll.u32 %v2634, 16
          %v2981 = vrot.slane %v2979, 7
          %v2982 = vor.u32 %v2978, %v2981
          %v2983 = vsel %vm277, %v2974, %v2982
          %v2984 = vrot.slane %v2982, 4
          %v2986 = vshrl.u32 %v2635, 16
          %v2988 = vrot.slane %v2986, 6
          %v2989 = vshll.u32 %v2635, 16
          %v2991 = vrot.slane %v2989, 7
          %v2992 = vor.u32 %v2988, %v2991
          %v2993 = vsel %vm277, %v2984, %v2992
          %v2994 = vrot.slane %v2992, 4
          %vm3032 = vcmask 519169
          %vm3033 = vmand %vm3032, %vm301
          %v3034 = vld [vmem:[#allocation3 + $0x8] sm:$0xe]
          %v3035 = vsel %vm3033, %v2643, %v3034
          %3036 = vst [vmem:[#allocation3 + $0x8] sm:$0xe] %v3035
          %vm3037 = vcmask 519168
          %3038 = vst.msk [vmem:[#allocation3 + $0xc] sm:$0xf] %vm3037, %v2653
          %3039 = vst.msk [vmem:[#allocation3 + $0x10] sm:$0xf] %vm3037, %v2663
          %3040 = vst.msk [vmem:[#allocation3 + $0x14] sm:$0xf] %vm3037, %v2673
          %3041 = vst.msk [vmem:[#allocation3 + $0x18] sm:$0xf] %vm3037, %v2683
          %3042 = vst.msk [vmem:[#allocation3 + $0x1c] sm:$0xf] %vm3037, %v2693
          %3043 = vst.msk [vmem:[#allocation3 + $0x20] sm:$0xf] %vm3037, %v2703
          %3044 = vst.msk [vmem:[#allocation3 + $0x24] sm:$0xf] %vm3037, %v2713
          %3045 = vst.msk [vmem:[#allocation3 + $0x28] sm:$0xf] %vm3037, %v2723
          %3046 = vst.msk [vmem:[#allocation3 + $0x2c] sm:$0xf] %vm3037, %v2733
          %3047 = vst.msk [vmem:[#allocation3 + $0x30] sm:$0xf] %vm3037, %v2743
          %3048 = vst.msk [vmem:[#allocation3 + $0x34] sm:$0xf] %vm3037, %v2753
          %3049 = vst.msk [vmem:[#allocation3 + $0x38] sm:$0xf] %vm3037, %v2763
          %3050 = vst.msk [vmem:[#allocation3 + $0x3c] sm:$0xf] %vm3037, %v2773
          %3051 = vst.msk [vmem:[#allocation3 + $0x40] sm:$0xf] %vm3037, %v2783
          %3052 = vst.msk [vmem:[#allocation3 + $0x44] sm:$0xf] %vm3037, %v2793
          %3053 = vst.msk [vmem:[#allocation3 + $0x48] sm:$0xf] %vm3037, %v2803
          %3054 = vst.msk [vmem:[#allocation3 + $0x4c] sm:$0xf] %vm3037, %v2813
          %3055 = vst.msk [vmem:[#allocation3 + $0x50] sm:$0xf] %vm3037, %v2823
          %3056 = vst.msk [vmem:[#allocation3 + $0x54] sm:$0xf] %vm3037, %v2833
          %3057 = vst.msk [vmem:[#allocation3 + $0x58] sm:$0xf] %vm3037, %v2843
          %3058 = vst.msk [vmem:[#allocation3 + $0x5c] sm:$0xf] %vm3037, %v2853
          %3059 = vst.msk [vmem:[#allocation3 + $0x60] sm:$0xf] %vm3037, %v2863
          %3060 = vst.msk [vmem:[#allocation3 + $0x64] sm:$0xf] %vm3037, %v2873
          %3061 = vst.msk [vmem:[#allocation3 + $0x68] sm:$0xf] %vm3037, %v2883
          %3062 = vst.msk [vmem:[#allocation3 + $0x6c] sm:$0xf] %vm3037, %v2893
          %3063 = vst.msk [vmem:[#allocation3 + $0x70] sm:$0xf] %vm3037, %v2903
          %3064 = vst.msk [vmem:[#allocation3 + $0x74] sm:$0xf] %vm3037, %v2913
          %3065 = vst.msk [vmem:[#allocation3 + $0x78] sm:$0xf] %vm3037, %v2923
          %3066 = vst.msk [vmem:[#allocation3 + $0x7c] sm:$0xf] %vm3037, %v2933
          %3067 = vst.msk [vmem:[#allocation3 + $0x80] sm:$0xf] %vm3037, %v2943
          %3068 = vst.msk [vmem:[#allocation3 + $0x84] sm:$0xf] %vm3037, %v2953
          %3069 = vst.msk [vmem:[#allocation3 + $0x88] sm:$0xf] %vm3037, %v2963
          %3070 = vst.msk [vmem:[#allocation3 + $0x8c] sm:$0xf] %vm3037, %v2973
          %3071 = vst.msk [vmem:[#allocation3 + $0x90] sm:$0xf] %vm3037, %v2983
          %3072 = vst.msk [vmem:[#allocation3 + $0x94] sm:$0xf] %vm3037, %v2993
          %vm3073 = vcmask 517120
          %vm3074 = vmand %vm3073, %vm275
          %v3075 = vld [vmem:[#allocation3 + $0x98] sm:$0x3]
          %v3076 = vsel %vm3074, %v2994, %v3075
          %3077 = vst [vmem:[#allocation3 + $0x98] sm:$0x3] %v3076
          %3078 = vst.msk [vmem:[#allocation3] sm:$0xf] %vm3037, 0
          %3079 = vst.msk [vmem:[#allocation3 + $0x4] sm:$0xf] %vm3037, 0
          %v3080 = vld [vmem:[#allocation3 + $0x8] sm:$0x3]
          %v3081 = vsel %vm3074, 0, %v3080
          %3082 = vst [vmem:[#allocation3 + $0x8] sm:$0x3] %v3081
          %v3083 = vld [vmem:[#allocation3 + $0x98] sm:$0xe]
          %v3084 = vsel %vm3033, 0, %v3083
          %3085 = vst [vmem:[#allocation3 + $0x98] sm:$0xe] %v3084
          %3086 = vst.msk [vmem:[#allocation3 + $0x9c] sm:$0xf] %vm3037, 0
          %vm3087 = vcmask 518144
          %3088 = vst.msk [vmem:[#allocation3 + $0xa0] sm:$0x7] %vm3087, 0
          %vm3089 = vcmask 518145
          %vm3090 = vmand %vm3089, %vm820
          %v3091 = vld [vmem:[#allocation3 + $0x10] sm:$0x6]
          %v3092 = vsel %vm3090, 0, %v3091
          %3093 = vst [vmem:[#allocation3 + $0x10] sm:$0x6] %v3092
          %vm3094 = vcmask 519170
          %vm3095 = vmand %vm3094, %vm825
          %v3096 = vld [vmem:[#allocation3 + $0x18] sm:$0xc]
          %v3097 = vsel %vm3095, 0, %v3096
          %3098 = vst [vmem:[#allocation3 + $0x18] sm:$0xc] %v3097
          %vm3099 = vcmask 519171
          %vm3100 = vmand %vm3099, %vm382
          %v3101 = vld [vmem:[#allocation3 + $0x20] sm:$0x8]
          %v3102 = vsel %vm3100, 0, %v3101
          %3103 = vst [vmem:[#allocation3 + $0x20] sm:$0x8] %v3102
          %vm3104 = vcmask 516096
          %vm3105 = vmand %vm3104, %vm396
          %v3106 = vld [vmem:[#allocation3 + $0x24] sm:$0x1]
          %v3107 = vsel %vm3105, 0, %v3106
          %3108 = vst [vmem:[#allocation3 + $0x24] sm:$0x1] %v3107
          %vm3109 = vmand %vm3073, %vm836
          %v3110 = vld [vmem:[#allocation3 + $0x2c] sm:$0x3]
          %v3111 = vsel %vm3109, 0, %v3110
          %3112 = vst [vmem:[#allocation3 + $0x2c] sm:$0x3] %v3111
          %v3113 = vld [vmem:[#allocation3 + $0x34] sm:$0x6]
          %v3114 = vsel %vm3090, 0, %v3113
          %3115 = vst [vmem:[#allocation3 + $0x34] sm:$0x6] %v3114
          %v3116 = vld [vmem:[#allocation3 + $0x3c] sm:$0xc]
          %v3117 = vsel %vm3095, 0, %v3116
          %3118 = vst [vmem:[#allocation3 + $0x3c] sm:$0xc] %v3117
          %v3119 = vld [vmem:[#allocation3 + $0x44] sm:$0x8]
          %v3120 = vsel %vm3100, 0, %v3119
          %3121 = vst [vmem:[#allocation3 + $0x44] sm:$0x8] %v3120
          %v3122 = vld [vmem:[#allocation3 + $0x48] sm:$0x1]
          %v3123 = vsel %vm3105, 0, %v3122
          %3124 = vst [vmem:[#allocation3 + $0x48] sm:$0x1] %v3123
          %v3125 = vld [vmem:[#allocation3 + $0x50] sm:$0x3]
          %v3126 = vsel %vm3109, 0, %v3125
          %3127 = vst [vmem:[#allocation3 + $0x50] sm:$0x3] %v3126
          %v3128 = vld [vmem:[#allocation3 + $0x58] sm:$0x6]
          %v3129 = vsel %vm3090, 0, %v3128
          %3130 = vst [vmem:[#allocation3 + $0x58] sm:$0x6] %v3129
          %v3131 = vld [vmem:[#allocation3 + $0x60] sm:$0xc]
          %v3132 = vsel %vm3095, 0, %v3131
          %3133 = vst [vmem:[#allocation3 + $0x60] sm:$0xc] %v3132
          %v3134 = vld [vmem:[#allocation3 + $0x68] sm:$0x8]
          %v3135 = vsel %vm3100, 0, %v3134
          %3136 = vst [vmem:[#allocation3 + $0x68] sm:$0x8] %v3135
          %v3137 = vld [vmem:[#allocation3 + $0x6c] sm:$0x1]
          %v3138 = vsel %vm3105, 0, %v3137
          %3139 = vst [vmem:[#allocation3 + $0x6c] sm:$0x1] %v3138
          %v3140 = vld [vmem:[#allocation3 + $0x74] sm:$0x3]
          %v3141 = vsel %vm3109, 0, %v3140
          %3142 = vst [vmem:[#allocation3 + $0x74] sm:$0x3] %v3141
          %v3143 = vld [vmem:[#allocation3 + $0x7c] sm:$0x6]
          %v3144 = vsel %vm3090, 0, %v3143
          %3145 = vst [vmem:[#allocation3 + $0x7c] sm:$0x6] %v3144
          %v3146 = vld [vmem:[#allocation3 + $0x84] sm:$0xc]
          %v3147 = vsel %vm3095, 0, %v3146
          %3148 = vst [vmem:[#allocation3 + $0x84] sm:$0xc] %v3147
          %v3149 = vld [vmem:[#allocation3 + $0x8c] sm:$0x8]
          %v3150 = vsel %vm3100, 0, %v3149
          %3151 = vst [vmem:[#allocation3 + $0x8c] sm:$0x8] %v3150
          %v3152 = vld [vmem:[#allocation3 + $0x90] sm:$0x1]
          %v3153 = vsel %vm3105, 0, %v3152
          %3154 = vst [vmem:[#allocation3 + $0x90] sm:$0x1] %v3153
          %v3155 = vld [vmem:[#allocation3 + $0x98] sm:$0x3]
          %v3156 = vsel %vm3109, 0, %v3155
          %3157 = vst [vmem:[#allocation3 + $0x98] sm:$0x3] %v3156
        $region44: #{tpu_custom_call.1} parent=39 // pred_fallthru
          _
        %v3158 = vld [vmem:[#allocation3] sm:$0xf]
        %v3159 = vld [vmem:[#allocation3 + $0x4] sm:$0xf]
        %v3160 = vld [vmem:[#allocation3 + $0x8] sm:$0xf]
        %v3161 = vld [vmem:[#allocation3 + $0xc] sm:$0xf]
        %v3162 = vld [vmem:[#allocation3 + $0x10] sm:$0xf]
        %v3163 = vld [vmem:[#allocation3 + $0x14] sm:$0xf]
        %v3164 = vld [vmem:[#allocation3 + $0x18] sm:$0xf]
        %v3165 = vld [vmem:[#allocation3 + $0x1c] sm:$0xf]
        %v3166 = vld [vmem:[#allocation3 + $0x20] sm:$0xf]
        %v3167 = vld [vmem:[#allocation3 + $0x24] sm:$0xf]
        %v3168 = vld [vmem:[#allocation3 + $0x28] sm:$0xf]
        %v3169 = vld [vmem:[#allocation3 + $0x2c] sm:$0xf]
        %v3170 = vld [vmem:[#allocation3 + $0x30] sm:$0xf]
        %v3171 = vld [vmem:[#allocation3 + $0x34] sm:$0xf]
        %v3172 = vld [vmem:[#allocation3 + $0x38] sm:$0xf]
        %v3173 = vld [vmem:[#allocation3 + $0x3c] sm:$0xf]
        %v3174 = vld [vmem:[#allocation3 + $0x40] sm:$0xf]
        %v3175 = vld [vmem:[#allocation3 + $0x44] sm:$0xf]
        %v3176 = vld [vmem:[#allocation3 + $0x48] sm:$0xf]
        %v3177 = vld [vmem:[#allocation3 + $0x4c] sm:$0xf]
        %v3178 = vld [vmem:[#allocation3 + $0x50] sm:$0xf]
        %v3179 = vld [vmem:[#allocation3 + $0x54] sm:$0xf]
        %v3180 = vld [vmem:[#allocation3 + $0x58] sm:$0xf]
        %v3181 = vld [vmem:[#allocation3 + $0x5c] sm:$0xf]
        %v3182 = vld [vmem:[#allocation3 + $0x60] sm:$0xf]
        %v3183 = vld [vmem:[#allocation3 + $0x64] sm:$0xf]
        %v3184 = vld [vmem:[#allocation3 + $0x68] sm:$0xf]
        %v3185 = vld [vmem:[#allocation3 + $0x6c] sm:$0xf]
        %v3186 = vld [vmem:[#allocation3 + $0x70] sm:$0xf]
        %v3187 = vld [vmem:[#allocation3 + $0x74] sm:$0xf]
        %v3188 = vld [vmem:[#allocation3 + $0x78] sm:$0xf]
        %v3189 = vld [vmem:[#allocation3 + $0x7c] sm:$0xf]
        %v3190 = vld [vmem:[#allocation3 + $0x80] sm:$0xf]
        %v3191 = vld [vmem:[#allocation3 + $0x84] sm:$0xf]
        %v3192 = vld [vmem:[#allocation3 + $0x88] sm:$0xf]
        %v3193 = vld [vmem:[#allocation3 + $0x8c] sm:$0xf]
        %v3194 = vld [vmem:[#allocation3 + $0x90] sm:$0x1]
        %v3195 = vld [vmem:[#allocation3] sm:$0xe]
        %v3232 = vunpack.c.l.b16 %v3158
        %v3233 = vunpack.c.l.b16 %v3159
        %v3234 = vunpack.c.l.b16 %v3160
        %v3235 = vunpack.c.l.b16 %v3161
        %v3236 = vunpack.c.l.b16 %v3162
        %v3237 = vunpack.c.l.b16 %v3163
        %v3238 = vunpack.c.l.b16 %v3164
        %v3239 = vunpack.c.l.b16 %v3165
        %v3240 = vunpack.c.l.b16 %v3166
        %v3241 = vunpack.c.l.b16 %v3167
        %v3242 = vunpack.c.l.b16 %v3168
        %v3243 = vunpack.c.l.b16 %v3169
        %v3244 = vunpack.c.l.b16 %v3170
        %v3245 = vunpack.c.l.b16 %v3171
        %v3246 = vunpack.c.l.b16 %v3172
        %v3247 = vunpack.c.l.b16 %v3173
        %v3248 = vunpack.c.l.b16 %v3174
        %v3249 = vunpack.c.l.b16 %v3175
        %v3250 = vunpack.c.l.b16 %v3176
        %v3251 = vunpack.c.l.b16 %v3177
        %v3252 = vunpack.c.l.b16 %v3178
        %v3253 = vunpack.c.l.b16 %v3179
        %v3254 = vunpack.c.l.b16 %v3180
        %v3255 = vunpack.c.l.b16 %v3181
        %v3256 = vunpack.c.l.b16 %v3182
        %v3257 = vunpack.c.l.b16 %v3183
        %v3258 = vunpack.c.l.b16 %v3184
        %v3259 = vunpack.c.l.b16 %v3185
        %v3260 = vunpack.c.l.b16 %v3186
        %v3261 = vunpack.c.l.b16 %v3187
        %v3262 = vunpack.c.l.b16 %v3188
        %v3263 = vunpack.c.l.b16 %v3189
        %v3264 = vunpack.c.l.b16 %v3190
        %v3265 = vunpack.c.l.b16 %v3191
        %v3266 = vunpack.c.l.b16 %v3192
        %v3267 = vunpack.c.l.b16 %v3193
        %v3268 = vpack.c.b16 %v3233, %v3232
        %v3269 = vpack.c.b16 %v3235, %v3234
        %v3270 = vpack.c.b16 %v3237, %v3236
        %v3271 = vpack.c.b16 %v3239, %v3238
        %v3272 = vpack.c.b16 %v3241, %v3240
        %v3273 = vpack.c.b16 %v3243, %v3242
        %v3274 = vpack.c.b16 %v3245, %v3244
        %v3275 = vpack.c.b16 %v3247, %v3246
        %v3276 = vpack.c.b16 %v3249, %v3248
        %v3277 = vpack.c.b16 %v3251, %v3250
        %v3278 = vpack.c.b16 %v3253, %v3252
        %v3279 = vpack.c.b16 %v3255, %v3254
        %v3280 = vpack.c.b16 %v3257, %v3256
        %v3281 = vpack.c.b16 %v3259, %v3258
        %v3282 = vpack.c.b16 %v3261, %v3260
        %v3283 = vpack.c.b16 %v3263, %v3262
        %v3284 = vpack.c.b16 %v3265, %v3264
        %v3285 = vpack.c.b16 %v3267, %v3266
        %v3287 = vunpack.c.l.b16 %v3194
        %v3288 = vpack.c.b16 %v3287, %v3287
        %vm3289 = vsmask.f32 7424
        %v3291 = vshrl.u32 %v3268, 16
        %v3293 = vshll.u32 %v3268, 16
        %v3295 = vrot.slane %v3293, 1
        %v3296 = vor.u32 %v3291, %v3295
        %v3298 = vshll.u32 %v3269, 16
        %v3300 = vrot.slane %v3298, 1
        %v3301 = vsel %vm3289, %v3296, %v3300
        %v3302 = vshrl.u32 %v3269, 16
        %v3304 = vor.u32 %v3302, %v3300
        %v3306 = vshll.u32 %v3270, 16
        %v3308 = vrot.slane %v3306, 1
        %v3309 = vsel %vm3289, %v3304, %v3308
        %v3310 = vshrl.u32 %v3270, 16
        %v3312 = vor.u32 %v3310, %v3308
        %v3314 = vshll.u32 %v3271, 16
        %v3316 = vrot.slane %v3314, 1
        %v3317 = vsel %vm3289, %v3312, %v3316
        %v3318 = vshrl.u32 %v3271, 16
        %v3320 = vor.u32 %v3318, %v3316
        %v3322 = vshll.u32 %v3272, 16
        %v3324 = vrot.slane %v3322, 1
        %v3325 = vsel %vm3289, %v3320, %v3324
        %v3326 = vshrl.u32 %v3272, 16
        %v3328 = vor.u32 %v3326, %v3324
        %v3330 = vshll.u32 %v3273, 16
        %v3332 = vrot.slane %v3330, 1
        %v3333 = vsel %vm3289, %v3328, %v3332
        %v3334 = vshrl.u32 %v3273, 16
        %v3336 = vor.u32 %v3334, %v3332
        %v3338 = vshll.u32 %v3274, 16
        %v3340 = vrot.slane %v3338, 1
        %v3341 = vsel %vm3289, %v3336, %v3340
        %v3342 = vshrl.u32 %v3274, 16
        %v3344 = vor.u32 %v3342, %v3340
        %v3346 = vshll.u32 %v3275, 16
        %v3348 = vrot.slane %v3346, 1
        %v3349 = vsel %vm3289, %v3344, %v3348
        %v3350 = vshrl.u32 %v3275, 16
        %v3352 = vor.u32 %v3350, %v3348
        %v3354 = vshll.u32 %v3276, 16
        %v3356 = vrot.slane %v3354, 1
        %v3357 = vsel %vm3289, %v3352, %v3356
        %v3358 = vshrl.u32 %v3276, 16
        %v3360 = vor.u32 %v3358, %v3356
        %v3362 = vshll.u32 %v3277, 16
        %v3364 = vrot.slane %v3362, 1
        %v3365 = vsel %vm3289, %v3360, %v3364
        %v3366 = vshrl.u32 %v3277, 16
        %v3368 = vor.u32 %v3366, %v3364
        %v3370 = vshll.u32 %v3278, 16
        %v3372 = vrot.slane %v3370, 1
        %v3373 = vsel %vm3289, %v3368, %v3372
        %v3374 = vshrl.u32 %v3278, 16
        %v3376 = vor.u32 %v3374, %v3372
        %v3378 = vshll.u32 %v3279, 16
        %v3380 = vrot.slane %v3378, 1
        %v3381 = vsel %vm3289, %v3376, %v3380
        %v3382 = vshrl.u32 %v3279, 16
        %v3384 = vor.u32 %v3382, %v3380
        %v3386 = vshll.u32 %v3280, 16
        %v3388 = vrot.slane %v3386, 1
        %v3389 = vsel %vm3289, %v3384, %v3388
        %v3390 = vshrl.u32 %v3280, 16
        %v3392 = vor.u32 %v3390, %v3388
        %v3394 = vshll.u32 %v3281, 16
        %v3396 = vrot.slane %v3394, 1
        %v3397 = vsel %vm3289, %v3392, %v3396
        %v3398 = vshrl.u32 %v3281, 16
        %v3400 = vor.u32 %v3398, %v3396
        %v3402 = vshll.u32 %v3282, 16
        %v3404 = vrot.slane %v3402, 1
        %v3405 = vsel %vm3289, %v3400, %v3404
        %v3406 = vshrl.u32 %v3282, 16
        %v3408 = vor.u32 %v3406, %v3404
        %v3410 = vshll.u32 %v3283, 16
        %v3412 = vrot.slane %v3410, 1
        %v3413 = vsel %vm3289, %v3408, %v3412
        %v3414 = vshrl.u32 %v3283, 16
        %v3416 = vor.u32 %v3414, %v3412
        %v3418 = vshll.u32 %v3284, 16
        %v3420 = vrot.slane %v3418, 1
        %v3421 = vsel %vm3289, %v3416, %v3420
        %v3422 = vshrl.u32 %v3284, 16
        %v3424 = vor.u32 %v3422, %v3420
        %v3426 = vshll.u32 %v3285, 16
        %v3428 = vrot.slane %v3426, 1
        %v3429 = vsel %vm3289, %v3424, %v3428
        %v3430 = vshrl.u32 %v3285, 16
        %v3432 = vor.u32 %v3430, %v3428
        %v3434 = vshll.u32 %v3288, 16
        %v3436 = vrot.slane %v3434, 1
        %v3437 = vsel %vm3289, %v3432, %v3436
        %3438 = vrot.lane.b32.xlu0 %v3301, 64
        %v3439 = vpop.permute.xlu0 %3438
        %3440 = vrot.lane.b32.xlu0 %v3309, 64
        %v3441 = vpop.permute.xlu0 %3440
        %3442 = vrot.lane.b32.xlu0 %v3317, 64
        %v3443 = vpop.permute.xlu0 %3442
        %3444 = vrot.lane.b32.xlu0 %v3325, 64
        %v3445 = vpop.permute.xlu0 %3444
        %3446 = vrot.lane.b32.xlu0 %v3333, 64
        %v3447 = vpop.permute.xlu0 %3446
        %3448 = vrot.lane.b32.xlu0 %v3341, 64
        %v3449 = vpop.permute.xlu0 %3448
        %3450 = vrot.lane.b32.xlu0 %v3349, 64
        %v3451 = vpop.permute.xlu0 %3450
        %3452 = vrot.lane.b32.xlu0 %v3357, 64
        %v3453 = vpop.permute.xlu0 %3452
        %3454 = vrot.lane.b32.xlu0 %v3365, 64
        %v3455 = vpop.permute.xlu0 %3454
        %3456 = vrot.lane.b32.xlu0 %v3373, 64
        %v3457 = vpop.permute.xlu0 %3456
        %3458 = vrot.lane.b32.xlu0 %v3381, 64
        %v3459 = vpop.permute.xlu0 %3458
        %3460 = vrot.lane.b32.xlu0 %v3389, 64
        %v3461 = vpop.permute.xlu0 %3460
        %3462 = vrot.lane.b32.xlu0 %v3397, 64
        %v3463 = vpop.permute.xlu0 %3462
        %3464 = vrot.lane.b32.xlu0 %v3405, 64
        %v3465 = vpop.permute.xlu0 %3464
        %3466 = vrot.lane.b32.xlu0 %v3413, 64
        %v3467 = vpop.permute.xlu0 %3466
        %3468 = vrot.lane.b32.xlu0 %v3421, 64
        %v3469 = vpop.permute.xlu0 %3468
        %3470 = vrot.lane.b32.xlu0 %v3429, 64
        %v3471 = vpop.permute.xlu0 %3470
        %3472 = vrot.lane.b32.xlu0 %v3437, 64
        %v3473 = vpop.permute.xlu0 %3472
        %v3475 = vunpack.c.l.b16 %v3195
        %v3476 = vpack.c.b16 %v3233, %v3475
        %vm3477 = vcmask 1046528
        %v3478 = vrot.slane %v3476, 1
        %v3479 = vrot.slane %v3269, 1
        %v3480 = vsel %vm3477, %v3478, %v3479
        %v3481 = vrot.slane %v3270, 1
        %v3482 = vsel %vm3477, %v3479, %v3481
        %v3483 = vrot.slane %v3271, 1
        %v3484 = vsel %vm3477, %v3481, %v3483
        %v3485 = vrot.slane %v3272, 1
        %v3486 = vsel %vm3477, %v3483, %v3485
        %v3487 = vrot.slane %v3273, 1
        %v3488 = vsel %vm3477, %v3485, %v3487
        %v3489 = vrot.slane %v3274, 1
        %v3490 = vsel %vm3477, %v3487, %v3489
        %v3491 = vrot.slane %v3275, 1
        %v3492 = vsel %vm3477, %v3489, %v3491
        %v3493 = vrot.slane %v3276, 1
        %v3494 = vsel %vm3477, %v3491, %v3493
        %v3495 = vrot.slane %v3277, 1
        %v3496 = vsel %vm3477, %v3493, %v3495
        %v3497 = vrot.slane %v3278, 1
        %v3498 = vsel %vm3477, %v3495, %v3497
        %v3499 = vrot.slane %v3279, 1
        %v3500 = vsel %vm3477, %v3497, %v3499
        %v3501 = vrot.slane %v3280, 1
        %v3502 = vsel %vm3477, %v3499, %v3501
        %v3503 = vrot.slane %v3281, 1
        %v3504 = vsel %vm3477, %v3501, %v3503
        %v3505 = vrot.slane %v3282, 1
        %v3506 = vsel %vm3477, %v3503, %v3505
        %v3507 = vrot.slane %v3283, 1
        %v3508 = vsel %vm3477, %v3505, %v3507
        %v3509 = vrot.slane %v3284, 1
        %v3510 = vsel %vm3477, %v3507, %v3509
        %v3511 = vrot.slane %v3285, 1
        %v3512 = vsel %vm3477, %v3509, %v3511
        %v3513 = vrot.slane %v3288, 1
        %v3514 = vsel %vm3477, %v3511, %v3513
        %vm3515 = vcmask 523264
        %v3517 = vsel %vm3515, %v3268, %v3439
        %v3520 = vsel %vm3515, %v3269, %v3441
        %v3523 = vsel %vm3515, %v3270, %v3443
        %v3526 = vsel %vm3515, %v3271, %v3445
        %v3529 = vsel %vm3515, %v3272, %v3447
        %v3532 = vsel %vm3515, %v3273, %v3449
        %v3535 = vsel %vm3515, %v3274, %v3451
        %v3538 = vsel %vm3515, %v3275, %v3453
        %v3541 = vsel %vm3515, %v3276, %v3455
        %v3544 = vsel %vm3515, %v3277, %v3457
        %v3547 = vsel %vm3515, %v3278, %v3459
        %v3550 = vsel %vm3515, %v3279, %v3461
        %v3553 = vsel %vm3515, %v3280, %v3463
        %v3556 = vsel %vm3515, %v3281, %v3465
        %v3559 = vsel %vm3515, %v3282, %v3467
        %v3562 = vsel %vm3515, %v3283, %v3469
        %v3565 = vsel %vm3515, %v3284, %v3471
        %v3568 = vsel %vm3515, %v3285, %v3473
        %v3570 = vld [vmem:[%s264] sm:$0xf]
        %v3571 = vld [vmem:[%s264 + $0x4] sm:$0xf]
        %v3572 = vld [vmem:[%s264 + $0x8] sm:$0xf]
        %v3573 = vld [vmem:[%s264 + $0xc] sm:$0xf]
        %v3574 = vld [vmem:[%s264 + $0x10] sm:$0xf]
        %v3575 = vld [vmem:[%s264 + $0x14] sm:$0xf]
        %v3576 = vld [vmem:[%s264 + $0x18] sm:$0xf]
        %v3577 = vld [vmem:[%s264 + $0x1c] sm:$0xf]
        %v3578 = vld [vmem:[%s264 + $0x20] sm:$0xf]
        %v3579 = vld [vmem:[%s264 + $0x24] sm:$0xf]
        %v3580 = vld [vmem:[%s264 + $0x28] sm:$0xf]
        %v3581 = vld [vmem:[%s264 + $0x2c] sm:$0xf]
        %v3582 = vld [vmem:[%s264 + $0x30] sm:$0xf]
        %v3583 = vld [vmem:[%s264 + $0x34] sm:$0xf]
        %v3584 = vld [vmem:[%s264 + $0x38] sm:$0xf]
        %v3585 = vld [vmem:[%s264 + $0x3c] sm:$0xf]
        %v3586 = vld [vmem:[%s264 + $0x40] sm:$0xf]
        %v3587 = vld [vmem:[%s264 + $0x44] sm:$0xf]
        %v3588 = vld [vmem:[%s264 + $0x48] sm:$0xf]
        %v3589 = vld [vmem:[%s264 + $0x4c] sm:$0xf]
        %v3590 = vld [vmem:[%s264 + $0x50] sm:$0xf]
        %v3591 = vld [vmem:[%s264 + $0x54] sm:$0xf]
        %v3592 = vld [vmem:[%s264 + $0x58] sm:$0xf]
        %v3593 = vld [vmem:[%s264 + $0x5c] sm:$0xf]
        %v3594 = vld [vmem:[#allocation3 + $0x8] sm:$0xe]
        %v3595 = vld [vmem:[#allocation3 + $0x90] sm:$0xf]
        %v3596 = vld [vmem:[#allocation3 + $0x94] sm:$0xf]
        %v3597 = vld [vmem:[#allocation3 + $0x98] sm:$0x1]
        %v3598 = vld [vmem:[#allocation3 + $0x98] sm:$0x3]
        %v3599 = vld [vmem:[#allocation3 + $0x8] sm:$0xc]
        %v3604 = vunpack.c.l.b16 %v3594
        %v3605 = vunpack.c.l.b16 %v3595
        %v3606 = vunpack.c.l.b16 %v3596
        %v3607 = vunpack.c.l.b16 %v3597
        %v3608 = vpack.c.b16 %v3235, %v3604
        %v3609 = vpack.c.b16 %v3606, %v3605
        %v3610 = vpack.c.b16 %v3607, %v3607
        %v3612 = vunpack.c.l.b16 %v3598
        %v3613 = vpack.c.b16 %v3612, %v3612
        %v3615 = vshrl.u32 %v3608, 16
        %v3617 = vshll.u32 %v3608, 16
        %v3619 = vrot.slane %v3617, 1
        %v3620 = vor.u32 %v3615, %v3619
        %v3621 = vsel %vm3289, %v3620, %v3308
        %v3623 = vshll.u32 %v3609, 16
        %v3625 = vrot.slane %v3623, 1
        %v3626 = vsel %vm3289, %v3432, %v3625
        %v3627 = vshrl.u32 %v3609, 16
        %v3629 = vor.u32 %v3627, %v3625
        %v3631 = vshll.u32 %v3613, 16
        %v3633 = vrot.slane %v3631, 1
        %v3634 = vsel %vm3289, %v3629, %v3633
        %v3635 = vshrl.u32 %v3613, 16
        %v3637 = vor.u32 %v3635, %v3633
        %3638 = vrot.lane.b32.xlu0 %v3621, 64
        %v3639 = vpop.permute.xlu0 %3638
        %3640 = vrot.lane.b32.xlu0 %v3626, 64
        %v3641 = vpop.permute.xlu0 %3640
        %3642 = vrot.lane.b32.xlu0 %v3634, 64
        %v3643 = vpop.permute.xlu0 %3642
        %3644 = vrot.lane.b32.xlu0 %v3637, 64
        %v3645 = vpop.permute.xlu0 %3644
        %v3647 = vunpack.c.l.b16 %v3599
        %v3648 = vpack.c.b16 %v3235, %v3647
        %v3649 = vrot.slane %v3648, 1
        %v3650 = vsel %vm3477, %v3649, %v3481
        %v3651 = vrot.slane %v3609, 1
        %v3652 = vsel %vm3477, %v3511, %v3651
        %v3653 = vrot.slane %v3613, 1
        %v3654 = vsel %vm3477, %v3651, %v3653
        %v3656 = vsel %vm3515, %v3608, %v3639
        %v3658 = vsel %vm3515, %v3285, %v3641
        %v3660 = vsel %vm3515, %v3609, %v3643
        %v3663 = vsel %vm3515, %v3610, %v3645
        %s3664 = scalar_lea.vmem %s264, 96
        %v3665 = vld [vmem:[%s3664] sm:$0xf]
        %v3666 = vld [vmem:[%s3664 + $0x4] sm:$0xf]
        %v3667 = vld [vmem:[%s3664 + $0x8] sm:$0xf]
        %v3668 = vld [vmem:[%s3664 + $0xc] sm:$0xf]
        %v3669 = vld [vmem:[%s3664 + $0x10] sm:$0xf]
        %v3670 = vld [vmem:[%s3664 + $0x14] sm:$0xf]
        %v3671 = vld [vmem:[%s3664 + $0x18] sm:$0xf]
        %v3672 = vld [vmem:[%s3664 + $0x1c] sm:$0xf]
        %v3673 = vld [vmem:[%s3664 + $0x20] sm:$0xf]
        %v3674 = vld [vmem:[%s3664 + $0x24] sm:$0xf]
        %v3675 = vld [vmem:[%s3664 + $0x28] sm:$0xf]
        %v3676 = vld [vmem:[%s3664 + $0x2c] sm:$0xf]
        %v3677 = vld [vmem:[%s3664 + $0x30] sm:$0xf]
        %v3678 = vld [vmem:[%s3664 + $0x34] sm:$0xf]
        %v3679 = vld [vmem:[%s3664 + $0x38] sm:$0xf]
        %v3680 = vld [vmem:[%s3664 + $0x3c] sm:$0xf]
        %v3681 = vld [vmem:[%s3664 + $0x40] sm:$0xf]
        %v3682 = vld [vmem:[%s3664 + $0x44] sm:$0xf]
        %v3683 = vld [vmem:[%s3664 + $0x48] sm:$0xf]
        %v3684 = vld [vmem:[%s3664 + $0x4c] sm:$0xf]
        %v3685 = vld [vmem:[%s3664 + $0x50] sm:$0xf]
        %v3686 = vld [vmem:[%s3664 + $0x54] sm:$0xf]
        %v3687 = vld [vmem:[%s3664 + $0x58] sm:$0xf]
        %v3688 = vld [vmem:[%s3664 + $0x5c] sm:$0xf]
        %v3708 = vrot.slane %v3656, 1
        %v3709 = vrot.slane %v3523, 1
        %v3710 = vsel %vm3477, %v3708, %v3709
        %v3711 = vrot.slane %v3650, 1
        %v3712 = vrot.slane %v3484, 1
        %v3713 = vsel %vm3477, %v3711, %v3712
        %v3714 = vrot.slane %v3526, 1
        %v3715 = vsel %vm3477, %v3709, %v3714
        %v3716 = vrot.slane %v3486, 1
        %v3717 = vsel %vm3477, %v3712, %v3716
        %v3718 = vrot.slane %v3529, 1
        %v3719 = vsel %vm3477, %v3714, %v3718
        %v3720 = vrot.slane %v3488, 1
        %v3721 = vsel %vm3477, %v3716, %v3720
        %v3722 = vrot.slane %v3532, 1
        %v3723 = vsel %vm3477, %v3718, %v3722
        %v3724 = vrot.slane %v3490, 1
        %v3725 = vsel %vm3477, %v3720, %v3724
        %v3726 = vrot.slane %v3535, 1
        %v3727 = vsel %vm3477, %v3722, %v3726
        %v3728 = vrot.slane %v3492, 1
        %v3729 = vsel %vm3477, %v3724, %v3728
        %v3730 = vrot.slane %v3538, 1
        %v3731 = vsel %vm3477, %v3726, %v3730
        %v3732 = vrot.slane %v3494, 1
        %v3733 = vsel %vm3477, %v3728, %v3732
        %v3734 = vrot.slane %v3541, 1
        %v3735 = vsel %vm3477, %v3730, %v3734
        %v3736 = vrot.slane %v3496, 1
        %v3737 = vsel %vm3477, %v3732, %v3736
        %v3738 = vrot.slane %v3544, 1
        %v3739 = vsel %vm3477, %v3734, %v3738
        %v3740 = vrot.slane %v3498, 1
        %v3741 = vsel %vm3477, %v3736, %v3740
        %v3742 = vrot.slane %v3547, 1
        %v3743 = vsel %vm3477, %v3738, %v3742
        %v3744 = vrot.slane %v3500, 1
        %v3745 = vsel %vm3477, %v3740, %v3744
        %v3746 = vrot.slane %v3550, 1
        %v3747 = vsel %vm3477, %v3742, %v3746
        %v3748 = vrot.slane %v3502, 1
        %v3749 = vsel %vm3477, %v3744, %v3748
        %v3750 = vrot.slane %v3553, 1
        %v3751 = vsel %vm3477, %v3746, %v3750
        %v3752 = vrot.slane %v3504, 1
        %v3753 = vsel %vm3477, %v3748, %v3752
        %v3754 = vrot.slane %v3556, 1
        %v3755 = vsel %vm3477, %v3750, %v3754
        %v3756 = vrot.slane %v3506, 1
        %v3757 = vsel %vm3477, %v3752, %v3756
        %v3758 = vrot.slane %v3559, 1
        %v3759 = vsel %vm3477, %v3754, %v3758
        %v3760 = vrot.slane %v3508, 1
        %v3761 = vsel %vm3477, %v3756, %v3760
        %v3762 = vrot.slane %v3562, 1
        %v3763 = vsel %vm3477, %v3758, %v3762
        %v3764 = vrot.slane %v3510, 1
        %v3765 = vsel %vm3477, %v3760, %v3764
        %v3766 = vrot.slane %v3565, 1
        %v3767 = vsel %vm3477, %v3762, %v3766
        %v3768 = vrot.slane %v3512, 1
        %v3769 = vsel %vm3477, %v3764, %v3768
        %v3770 = vrot.slane %v3658, 1
        %v3771 = vsel %vm3477, %v3766, %v3770
        %v3772 = vrot.slane %v3652, 1
        %v3773 = vsel %vm3477, %v3768, %v3772
        %v3774 = vrot.slane %v3660, 1
        %v3775 = vsel %vm3477, %v3770, %v3774
        %v3776 = vrot.slane %v3654, 1
        %v3777 = vsel %vm3477, %v3772, %v3776
        %v3778 = vrot.slane %v3663, 1
        %v3779 = vsel %vm3477, %v3774, %v3778
        %v3780 = vrot.slane %v3653, 1
        %v3781 = vsel %vm3477, %v3776, %v3780
        %v3824 = vunpack.c.l.b16 %v3665
        %v3825 = vunpack.c.l.b16 %v3666
        %v3826 = vunpack.c.l.b16 %v3667
        %v3827 = vunpack.c.l.b16 %v3668
        %v3828 = vunpack.c.l.b16 %v3669
        %v3829 = vunpack.c.l.b16 %v3670
        %v3830 = vunpack.c.l.b16 %v3671
        %v3831 = vunpack.c.l.b16 %v3672
        %v3832 = vunpack.c.l.b16 %v3673
        %v3833 = vunpack.c.l.b16 %v3674
        %v3834 = vunpack.c.l.b16 %v3675
        %v3835 = vunpack.c.l.b16 %v3676
        %v3836 = vunpack.c.l.b16 %v3677
        %v3837 = vunpack.c.l.b16 %v3678
        %v3838 = vunpack.c.l.b16 %v3679
        %v3839 = vunpack.c.l.b16 %v3680
        %v3840 = vunpack.c.l.b16 %v3681
        %v3841 = vunpack.c.l.b16 %v3682
        %v3842 = vunpack.c.l.b16 %v3683
        %v3843 = vunpack.c.l.b16 %v3684
        %v3844 = vunpack.c.l.b16 %v3685
        %v3845 = vunpack.c.l.b16 %v3686
        %v3846 = vunpack.c.l.b16 %v3687
        %v3847 = vunpack.c.l.b16 %v3688
        %v3848 = vpack.c.b16 %v3825, %v3824
        %v3849 = vpack.c.b16 %v3827, %v3826
        %v3850 = vpack.c.b16 %v3829, %v3828
        %v3851 = vpack.c.b16 %v3831, %v3830
        %v3852 = vpack.c.b16 %v3833, %v3832
        %v3853 = vpack.c.b16 %v3835, %v3834
        %v3854 = vpack.c.b16 %v3837, %v3836
        %v3855 = vpack.c.b16 %v3839, %v3838
        %v3856 = vpack.c.b16 %v3841, %v3840
        %v3857 = vpack.c.b16 %v3843, %v3842
        %v3858 = vpack.c.b16 %v3845, %v3844
        %v3859 = vpack.c.b16 %v3847, %v3846
        %v3873 = vsel %vm3515, %v3713, 0
        %v3876 = vsel %vm3515, %v3717, 0
        %v3879 = vsel %vm3515, %v3721, 0
        %v3882 = vsel %vm3515, %v3725, 0
        %v3885 = vsel %vm3515, %v3729, 0
        %v3888 = vsel %vm3515, %v3733, 0
        %v3891 = vsel %vm3515, %v3737, 0
        %v3894 = vsel %vm3515, %v3741, 0
        %v3897 = vsel %vm3515, %v3745, 0
        %v3900 = vsel %vm3515, %v3749, 0
        %v3903 = vsel %vm3515, %v3753, 0
        %v3906 = vsel %vm3515, %v3757, 0
        %v3909 = vsel %vm3515, %v3761, 0
        %v3912 = vsel %vm3515, %v3765, 0
        %v3915 = vsel %vm3515, %v3769, 0
        %v3918 = vsel %vm3515, %v3773, 0
        %v3921 = vsel %vm3515, %v3777, 0
        %v3924 = vsel %vm3515, %v3781, 0
        %3926 = vmatpush.bf16.msra.mxu0 %v3855
        %3927 = vmatpush.bf16.msra.mxu0 %v3854
        %3928 = vmatpush.bf16.msra.mxu0 %v3853
        %3929 = vmatpush.bf16.msra.mxu0 %v3852
        %3930 = vmatpush.bf16.msra.mxu0 %v3851
        %3931 = vmatpush.bf16.msra.mxu0 %v3850
        %3932 = vmatpush.bf16.msra.mxu0 %v3849
        %3933 = vmatpush.bf16.msra.mxu0 %v3848
        %3934 = vmatmul.bf16.gmra.mxu0 %v3710
        %v3935 = vpop.f32.mrf.mxu0
        %v3936 = vadd.f32 0.0, %v3935
        %v3937 = vpop.f32.mrf.mxu0
        %v3938 = vadd.f32 0.0, %v3937
        %3939 = vmatmul.bf16.gmra.mxu0 %v3715
        %v3940 = vpop.f32.mrf.mxu0
        %v3941 = vadd.f32 0.0, %v3940
        %v3942 = vpop.f32.mrf.mxu0
        %v3943 = vadd.f32 0.0, %v3942
        %3944 = vmatmul.bf16.gmra.mxu0 %v3719
        %v3945 = vpop.f32.mrf.mxu0
        %v3946 = vadd.f32 0.0, %v3945
        %v3947 = vpop.f32.mrf.mxu0
        %v3948 = vadd.f32 0.0, %v3947
        %3949 = vmatmul.bf16.gmra.mxu0 %v3723
        %v3950 = vpop.f32.mrf.mxu0
        %v3951 = vadd.f32 0.0, %v3950
        %v3952 = vpop.f32.mrf.mxu0
        %v3953 = vadd.f32 0.0, %v3952
        %3954 = vmatmul.bf16.gmra.mxu0 %v3727
        %v3955 = vpop.f32.mrf.mxu0
        %v3956 = vadd.f32 0.0, %v3955
        %v3957 = vpop.f32.mrf.mxu0
        %v3958 = vadd.f32 0.0, %v3957
        %3959 = vmatmul.bf16.gmra.mxu0 %v3731
        %v3960 = vpop.f32.mrf.mxu0
        %v3961 = vadd.f32 0.0, %v3960
        %v3962 = vpop.f32.mrf.mxu0
        %v3963 = vadd.f32 0.0, %v3962
        %3964 = vmatmul.bf16.gmra.mxu0 %v3735
        %v3965 = vpop.f32.mrf.mxu0
        %v3966 = vadd.f32 0.0, %v3965
        %v3967 = vpop.f32.mrf.mxu0
        %v3968 = vadd.f32 0.0, %v3967
        %3969 = vmatmul.bf16.gmra.mxu0 %v3739
        %v3970 = vpop.f32.mrf.mxu0
        %v3971 = vadd.f32 0.0, %v3970
        %v3972 = vpop.f32.mrf.mxu0
        %v3973 = vadd.f32 0.0, %v3972
        %3974 = vmatmul.bf16.gmra.mxu0 %v3743
        %v3975 = vpop.f32.mrf.mxu0
        %v3976 = vadd.f32 0.0, %v3975
        %v3977 = vpop.f32.mrf.mxu0
        %v3978 = vadd.f32 0.0, %v3977
        %3979 = vmatmul.bf16.gmra.mxu0 %v3747
        %v3980 = vpop.f32.mrf.mxu0
        %v3981 = vadd.f32 0.0, %v3980
        %v3982 = vpop.f32.mrf.mxu0
        %v3983 = vadd.f32 0.0, %v3982
        %3984 = vmatmul.bf16.gmra.mxu0 %v3751
        %v3985 = vpop.f32.mrf.mxu0
        %v3986 = vadd.f32 0.0, %v3985
        %v3987 = vpop.f32.mrf.mxu0
        %v3988 = vadd.f32 0.0, %v3987
        %3989 = vmatmul.bf16.gmra.mxu0 %v3755
        %v3990 = vpop.f32.mrf.mxu0
        %v3991 = vadd.f32 0.0, %v3990
        %v3992 = vpop.f32.mrf.mxu0
        %v3993 = vadd.f32 0.0, %v3992
        %3994 = vmatmul.bf16.gmra.mxu0 %v3759
        %v3995 = vpop.f32.mrf.mxu0
        %v3996 = vadd.f32 0.0, %v3995
        %v3997 = vpop.f32.mrf.mxu0
        %v3998 = vadd.f32 0.0, %v3997
        %3999 = vmatmul.bf16.gmra.mxu0 %v3763
        %v4000 = vpop.f32.mrf.mxu0
        %v4001 = vadd.f32 0.0, %v4000
        %v4002 = vpop.f32.mrf.mxu0
        %v4003 = vadd.f32 0.0, %v4002
        %4004 = vmatmul.bf16.gmra.mxu0 %v3767
        %v4005 = vpop.f32.mrf.mxu0
        %v4006 = vadd.f32 0.0, %v4005
        %v4007 = vpop.f32.mrf.mxu0
        %v4008 = vadd.f32 0.0, %v4007
        %4009 = vmatmul.bf16.gmra.mxu0 %v3771
        %v4010 = vpop.f32.mrf.mxu0
        %v4011 = vadd.f32 0.0, %v4010
        %v4012 = vpop.f32.mrf.mxu0
        %v4013 = vadd.f32 0.0, %v4012
        %4014 = vmatmul.bf16.gmra.mxu0 %v3775
        %v4015 = vpop.f32.mrf.mxu0
        %v4016 = vadd.f32 0.0, %v4015
        %v4017 = vpop.f32.mrf.mxu0
        %v4018 = vadd.f32 0.0, %v4017
        %4019 = vmatmul.bf16.gmra.mxu0 %v3779
        %v4020 = vpop.f32.mrf.mxu0
        %v4021 = vadd.f32 0.0, %v4020
        %v4022 = vpop.f32.mrf.mxu0
        %v4023 = vadd.f32 0.0, %v4022
        %4024 = vdwg.mxu0
        %4025 = vmatpush.bf16.msra.mxu0 0
        %4026 = vmatpush.bf16.msra.mxu0 0
        %4027 = vmatpush.bf16.msra.mxu0 0
        %4028 = vmatpush.bf16.msra.mxu0 0
        %4029 = vmatpush.bf16.msra.mxu0 %v3859
        %4030 = vmatpush.bf16.msra.mxu0 %v3858
        %4031 = vmatpush.bf16.msra.mxu0 %v3857
        %4032 = vmatpush.bf16.msra.mxu0 %v3856
        %4033 = vmatmul.bf16.gmra.mxu0 %v3873
        %v4034 = vpop.f32.mrf.mxu0
        %v4035 = vadd.f32 %v3936, %v4034
        %v4036 = vpop.f32.mrf.mxu0
        %v4037 = vadd.f32 %v3938, %v4036
        %4038 = vmatmul.bf16.gmra.mxu0 %v3876
        %v4039 = vpop.f32.mrf.mxu0
        %v4040 = vadd.f32 %v3941, %v4039
        %v4041 = vpop.f32.mrf.mxu0
        %v4042 = vadd.f32 %v3943, %v4041
        %4043 = vmatmul.bf16.gmra.mxu0 %v3879
        %v4044 = vpop.f32.mrf.mxu0
        %v4045 = vadd.f32 %v3946, %v4044
        %v4046 = vpop.f32.mrf.mxu0
        %v4047 = vadd.f32 %v3948, %v4046
        %4048 = vmatmul.bf16.gmra.mxu0 %v3882
        %v4049 = vpop.f32.mrf.mxu0
        %v4050 = vadd.f32 %v3951, %v4049
        %v4051 = vpop.f32.mrf.mxu0
        %v4052 = vadd.f32 %v3953, %v4051
        %4053 = vmatmul.bf16.gmra.mxu0 %v3885
        %v4054 = vpop.f32.mrf.mxu0
        %v4055 = vadd.f32 %v3956, %v4054
        %v4056 = vpop.f32.mrf.mxu0
        %v4057 = vadd.f32 %v3958, %v4056
        %4058 = vmatmul.bf16.gmra.mxu0 %v3888
        %v4059 = vpop.f32.mrf.mxu0
        %v4060 = vadd.f32 %v3961, %v4059
        %v4061 = vpop.f32.mrf.mxu0
        %v4062 = vadd.f32 %v3963, %v4061
        %4063 = vmatmul.bf16.gmra.mxu0 %v3891
        %v4064 = vpop.f32.mrf.mxu0
        %v4065 = vadd.f32 %v3966, %v4064
        %v4066 = vpop.f32.mrf.mxu0
        %v4067 = vadd.f32 %v3968, %v4066
        %4068 = vmatmul.bf16.gmra.mxu0 %v3894
        %v4069 = vpop.f32.mrf.mxu0
        %v4070 = vadd.f32 %v3971, %v4069
        %v4071 = vpop.f32.mrf.mxu0
        %v4072 = vadd.f32 %v3973, %v4071
        %4073 = vmatmul.bf16.gmra.mxu0 %v3897
        %v4074 = vpop.f32.mrf.mxu0
        %v4075 = vadd.f32 %v3976, %v4074
        %v4076 = vpop.f32.mrf.mxu0
        %v4077 = vadd.f32 %v3978, %v4076
        %4078 = vmatmul.bf16.gmra.mxu0 %v3900
        %v4079 = vpop.f32.mrf.mxu0
        %v4080 = vadd.f32 %v3981, %v4079
        %v4081 = vpop.f32.mrf.mxu0
        %v4082 = vadd.f32 %v3983, %v4081
        %4083 = vmatmul.bf16.gmra.mxu0 %v3903
        %v4084 = vpop.f32.mrf.mxu0
        %v4085 = vadd.f32 %v3986, %v4084
        %v4086 = vpop.f32.mrf.mxu0
        %v4087 = vadd.f32 %v3988, %v4086
        %4088 = vmatmul.bf16.gmra.mxu0 %v3906
        %v4089 = vpop.f32.mrf.mxu0
        %v4090 = vadd.f32 %v3991, %v4089
        %v4091 = vpop.f32.mrf.mxu0
        %v4092 = vadd.f32 %v3993, %v4091
        %4093 = vmatmul.bf16.gmra.mxu0 %v3909
        %v4094 = vpop.f32.mrf.mxu0
        %v4095 = vadd.f32 %v3996, %v4094
        %v4096 = vpop.f32.mrf.mxu0
        %v4097 = vadd.f32 %v3998, %v4096
        %4098 = vmatmul.bf16.gmra.mxu0 %v3912
        %v4099 = vpop.f32.mrf.mxu0
        %v4100 = vadd.f32 %v4001, %v4099
        %v4101 = vpop.f32.mrf.mxu0
        %v4102 = vadd.f32 %v4003, %v4101
        %4103 = vmatmul.bf16.gmra.mxu0 %v3915
        %v4104 = vpop.f32.mrf.mxu0
        %v4105 = vadd.f32 %v4006, %v4104
        %v4106 = vpop.f32.mrf.mxu0
        %v4107 = vadd.f32 %v4008, %v4106
        %4108 = vmatmul.bf16.gmra.mxu0 %v3918
        %v4109 = vpop.f32.mrf.mxu0
        %v4110 = vadd.f32 %v4011, %v4109
        %v4111 = vpop.f32.mrf.mxu0
        %v4112 = vadd.f32 %v4013, %v4111
        %4113 = vmatmul.bf16.gmra.mxu0 %v3921
        %v4114 = vpop.f32.mrf.mxu0
        %v4115 = vadd.f32 %v4016, %v4114
        %v4116 = vpop.f32.mrf.mxu0
        %v4117 = vadd.f32 %v4018, %v4116
        %4118 = vmatmul.bf16.gmra.mxu0 %v3924
        %v4119 = vpop.f32.mrf.mxu0
        %v4120 = vadd.f32 %v4021, %v4119
        %v4121 = vpop.f32.mrf.mxu0
        %v4122 = vadd.f32 %v4023, %v4121
        %4123 = vdwg.mxu0
        %v4148 = vunpack.c.l.b16 %v3570
        %v4149 = vunpack.c.l.b16 %v3571
        %v4150 = vunpack.c.l.b16 %v3572
        %v4151 = vunpack.c.l.b16 %v3573
        %v4152 = vunpack.c.l.b16 %v3574
        %v4153 = vunpack.c.l.b16 %v3575
        %v4154 = vunpack.c.l.b16 %v3576
        %v4155 = vunpack.c.l.b16 %v3577
        %v4156 = vunpack.c.l.b16 %v3578
        %v4157 = vunpack.c.l.b16 %v3579
        %v4158 = vunpack.c.l.b16 %v3580
        %v4159 = vunpack.c.l.b16 %v3581
        %v4160 = vunpack.c.l.b16 %v3582
        %v4161 = vunpack.c.l.b16 %v3583
        %v4162 = vunpack.c.l.b16 %v3584
        %v4163 = vunpack.c.l.b16 %v3585
        %v4164 = vunpack.c.l.b16 %v3586
        %v4165 = vunpack.c.l.b16 %v3587
        %v4166 = vunpack.c.l.b16 %v3588
        %v4167 = vunpack.c.l.b16 %v3589
        %v4168 = vunpack.c.l.b16 %v3590
        %v4169 = vunpack.c.l.b16 %v3591
        %v4170 = vunpack.c.l.b16 %v3592
        %v4171 = vunpack.c.l.b16 %v3593
        %v4172 = vpack.c.b16 %v4149, %v4148
        %v4173 = vpack.c.b16 %v4151, %v4150
        %v4174 = vpack.c.b16 %v4153, %v4152
        %v4175 = vpack.c.b16 %v4155, %v4154
        %v4176 = vpack.c.b16 %v4157, %v4156
        %v4177 = vpack.c.b16 %v4159, %v4158
        %v4178 = vpack.c.b16 %v4161, %v4160
        %v4179 = vpack.c.b16 %v4163, %v4162
        %v4180 = vpack.c.b16 %v4165, %v4164
        %v4181 = vpack.c.b16 %v4167, %v4166
        %v4182 = vpack.c.b16 %v4169, %v4168
        %v4183 = vpack.c.b16 %v4171, %v4170
        %v4197 = vsel %vm3515, %v3480, 0
        %v4200 = vsel %vm3515, %v3482, 0
        %v4203 = vsel %vm3515, %v3484, 0
        %v4206 = vsel %vm3515, %v3486, 0
        %v4209 = vsel %vm3515, %v3488, 0
        %v4212 = vsel %vm3515, %v3490, 0
        %v4215 = vsel %vm3515, %v3492, 0
        %v4218 = vsel %vm3515, %v3494, 0
        %v4221 = vsel %vm3515, %v3496, 0
        %v4224 = vsel %vm3515, %v3498, 0
        %v4227 = vsel %vm3515, %v3500, 0
        %v4230 = vsel %vm3515, %v3502, 0
        %v4233 = vsel %vm3515, %v3504, 0
        %v4236 = vsel %vm3515, %v3506, 0
        %v4239 = vsel %vm3515, %v3508, 0
        %v4242 = vsel %vm3515, %v3510, 0
        %v4245 = vsel %vm3515, %v3512, 0
        %v4248 = vsel %vm3515, %v3514, 0
        %4250 = vmatpush.bf16.msra.mxu0 %v4179
        %4251 = vmatpush.bf16.msra.mxu0 %v4178
        %4252 = vmatpush.bf16.msra.mxu0 %v4177
        %4253 = vmatpush.bf16.msra.mxu0 %v4176
        %4254 = vmatpush.bf16.msra.mxu0 %v4175
        %4255 = vmatpush.bf16.msra.mxu0 %v4174
        %4256 = vmatpush.bf16.msra.mxu0 %v4173
        %4257 = vmatpush.bf16.msra.mxu0 %v4172
        %4258 = vmatmul.bf16.gmra.mxu0 %v3517
        %v4259 = vpop.f32.mrf.mxu0
        %v4260 = vadd.f32 %v4035, %v4259
        %v4261 = vpop.f32.mrf.mxu0
        %v4262 = vadd.f32 %v4037, %v4261
        %4263 = vmatmul.bf16.gmra.mxu0 %v3520
        %v4264 = vpop.f32.mrf.mxu0
        %v4265 = vadd.f32 %v4040, %v4264
        %v4266 = vpop.f32.mrf.mxu0
        %v4267 = vadd.f32 %v4042, %v4266
        %4268 = vmatmul.bf16.gmra.mxu0 %v3523
        %v4269 = vpop.f32.mrf.mxu0
        %v4270 = vadd.f32 %v4045, %v4269
        %v4271 = vpop.f32.mrf.mxu0
        %v4272 = vadd.f32 %v4047, %v4271
        %4273 = vmatmul.bf16.gmra.mxu0 %v3526
        %v4274 = vpop.f32.mrf.mxu0
        %v4275 = vadd.f32 %v4050, %v4274
        %v4276 = vpop.f32.mrf.mxu0
        %v4277 = vadd.f32 %v4052, %v4276
        %4278 = vmatmul.bf16.gmra.mxu0 %v3529
        %v4279 = vpop.f32.mrf.mxu0
        %v4280 = vadd.f32 %v4055, %v4279
        %v4281 = vpop.f32.mrf.mxu0
        %v4282 = vadd.f32 %v4057, %v4281
        %4283 = vmatmul.bf16.gmra.mxu0 %v3532
        %v4284 = vpop.f32.mrf.mxu0
        %v4285 = vadd.f32 %v4060, %v4284
        %v4286 = vpop.f32.mrf.mxu0
        %v4287 = vadd.f32 %v4062, %v4286
        %4288 = vmatmul.bf16.gmra.mxu0 %v3535
        %v4289 = vpop.f32.mrf.mxu0
        %v4290 = vadd.f32 %v4065, %v4289
        %v4291 = vpop.f32.mrf.mxu0
        %v4292 = vadd.f32 %v4067, %v4291
        %4293 = vmatmul.bf16.gmra.mxu0 %v3538
        %v4294 = vpop.f32.mrf.mxu0
        %v4295 = vadd.f32 %v4070, %v4294
        %v4296 = vpop.f32.mrf.mxu0
        %v4297 = vadd.f32 %v4072, %v4296
        %4298 = vmatmul.bf16.gmra.mxu0 %v3541
        %v4299 = vpop.f32.mrf.mxu0
        %v4300 = vadd.f32 %v4075, %v4299
        %v4301 = vpop.f32.mrf.mxu0
        %v4302 = vadd.f32 %v4077, %v4301
        %4303 = vmatmul.bf16.gmra.mxu0 %v3544
        %v4304 = vpop.f32.mrf.mxu0
        %v4305 = vadd.f32 %v4080, %v4304
        %v4306 = vpop.f32.mrf.mxu0
        %v4307 = vadd.f32 %v4082, %v4306
        %4308 = vmatmul.bf16.gmra.mxu0 %v3547
        %v4309 = vpop.f32.mrf.mxu0
        %v4310 = vadd.f32 %v4085, %v4309
        %v4311 = vpop.f32.mrf.mxu0
        %v4312 = vadd.f32 %v4087, %v4311
        %4313 = vmatmul.bf16.gmra.mxu0 %v3550
        %v4314 = vpop.f32.mrf.mxu0
        %v4315 = vadd.f32 %v4090, %v4314
        %v4316 = vpop.f32.mrf.mxu0
        %v4317 = vadd.f32 %v4092, %v4316
        %4318 = vmatmul.bf16.gmra.mxu0 %v3553
        %v4319 = vpop.f32.mrf.mxu0
        %v4320 = vadd.f32 %v4095, %v4319
        %v4321 = vpop.f32.mrf.mxu0
        %v4322 = vadd.f32 %v4097, %v4321
        %4323 = vmatmul.bf16.gmra.mxu0 %v3556
        %v4324 = vpop.f32.mrf.mxu0
        %v4325 = vadd.f32 %v4100, %v4324
        %v4326 = vpop.f32.mrf.mxu0
        %v4327 = vadd.f32 %v4102, %v4326
        %4328 = vmatmul.bf16.gmra.mxu0 %v3559
        %v4329 = vpop.f32.mrf.mxu0
        %v4330 = vadd.f32 %v4105, %v4329
        %v4331 = vpop.f32.mrf.mxu0
        %v4332 = vadd.f32 %v4107, %v4331
        %4333 = vmatmul.bf16.gmra.mxu0 %v3562
        %v4334 = vpop.f32.mrf.mxu0
        %v4335 = vadd.f32 %v4110, %v4334
        %v4336 = vpop.f32.mrf.mxu0
        %v4337 = vadd.f32 %v4112, %v4336
        %4338 = vmatmul.bf16.gmra.mxu0 %v3565
        %v4339 = vpop.f32.mrf.mxu0
        %v4340 = vadd.f32 %v4115, %v4339
        %v4341 = vpop.f32.mrf.mxu0
        %v4342 = vadd.f32 %v4117, %v4341
        %4343 = vmatmul.bf16.gmra.mxu0 %v3568
        %v4344 = vpop.f32.mrf.mxu0
        %v4345 = vadd.f32 %v4120, %v4344
        %v4346 = vpop.f32.mrf.mxu0
        %v4347 = vadd.f32 %v4122, %v4346
        %4348 = vdwg.mxu0
        %4349 = vmatpush.bf16.msra.mxu0 0
        %4350 = vmatpush.bf16.msra.mxu0 0
        %4351 = vmatpush.bf16.msra.mxu0 0
        %4352 = vmatpush.bf16.msra.mxu0 0
        %4353 = vmatpush.bf16.msra.mxu0 %v4183
        %4354 = vmatpush.bf16.msra.mxu0 %v4182
        %4355 = vmatpush.bf16.msra.mxu0 %v4181
        %4356 = vmatpush.bf16.msra.mxu0 %v4180
        %4357 = vmatmul.bf16.gmra.mxu0 %v4197
        %v4358 = vpop.f32.mrf.mxu0
        %v4359 = vadd.f32 %v4260, %v4358
        %v4360 = vpop.f32.mrf.mxu0
        %v4361 = vadd.f32 %v4262, %v4360
        %4362 = vmatmul.bf16.gmra.mxu0 %v4200
        %v4363 = vpop.f32.mrf.mxu0
        %v4364 = vadd.f32 %v4265, %v4363
        %v4365 = vpop.f32.mrf.mxu0
        %v4366 = vadd.f32 %v4267, %v4365
        %4367 = vmatmul.bf16.gmra.mxu0 %v4203
        %v4368 = vpop.f32.mrf.mxu0
        %v4369 = vadd.f32 %v4270, %v4368
        %v4370 = vpop.f32.mrf.mxu0
        %v4371 = vadd.f32 %v4272, %v4370
        %4372 = vmatmul.bf16.gmra.mxu0 %v4206
        %v4373 = vpop.f32.mrf.mxu0
        %v4374 = vadd.f32 %v4275, %v4373
        %v4375 = vpop.f32.mrf.mxu0
        %v4376 = vadd.f32 %v4277, %v4375
        %4377 = vmatmul.bf16.gmra.mxu0 %v4209
        %v4378 = vpop.f32.mrf.mxu0
        %v4379 = vadd.f32 %v4280, %v4378
        %v4380 = vpop.f32.mrf.mxu0
        %v4381 = vadd.f32 %v4282, %v4380
        %4382 = vmatmul.bf16.gmra.mxu0 %v4212
        %v4383 = vpop.f32.mrf.mxu0
        %v4384 = vadd.f32 %v4285, %v4383
        %v4385 = vpop.f32.mrf.mxu0
        %v4386 = vadd.f32 %v4287, %v4385
        %4387 = vmatmul.bf16.gmra.mxu0 %v4215
        %v4388 = vpop.f32.mrf.mxu0
        %v4389 = vadd.f32 %v4290, %v4388
        %v4390 = vpop.f32.mrf.mxu0
        %v4391 = vadd.f32 %v4292, %v4390
        %4392 = vmatmul.bf16.gmra.mxu0 %v4218
        %v4393 = vpop.f32.mrf.mxu0
        %v4394 = vadd.f32 %v4295, %v4393
        %v4395 = vpop.f32.mrf.mxu0
        %v4396 = vadd.f32 %v4297, %v4395
        %4397 = vmatmul.bf16.gmra.mxu0 %v4221
        %v4398 = vpop.f32.mrf.mxu0
        %v4399 = vadd.f32 %v4300, %v4398
        %v4400 = vpop.f32.mrf.mxu0
        %v4401 = vadd.f32 %v4302, %v4400
        %4402 = vmatmul.bf16.gmra.mxu0 %v4224
        %v4403 = vpop.f32.mrf.mxu0
        %v4404 = vadd.f32 %v4305, %v4403
        %v4405 = vpop.f32.mrf.mxu0
        %v4406 = vadd.f32 %v4307, %v4405
        %4407 = vmatmul.bf16.gmra.mxu0 %v4227
        %v4408 = vpop.f32.mrf.mxu0
        %v4409 = vadd.f32 %v4310, %v4408
        %v4410 = vpop.f32.mrf.mxu0
        %v4411 = vadd.f32 %v4312, %v4410
        %4412 = vmatmul.bf16.gmra.mxu0 %v4230
        %v4413 = vpop.f32.mrf.mxu0
        %v4414 = vadd.f32 %v4315, %v4413
        %v4415 = vpop.f32.mrf.mxu0
        %v4416 = vadd.f32 %v4317, %v4415
        %4417 = vmatmul.bf16.gmra.mxu0 %v4233
        %v4418 = vpop.f32.mrf.mxu0
        %v4419 = vadd.f32 %v4320, %v4418
        %v4420 = vpop.f32.mrf.mxu0
        %v4421 = vadd.f32 %v4322, %v4420
        %4422 = vmatmul.bf16.gmra.mxu0 %v4236
        %v4423 = vpop.f32.mrf.mxu0
        %v4424 = vadd.f32 %v4325, %v4423
        %v4425 = vpop.f32.mrf.mxu0
        %v4426 = vadd.f32 %v4327, %v4425
        %4427 = vmatmul.bf16.gmra.mxu0 %v4239
        %v4428 = vpop.f32.mrf.mxu0
        %v4429 = vadd.f32 %v4330, %v4428
        %v4430 = vpop.f32.mrf.mxu0
        %v4431 = vadd.f32 %v4332, %v4430
        %4432 = vmatmul.bf16.gmra.mxu0 %v4242
        %v4433 = vpop.f32.mrf.mxu0
        %v4434 = vadd.f32 %v4335, %v4433
        %v4435 = vpop.f32.mrf.mxu0
        %v4436 = vadd.f32 %v4337, %v4435
        %4437 = vmatmul.bf16.gmra.mxu0 %v4245
        %v4438 = vpop.f32.mrf.mxu0
        %v4439 = vadd.f32 %v4340, %v4438
        %v4440 = vpop.f32.mrf.mxu0
        %v4441 = vadd.f32 %v4342, %v4440
        %4442 = vmatmul.bf16.gmra.mxu0 %v4248
        %v4443 = vpop.f32.mrf.mxu0
        %v4444 = vadd.f32 %v4345, %v4443
        %v4445 = vpop.f32.mrf.mxu0
        %v4446 = vadd.f32 %v4347, %v4445
        %4447 = vdwg.mxu0
        %v4448 = vld [vmem:[#allocation3 + $0x10] sm:$0xc]
        %v4449 = vld [vmem:[#allocation3 + $0x14] sm:$0xf]
        %v4450 = vld [vmem:[#allocation3 + $0x18] sm:$0xf]
        %v4451 = vld [vmem:[#allocation3 + $0x1c] sm:$0xf]
        %v4452 = vld [vmem:[#allocation3 + $0x20] sm:$0xf]
        %v4453 = vld [vmem:[#allocation3 + $0x24] sm:$0xf]
        %v4454 = vld [vmem:[#allocation3 + $0x28] sm:$0xf]
        %v4455 = vld [vmem:[#allocation3 + $0x2c] sm:$0xf]
        %v4456 = vld [vmem:[#allocation3 + $0x30] sm:$0xf]
        %v4457 = vld [vmem:[#allocation3 + $0x34] sm:$0xf]
        %v4458 = vld [vmem:[#allocation3 + $0x38] sm:$0xf]
        %v4459 = vld [vmem:[#allocation3 + $0x3c] sm:$0xf]
        %v4460 = vld [vmem:[#allocation3 + $0x40] sm:$0xf]
        %v4461 = vld [vmem:[#allocation3 + $0x44] sm:$0xf]
        %v4462 = vld [vmem:[#allocation3 + $0x48] sm:$0xf]
        %v4463 = vld [vmem:[#allocation3 + $0x4c] sm:$0xf]
        %v4464 = vld [vmem:[#allocation3 + $0x50] sm:$0xf]
        %v4465 = vld [vmem:[#allocation3 + $0x54] sm:$0xf]
        %v4466 = vld [vmem:[#allocation3 + $0x58] sm:$0xf]
        %v4467 = vld [vmem:[#allocation3 + $0x5c] sm:$0xf]
        %v4468 = vld [vmem:[#allocation3 + $0x60] sm:$0xf]
        %v4469 = vld [vmem:[#allocation3 + $0x64] sm:$0xf]
        %v4470 = vld [vmem:[#allocation3 + $0x68] sm:$0xf]
        %v4471 = vld [vmem:[#allocation3 + $0x6c] sm:$0xf]
        %v4472 = vld [vmem:[#allocation3 + $0x70] sm:$0xf]
        %v4473 = vld [vmem:[#allocation3 + $0x74] sm:$0xf]
        %v4474 = vld [vmem:[#allocation3 + $0x78] sm:$0xf]
        %v4475 = vld [vmem:[#allocation3 + $0x7c] sm:$0xf]
        %v4476 = vld [vmem:[#allocation3 + $0x80] sm:$0xf]
        %v4477 = vld [vmem:[#allocation3 + $0x84] sm:$0xf]
        %v4478 = vld [vmem:[#allocation3 + $0x88] sm:$0xf]
        %v4479 = vld [vmem:[#allocation3 + $0x8c] sm:$0xf]
        %v4480 = vld [vmem:[#allocation3 + $0x90] sm:$0xf]
        %v4481 = vld [vmem:[#allocation3 + $0x94] sm:$0xf]
        %v4482 = vld [vmem:[#allocation3 + $0x98] sm:$0xf]
        %v4483 = vld [vmem:[#allocation3 + $0x9c] sm:$0xf]
        %v4484 = vld [vmem:[#allocation3 + $0xa0] sm:$0x3]
        %v4485 = vld [vmem:[#allocation3 + $0xa0] sm:$0x7]
        %v4486 = vld [vmem:[#allocation3 + $0x10] sm:$0x8]
        %v4524 = vunpack.c.l.b16 %v4448
        %v4525 = vunpack.c.l.b16 %v4449
        %v4526 = vunpack.c.l.b16 %v4450
        %v4527 = vunpack.c.l.b16 %v4451
        %v4528 = vunpack.c.l.b16 %v4452
        %v4529 = vunpack.c.l.b16 %v4453
        %v4530 = vunpack.c.l.b16 %v4454
        %v4531 = vunpack.c.l.b16 %v4455
        %v4532 = vunpack.c.l.b16 %v4456
        %v4533 = vunpack.c.l.b16 %v4457
        %v4534 = vunpack.c.l.b16 %v4458
        %v4535 = vunpack.c.l.b16 %v4459
        %v4536 = vunpack.c.l.b16 %v4460
        %v4537 = vunpack.c.l.b16 %v4461
        %v4538 = vunpack.c.l.b16 %v4462
        %v4539 = vunpack.c.l.b16 %v4463
        %v4540 = vunpack.c.l.b16 %v4464
        %v4541 = vunpack.c.l.b16 %v4465
        %v4542 = vunpack.c.l.b16 %v4466
        %v4543 = vunpack.c.l.b16 %v4467
        %v4544 = vunpack.c.l.b16 %v4468
        %v4545 = vunpack.c.l.b16 %v4469
        %v4546 = vunpack.c.l.b16 %v4470
        %v4547 = vunpack.c.l.b16 %v4471
        %v4548 = vunpack.c.l.b16 %v4472
        %v4549 = vunpack.c.l.b16 %v4473
        %v4550 = vunpack.c.l.b16 %v4474
        %v4551 = vunpack.c.l.b16 %v4475
        %v4552 = vunpack.c.l.b16 %v4476
        %v4553 = vunpack.c.l.b16 %v4477
        %v4554 = vunpack.c.l.b16 %v4478
        %v4555 = vunpack.c.l.b16 %v4479
        %v4556 = vunpack.c.l.b16 %v4480
        %v4557 = vunpack.c.l.b16 %v4481
        %v4558 = vunpack.c.l.b16 %v4482
        %v4559 = vunpack.c.l.b16 %v4483
        %v4560 = vunpack.c.l.b16 %v4484
        %v4561 = vpack.c.b16 %v4525, %v4524
        %v4562 = vpack.c.b16 %v4527, %v4526
        %v4563 = vpack.c.b16 %v4529, %v4528
        %v4564 = vpack.c.b16 %v4531, %v4530
        %v4565 = vpack.c.b16 %v4533, %v4532
        %v4566 = vpack.c.b16 %v4535, %v4534
        %v4567 = vpack.c.b16 %v4537, %v4536
        %v4568 = vpack.c.b16 %v4539, %v4538
        %v4569 = vpack.c.b16 %v4541, %v4540
        %v4570 = vpack.c.b16 %v4543, %v4542
        %v4571 = vpack.c.b16 %v4545, %v4544
        %v4572 = vpack.c.b16 %v4547, %v4546
        %v4573 = vpack.c.b16 %v4549, %v4548
        %v4574 = vpack.c.b16 %v4551, %v4550
        %v4575 = vpack.c.b16 %v4553, %v4552
        %v4576 = vpack.c.b16 %v4555, %v4554
        %v4577 = vpack.c.b16 %v4557, %v4556
        %v4578 = vpack.c.b16 %v4559, %v4558
        %v4579 = vpack.c.b16 %v4560, %v4560
        %v4581 = vunpack.c.l.b16 %v4485
        %v4582 = vpack.c.b16 %v4581, %v4581
        %v4584 = vshrl.u32 %v4561, 16
        %v4586 = vshll.u32 %v4561, 16
        %v4588 = vrot.slane %v4586, 1
        %v4589 = vor.u32 %v4584, %v4588
        %v4591 = vshll.u32 %v4562, 16
        %v4593 = vrot.slane %v4591, 1
        %v4594 = vsel %vm3289, %v4589, %v4593
        %v4595 = vshrl.u32 %v4562, 16
        %v4597 = vor.u32 %v4595, %v4593
        %v4599 = vshll.u32 %v4563, 16
        %v4601 = vrot.slane %v4599, 1
        %v4602 = vsel %vm3289, %v4597, %v4601
        %v4603 = vshrl.u32 %v4563, 16
        %v4605 = vor.u32 %v4603, %v4601
        %v4607 = vshll.u32 %v4564, 16
        %v4609 = vrot.slane %v4607, 1
        %v4610 = vsel %vm3289, %v4605, %v4609
        %v4611 = vshrl.u32 %v4564, 16
        %v4613 = vor.u32 %v4611, %v4609
        %v4615 = vshll.u32 %v4565, 16
        %v4617 = vrot.slane %v4615, 1
        %v4618 = vsel %vm3289, %v4613, %v4617
        %v4619 = vshrl.u32 %v4565, 16
        %v4621 = vor.u32 %v4619, %v4617
        %v4623 = vshll.u32 %v4566, 16
        %v4625 = vrot.slane %v4623, 1
        %v4626 = vsel %vm3289, %v4621, %v4625
        %v4627 = vshrl.u32 %v4566, 16
        %v4629 = vor.u32 %v4627, %v4625
        %v4631 = vshll.u32 %v4567, 16
        %v4633 = vrot.slane %v4631, 1
        %v4634 = vsel %vm3289, %v4629, %v4633
        %v4635 = vshrl.u32 %v4567, 16
        %v4637 = vor.u32 %v4635, %v4633
        %v4639 = vshll.u32 %v4568, 16
        %v4641 = vrot.slane %v4639, 1
        %v4642 = vsel %vm3289, %v4637, %v4641
        %v4643 = vshrl.u32 %v4568, 16
        %v4645 = vor.u32 %v4643, %v4641
        %v4647 = vshll.u32 %v4569, 16
        %v4649 = vrot.slane %v4647, 1
        %v4650 = vsel %vm3289, %v4645, %v4649
        %v4651 = vshrl.u32 %v4569, 16
        %v4653 = vor.u32 %v4651, %v4649
        %v4655 = vshll.u32 %v4570, 16
        %v4657 = vrot.slane %v4655, 1
        %v4658 = vsel %vm3289, %v4653, %v4657
        %v4659 = vshrl.u32 %v4570, 16
        %v4661 = vor.u32 %v4659, %v4657
        %v4663 = vshll.u32 %v4571, 16
        %v4665 = vrot.slane %v4663, 1
        %v4666 = vsel %vm3289, %v4661, %v4665
        %v4667 = vshrl.u32 %v4571, 16
        %v4669 = vor.u32 %v4667, %v4665
        %v4671 = vshll.u32 %v4572, 16
        %v4673 = vrot.slane %v4671, 1
        %v4674 = vsel %vm3289, %v4669, %v4673
        %v4675 = vshrl.u32 %v4572, 16
        %v4677 = vor.u32 %v4675, %v4673
        %v4679 = vshll.u32 %v4573, 16
        %v4681 = vrot.slane %v4679, 1
        %v4682 = vsel %vm3289, %v4677, %v4681
        %v4683 = vshrl.u32 %v4573, 16
        %v4685 = vor.u32 %v4683, %v4681
        %v4687 = vshll.u32 %v4574, 16
        %v4689 = vrot.slane %v4687, 1
        %v4690 = vsel %vm3289, %v4685, %v4689
        %v4691 = vshrl.u32 %v4574, 16
        %v4693 = vor.u32 %v4691, %v4689
        %v4695 = vshll.u32 %v4575, 16
        %v4697 = vrot.slane %v4695, 1
        %v4698 = vsel %vm3289, %v4693, %v4697
        %v4699 = vshrl.u32 %v4575, 16
        %v4701 = vor.u32 %v4699, %v4697
        %v4703 = vshll.u32 %v4576, 16
        %v4705 = vrot.slane %v4703, 1
        %v4706 = vsel %vm3289, %v4701, %v4705
        %v4707 = vshrl.u32 %v4576, 16
        %v4709 = vor.u32 %v4707, %v4705
        %v4711 = vshll.u32 %v4577, 16
        %v4713 = vrot.slane %v4711, 1
        %v4714 = vsel %vm3289, %v4709, %v4713
        %v4715 = vshrl.u32 %v4577, 16
        %v4717 = vor.u32 %v4715, %v4713
        %v4719 = vshll.u32 %v4578, 16
        %v4721 = vrot.slane %v4719, 1
        %v4722 = vsel %vm3289, %v4717, %v4721
        %v4723 = vshrl.u32 %v4578, 16
        %v4725 = vor.u32 %v4723, %v4721
        %v4727 = vshll.u32 %v4582, 16
        %v4729 = vrot.slane %v4727, 1
        %v4730 = vsel %vm3289, %v4725, %v4729
        %v4731 = vshrl.u32 %v4582, 16
        %v4733 = vor.u32 %v4731, %v4729
        %4734 = vrot.lane.b32.xlu0 %v4594, 64
        %v4735 = vpop.permute.xlu0 %4734
        %4736 = vrot.lane.b32.xlu0 %v4602, 64
        %v4737 = vpop.permute.xlu0 %4736
        %4738 = vrot.lane.b32.xlu0 %v4610, 64
        %v4739 = vpop.permute.xlu0 %4738
        %4740 = vrot.lane.b32.xlu0 %v4618, 64
        %v4741 = vpop.permute.xlu0 %4740
        %4742 = vrot.lane.b32.xlu0 %v4626, 64
        %v4743 = vpop.permute.xlu0 %4742
        %4744 = vrot.lane.b32.xlu0 %v4634, 64
        %v4745 = vpop.permute.xlu0 %4744
        %4746 = vrot.lane.b32.xlu0 %v4642, 64
        %v4747 = vpop.permute.xlu0 %4746
        %4748 = vrot.lane.b32.xlu0 %v4650, 64
        %v4749 = vpop.permute.xlu0 %4748
        %4750 = vrot.lane.b32.xlu0 %v4658, 64
        %v4751 = vpop.permute.xlu0 %4750
        %4752 = vrot.lane.b32.xlu0 %v4666, 64
        %v4753 = vpop.permute.xlu0 %4752
        %4754 = vrot.lane.b32.xlu0 %v4674, 64
        %v4755 = vpop.permute.xlu0 %4754
        %4756 = vrot.lane.b32.xlu0 %v4682, 64
        %v4757 = vpop.permute.xlu0 %4756
        %4758 = vrot.lane.b32.xlu0 %v4690, 64
        %v4759 = vpop.permute.xlu0 %4758
        %4760 = vrot.lane.b32.xlu0 %v4698, 64
        %v4761 = vpop.permute.xlu0 %4760
        %4762 = vrot.lane.b32.xlu0 %v4706, 64
        %v4763 = vpop.permute.xlu0 %4762
        %4764 = vrot.lane.b32.xlu0 %v4714, 64
        %v4765 = vpop.permute.xlu0 %4764
        %4766 = vrot.lane.b32.xlu0 %v4722, 64
        %v4767 = vpop.permute.xlu0 %4766
        %4768 = vrot.lane.b32.xlu0 %v4730, 64
        %v4769 = vpop.permute.xlu0 %4768
        %4770 = vrot.lane.b32.xlu0 %v4733, 64
        %v4771 = vpop.permute.xlu0 %4770
        %v4773 = vunpack.c.l.b16 %v4486
        %v4774 = vpack.c.b16 %v4525, %v4773
        %v4775 = vrot.slane %v4774, 1
        %v4776 = vrot.slane %v4562, 1
        %v4777 = vsel %vm3477, %v4775, %v4776
        %v4778 = vrot.slane %v4563, 1
        %v4779 = vsel %vm3477, %v4776, %v4778
        %v4780 = vrot.slane %v4564, 1
        %v4781 = vsel %vm3477, %v4778, %v4780
        %v4782 = vrot.slane %v4565, 1
        %v4783 = vsel %vm3477, %v4780, %v4782
        %v4784 = vrot.slane %v4566, 1
        %v4785 = vsel %vm3477, %v4782, %v4784
        %v4786 = vrot.slane %v4567, 1
        %v4787 = vsel %vm3477, %v4784, %v4786
        %v4788 = vrot.slane %v4568, 1
        %v4789 = vsel %vm3477, %v4786, %v4788
        %v4790 = vrot.slane %v4569, 1
        %v4791 = vsel %vm3477, %v4788, %v4790
        %v4792 = vrot.slane %v4570, 1
        %v4793 = vsel %vm3477, %v4790, %v4792
        %v4794 = vrot.slane %v4571, 1
        %v4795 = vsel %vm3477, %v4792, %v4794
        %v4796 = vrot.slane %v4572, 1
        %v4797 = vsel %vm3477, %v4794, %v4796
        %v4798 = vrot.slane %v4573, 1
        %v4799 = vsel %vm3477, %v4796, %v4798
        %v4800 = vrot.slane %v4574, 1
        %v4801 = vsel %vm3477, %v4798, %v4800
        %v4802 = vrot.slane %v4575, 1
        %v4803 = vsel %vm3477, %v4800, %v4802
        %v4804 = vrot.slane %v4576, 1
        %v4805 = vsel %vm3477, %v4802, %v4804
        %v4806 = vrot.slane %v4577, 1
        %v4807 = vsel %vm3477, %v4804, %v4806
        %v4808 = vrot.slane %v4578, 1
        %v4809 = vsel %vm3477, %v4806, %v4808
        %v4810 = vrot.slane %v4582, 1
        %v4811 = vsel %vm3477, %v4808, %v4810
        %v4813 = vsel %vm3515, %v4561, %v4735
        %v4815 = vsel %vm3515, %v4562, %v4737
        %v4817 = vsel %vm3515, %v4563, %v4739
        %v4819 = vsel %vm3515, %v4564, %v4741
        %v4821 = vsel %vm3515, %v4565, %v4743
        %v4823 = vsel %vm3515, %v4566, %v4745
        %v4825 = vsel %vm3515, %v4567, %v4747
        %v4827 = vsel %vm3515, %v4568, %v4749
        %v4829 = vsel %vm3515, %v4569, %v4751
        %v4831 = vsel %vm3515, %v4570, %v4753
        %v4833 = vsel %vm3515, %v4571, %v4755
        %v4835 = vsel %vm3515, %v4572, %v4757
        %v4837 = vsel %vm3515, %v4573, %v4759
        %v4839 = vsel %vm3515, %v4574, %v4761
        %v4841 = vsel %vm3515, %v4575, %v4763
        %v4843 = vsel %vm3515, %v4576, %v4765
        %v4845 = vsel %vm3515, %v4577, %v4767
        %v4847 = vsel %vm3515, %v4578, %v4769
        %v4850 = vsel %vm3515, %v4579, %v4771
        %s4851 = scalar_lea.vmem %s264, 192
        %v4852 = vld [vmem:[%s4851] sm:$0xf]
        %v4853 = vld [vmem:[%s4851 + $0x4] sm:$0xf]
        %v4854 = vld [vmem:[%s4851 + $0x8] sm:$0xf]
        %v4855 = vld [vmem:[%s4851 + $0xc] sm:$0xf]
        %v4856 = vld [vmem:[%s4851 + $0x10] sm:$0xf]
        %v4857 = vld [vmem:[%s4851 + $0x14] sm:$0xf]
        %v4858 = vld [vmem:[%s4851 + $0x18] sm:$0xf]
        %v4859 = vld [vmem:[%s4851 + $0x1c] sm:$0xf]
        %v4860 = vld [vmem:[%s4851 + $0x20] sm:$0xf]
        %v4861 = vld [vmem:[%s4851 + $0x24] sm:$0xf]
        %v4862 = vld [vmem:[%s4851 + $0x28] sm:$0xf]
        %v4863 = vld [vmem:[%s4851 + $0x2c] sm:$0xf]
        %v4864 = vld [vmem:[%s4851 + $0x30] sm:$0xf]
        %v4865 = vld [vmem:[%s4851 + $0x34] sm:$0xf]
        %v4866 = vld [vmem:[%s4851 + $0x38] sm:$0xf]
        %v4867 = vld [vmem:[%s4851 + $0x3c] sm:$0xf]
        %v4868 = vld [vmem:[%s4851 + $0x40] sm:$0xf]
        %v4869 = vld [vmem:[%s4851 + $0x44] sm:$0xf]
        %v4870 = vld [vmem:[%s4851 + $0x48] sm:$0xf]
        %v4871 = vld [vmem:[%s4851 + $0x4c] sm:$0xf]
        %v4872 = vld [vmem:[%s4851 + $0x50] sm:$0xf]
        %v4873 = vld [vmem:[%s4851 + $0x54] sm:$0xf]
        %v4874 = vld [vmem:[%s4851 + $0x58] sm:$0xf]
        %v4875 = vld [vmem:[%s4851 + $0x5c] sm:$0xf]
        %vm4895 = vcmask 1045504
        %v4896 = vrot.slane %v4813, 2
        %v4897 = vrot.slane %v4815, 2
        %v4898 = vsel %vm4895, %v4896, %v4897
        %v4899 = vrot.slane %v4777, 2
        %v4900 = vrot.slane %v4779, 2
        %v4901 = vsel %vm4895, %v4899, %v4900
        %v4902 = vrot.slane %v4817, 2
        %v4903 = vsel %vm4895, %v4897, %v4902
        %v4904 = vrot.slane %v4781, 2
        %v4905 = vsel %vm4895, %v4900, %v4904
        %v4906 = vrot.slane %v4819, 2
        %v4907 = vsel %vm4895, %v4902, %v4906
        %v4908 = vrot.slane %v4783, 2
        %v4909 = vsel %vm4895, %v4904, %v4908
        %v4910 = vrot.slane %v4821, 2
        %v4911 = vsel %vm4895, %v4906, %v4910
        %v4912 = vrot.slane %v4785, 2
        %v4913 = vsel %vm4895, %v4908, %v4912
        %v4914 = vrot.slane %v4823, 2
        %v4915 = vsel %vm4895, %v4910, %v4914
        %v4916 = vrot.slane %v4787, 2
        %v4917 = vsel %vm4895, %v4912, %v4916
        %v4918 = vrot.slane %v4825, 2
        %v4919 = vsel %vm4895, %v4914, %v4918
        %v4920 = vrot.slane %v4789, 2
        %v4921 = vsel %vm4895, %v4916, %v4920
        %v4922 = vrot.slane %v4827, 2
        %v4923 = vsel %vm4895, %v4918, %v4922
        %v4924 = vrot.slane %v4791, 2
        %v4925 = vsel %vm4895, %v4920, %v4924
        %v4926 = vrot.slane %v4829, 2
        %v4927 = vsel %vm4895, %v4922, %v4926
        %v4928 = vrot.slane %v4793, 2
        %v4929 = vsel %vm4895, %v4924, %v4928
        %v4930 = vrot.slane %v4831, 2
        %v4931 = vsel %vm4895, %v4926, %v4930
        %v4932 = vrot.slane %v4795, 2
        %v4933 = vsel %vm4895, %v4928, %v4932
        %v4934 = vrot.slane %v4833, 2
        %v4935 = vsel %vm4895, %v4930, %v4934
        %v4936 = vrot.slane %v4797, 2
        %v4937 = vsel %vm4895, %v4932, %v4936
        %v4938 = vrot.slane %v4835, 2
        %v4939 = vsel %vm4895, %v4934, %v4938
        %v4940 = vrot.slane %v4799, 2
        %v4941 = vsel %vm4895, %v4936, %v4940
        %v4942 = vrot.slane %v4837, 2
        %v4943 = vsel %vm4895, %v4938, %v4942
        %v4944 = vrot.slane %v4801, 2
        %v4945 = vsel %vm4895, %v4940, %v4944
        %v4946 = vrot.slane %v4839, 2
        %v4947 = vsel %vm4895, %v4942, %v4946
        %v4948 = vrot.slane %v4803, 2
        %v4949 = vsel %vm4895, %v4944, %v4948
        %v4950 = vrot.slane %v4841, 2
        %v4951 = vsel %vm4895, %v4946, %v4950
        %v4952 = vrot.slane %v4805, 2
        %v4953 = vsel %vm4895, %v4948, %v4952
        %v4954 = vrot.slane %v4843, 2
        %v4955 = vsel %vm4895, %v4950, %v4954
        %v4956 = vrot.slane %v4807, 2
        %v4957 = vsel %vm4895, %v4952, %v4956
        %v4958 = vrot.slane %v4845, 2
        %v4959 = vsel %vm4895, %v4954, %v4958
        %v4960 = vrot.slane %v4809, 2
        %v4961 = vsel %vm4895, %v4956, %v4960
        %v4962 = vrot.slane %v4847, 2
        %v4963 = vsel %vm4895, %v4958, %v4962
        %v4964 = vrot.slane %v4811, 2
        %v4965 = vsel %vm4895, %v4960, %v4964
        %v4966 = vrot.slane %v4850, 2
        %v4967 = vsel %vm4895, %v4962, %v4966
        %v4968 = vrot.slane %v4810, 2
        %v4969 = vsel %vm4895, %v4964, %v4968
        %v5012 = vunpack.c.l.b16 %v4852
        %v5013 = vunpack.c.l.b16 %v4853
        %v5014 = vunpack.c.l.b16 %v4854
        %v5015 = vunpack.c.l.b16 %v4855
        %v5016 = vunpack.c.l.b16 %v4856
        %v5017 = vunpack.c.l.b16 %v4857
        %v5018 = vunpack.c.l.b16 %v4858
        %v5019 = vunpack.c.l.b16 %v4859
        %v5020 = vunpack.c.l.b16 %v4860
        %v5021 = vunpack.c.l.b16 %v4861
        %v5022 = vunpack.c.l.b16 %v4862
        %v5023 = vunpack.c.l.b16 %v4863
        %v5024 = vunpack.c.l.b16 %v4864
        %v5025 = vunpack.c.l.b16 %v4865
        %v5026 = vunpack.c.l.b16 %v4866
        %v5027 = vunpack.c.l.b16 %v4867
        %v5028 = vunpack.c.l.b16 %v4868
        %v5029 = vunpack.c.l.b16 %v4869
        %v5030 = vunpack.c.l.b16 %v4870
        %v5031 = vunpack.c.l.b16 %v4871
        %v5032 = vunpack.c.l.b16 %v4872
        %v5033 = vunpack.c.l.b16 %v4873
        %v5034 = vunpack.c.l.b16 %v4874
        %v5035 = vunpack.c.l.b16 %v4875
        %v5036 = vpack.c.b16 %v5013, %v5012
        %v5037 = vpack.c.b16 %v5015, %v5014
        %v5038 = vpack.c.b16 %v5017, %v5016
        %v5039 = vpack.c.b16 %v5019, %v5018
        %v5040 = vpack.c.b16 %v5021, %v5020
        %v5041 = vpack.c.b16 %v5023, %v5022
        %v5042 = vpack.c.b16 %v5025, %v5024
        %v5043 = vpack.c.b16 %v5027, %v5026
        %v5044 = vpack.c.b16 %v5029, %v5028
        %v5045 = vpack.c.b16 %v5031, %v5030
        %v5046 = vpack.c.b16 %v5033, %v5032
        %v5047 = vpack.c.b16 %v5035, %v5034
        %v5061 = vsel %vm3515, %v4901, 0
        %v5064 = vsel %vm3515, %v4905, 0
        %v5067 = vsel %vm3515, %v4909, 0
        %v5070 = vsel %vm3515, %v4913, 0
        %v5073 = vsel %vm3515, %v4917, 0
        %v5076 = vsel %vm3515, %v4921, 0
        %v5079 = vsel %vm3515, %v4925, 0
        %v5082 = vsel %vm3515, %v4929, 0
        %v5085 = vsel %vm3515, %v4933, 0
        %v5088 = vsel %vm3515, %v4937, 0
        %v5091 = vsel %vm3515, %v4941, 0
        %v5094 = vsel %vm3515, %v4945, 0
        %v5097 = vsel %vm3515, %v4949, 0
        %v5100 = vsel %vm3515, %v4953, 0
        %v5103 = vsel %vm3515, %v4957, 0
        %v5106 = vsel %vm3515, %v4961, 0
        %v5109 = vsel %vm3515, %v4965, 0
        %v5112 = vsel %vm3515, %v4969, 0
        %5114 = vmatpush.bf16.msra.mxu0 %v5043
        %5115 = vmatpush.bf16.msra.mxu0 %v5042
        %5116 = vmatpush.bf16.msra.mxu0 %v5041
        %5117 = vmatpush.bf16.msra.mxu0 %v5040
        %5118 = vmatpush.bf16.msra.mxu0 %v5039
        %5119 = vmatpush.bf16.msra.mxu0 %v5038
        %5120 = vmatpush.bf16.msra.mxu0 %v5037
        %5121 = vmatpush.bf16.msra.mxu0 %v5036
        %5122 = vmatmul.bf16.gmra.mxu0 %v4898
        %v5123 = vpop.f32.mrf.mxu0
        %v5124 = vadd.f32 0.0, %v5123
        %v5125 = vpop.f32.mrf.mxu0
        %v5126 = vadd.f32 0.0, %v5125
        %5127 = vmatmul.bf16.gmra.mxu0 %v4903
        %v5128 = vpop.f32.mrf.mxu0
        %v5129 = vadd.f32 0.0, %v5128
        %v5130 = vpop.f32.mrf.mxu0
        %v5131 = vadd.f32 0.0, %v5130
        %5132 = vmatmul.bf16.gmra.mxu0 %v4907
        %v5133 = vpop.f32.mrf.mxu0
        %v5134 = vadd.f32 0.0, %v5133
        %v5135 = vpop.f32.mrf.mxu0
        %v5136 = vadd.f32 0.0, %v5135
        %5137 = vmatmul.bf16.gmra.mxu0 %v4911
        %v5138 = vpop.f32.mrf.mxu0
        %v5139 = vadd.f32 0.0, %v5138
        %v5140 = vpop.f32.mrf.mxu0
        %v5141 = vadd.f32 0.0, %v5140
        %5142 = vmatmul.bf16.gmra.mxu0 %v4915
        %v5143 = vpop.f32.mrf.mxu0
        %v5144 = vadd.f32 0.0, %v5143
        %v5145 = vpop.f32.mrf.mxu0
        %v5146 = vadd.f32 0.0, %v5145
        %5147 = vmatmul.bf16.gmra.mxu0 %v4919
        %v5148 = vpop.f32.mrf.mxu0
        %v5149 = vadd.f32 0.0, %v5148
        %v5150 = vpop.f32.mrf.mxu0
        %v5151 = vadd.f32 0.0, %v5150
        %5152 = vmatmul.bf16.gmra.mxu0 %v4923
        %v5153 = vpop.f32.mrf.mxu0
        %v5154 = vadd.f32 0.0, %v5153
        %v5155 = vpop.f32.mrf.mxu0
        %v5156 = vadd.f32 0.0, %v5155
        %5157 = vmatmul.bf16.gmra.mxu0 %v4927
        %v5158 = vpop.f32.mrf.mxu0
        %v5159 = vadd.f32 0.0, %v5158
        %v5160 = vpop.f32.mrf.mxu0
        %v5161 = vadd.f32 0.0, %v5160
        %5162 = vmatmul.bf16.gmra.mxu0 %v4931
        %v5163 = vpop.f32.mrf.mxu0
        %v5164 = vadd.f32 0.0, %v5163
        %v5165 = vpop.f32.mrf.mxu0
        %v5166 = vadd.f32 0.0, %v5165
        %5167 = vmatmul.bf16.gmra.mxu0 %v4935
        %v5168 = vpop.f32.mrf.mxu0
        %v5169 = vadd.f32 0.0, %v5168
        %v5170 = vpop.f32.mrf.mxu0
        %v5171 = vadd.f32 0.0, %v5170
        %5172 = vmatmul.bf16.gmra.mxu0 %v4939
        %v5173 = vpop.f32.mrf.mxu0
        %v5174 = vadd.f32 0.0, %v5173
        %v5175 = vpop.f32.mrf.mxu0
        %v5176 = vadd.f32 0.0, %v5175
        %5177 = vmatmul.bf16.gmra.mxu0 %v4943
        %v5178 = vpop.f32.mrf.mxu0
        %v5179 = vadd.f32 0.0, %v5178
        %v5180 = vpop.f32.mrf.mxu0
        %v5181 = vadd.f32 0.0, %v5180
        %5182 = vmatmul.bf16.gmra.mxu0 %v4947
        %v5183 = vpop.f32.mrf.mxu0
        %v5184 = vadd.f32 0.0, %v5183
        %v5185 = vpop.f32.mrf.mxu0
        %v5186 = vadd.f32 0.0, %v5185
        %5187 = vmatmul.bf16.gmra.mxu0 %v4951
        %v5188 = vpop.f32.mrf.mxu0
        %v5189 = vadd.f32 0.0, %v5188
        %v5190 = vpop.f32.mrf.mxu0
        %v5191 = vadd.f32 0.0, %v5190
        %5192 = vmatmul.bf16.gmra.mxu0 %v4955
        %v5193 = vpop.f32.mrf.mxu0
        %v5194 = vadd.f32 0.0, %v5193
        %v5195 = vpop.f32.mrf.mxu0
        %v5196 = vadd.f32 0.0, %v5195
        %5197 = vmatmul.bf16.gmra.mxu0 %v4959
        %v5198 = vpop.f32.mrf.mxu0
        %v5199 = vadd.f32 0.0, %v5198
        %v5200 = vpop.f32.mrf.mxu0
        %v5201 = vadd.f32 0.0, %v5200
        %5202 = vmatmul.bf16.gmra.mxu0 %v4963
        %v5203 = vpop.f32.mrf.mxu0
        %v5204 = vadd.f32 0.0, %v5203
        %v5205 = vpop.f32.mrf.mxu0
        %v5206 = vadd.f32 0.0, %v5205
        %5207 = vmatmul.bf16.gmra.mxu0 %v4967
        %v5208 = vpop.f32.mrf.mxu0
        %v5209 = vadd.f32 0.0, %v5208
        %v5210 = vpop.f32.mrf.mxu0
        %v5211 = vadd.f32 0.0, %v5210
        %5212 = vdwg.mxu0
        %5213 = vmatpush.bf16.msra.mxu0 0
        %5214 = vmatpush.bf16.msra.mxu0 0
        %5215 = vmatpush.bf16.msra.mxu0 0
        %5216 = vmatpush.bf16.msra.mxu0 0
        %5217 = vmatpush.bf16.msra.mxu0 %v5047
        %5218 = vmatpush.bf16.msra.mxu0 %v5046
        %5219 = vmatpush.bf16.msra.mxu0 %v5045
        %5220 = vmatpush.bf16.msra.mxu0 %v5044
        %5221 = vmatmul.bf16.gmra.mxu0 %v5061
        %v5222 = vpop.f32.mrf.mxu0
        %v5223 = vadd.f32 %v5124, %v5222
        %v5224 = vpop.f32.mrf.mxu0
        %v5225 = vadd.f32 %v5126, %v5224
        %5226 = vmatmul.bf16.gmra.mxu0 %v5064
        %v5227 = vpop.f32.mrf.mxu0
        %v5228 = vadd.f32 %v5129, %v5227
        %v5229 = vpop.f32.mrf.mxu0
        %v5230 = vadd.f32 %v5131, %v5229
        %5231 = vmatmul.bf16.gmra.mxu0 %v5067
        %v5232 = vpop.f32.mrf.mxu0
        %v5233 = vadd.f32 %v5134, %v5232
        %v5234 = vpop.f32.mrf.mxu0
        %v5235 = vadd.f32 %v5136, %v5234
        %5236 = vmatmul.bf16.gmra.mxu0 %v5070
        %v5237 = vpop.f32.mrf.mxu0
        %v5238 = vadd.f32 %v5139, %v5237
        %v5239 = vpop.f32.mrf.mxu0
        %v5240 = vadd.f32 %v5141, %v5239
        %5241 = vmatmul.bf16.gmra.mxu0 %v5073
        %v5242 = vpop.f32.mrf.mxu0
        %v5243 = vadd.f32 %v5144, %v5242
        %v5244 = vpop.f32.mrf.mxu0
        %v5245 = vadd.f32 %v5146, %v5244
        %5246 = vmatmul.bf16.gmra.mxu0 %v5076
        %v5247 = vpop.f32.mrf.mxu0
        %v5248 = vadd.f32 %v5149, %v5247
        %v5249 = vpop.f32.mrf.mxu0
        %v5250 = vadd.f32 %v5151, %v5249
        %5251 = vmatmul.bf16.gmra.mxu0 %v5079
        %v5252 = vpop.f32.mrf.mxu0
        %v5253 = vadd.f32 %v5154, %v5252
        %v5254 = vpop.f32.mrf.mxu0
        %v5255 = vadd.f32 %v5156, %v5254
        %5256 = vmatmul.bf16.gmra.mxu0 %v5082
        %v5257 = vpop.f32.mrf.mxu0
        %v5258 = vadd.f32 %v5159, %v5257
        %v5259 = vpop.f32.mrf.mxu0
        %v5260 = vadd.f32 %v5161, %v5259
        %5261 = vmatmul.bf16.gmra.mxu0 %v5085
        %v5262 = vpop.f32.mrf.mxu0
        %v5263 = vadd.f32 %v5164, %v5262
        %v5264 = vpop.f32.mrf.mxu0
        %v5265 = vadd.f32 %v5166, %v5264
        %5266 = vmatmul.bf16.gmra.mxu0 %v5088
        %v5267 = vpop.f32.mrf.mxu0
        %v5268 = vadd.f32 %v5169, %v5267
        %v5269 = vpop.f32.mrf.mxu0
        %v5270 = vadd.f32 %v5171, %v5269
        %5271 = vmatmul.bf16.gmra.mxu0 %v5091
        %v5272 = vpop.f32.mrf.mxu0
        %v5273 = vadd.f32 %v5174, %v5272
        %v5274 = vpop.f32.mrf.mxu0
        %v5275 = vadd.f32 %v5176, %v5274
        %5276 = vmatmul.bf16.gmra.mxu0 %v5094
        %v5277 = vpop.f32.mrf.mxu0
        %v5278 = vadd.f32 %v5179, %v5277
        %v5279 = vpop.f32.mrf.mxu0
        %v5280 = vadd.f32 %v5181, %v5279
        %5281 = vmatmul.bf16.gmra.mxu0 %v5097
        %v5282 = vpop.f32.mrf.mxu0
        %v5283 = vadd.f32 %v5184, %v5282
        %v5284 = vpop.f32.mrf.mxu0
        %v5285 = vadd.f32 %v5186, %v5284
        %5286 = vmatmul.bf16.gmra.mxu0 %v5100
        %v5287 = vpop.f32.mrf.mxu0
        %v5288 = vadd.f32 %v5189, %v5287
        %v5289 = vpop.f32.mrf.mxu0
        %v5290 = vadd.f32 %v5191, %v5289
        %5291 = vmatmul.bf16.gmra.mxu0 %v5103
        %v5292 = vpop.f32.mrf.mxu0
        %v5293 = vadd.f32 %v5194, %v5292
        %v5294 = vpop.f32.mrf.mxu0
        %v5295 = vadd.f32 %v5196, %v5294
        %5296 = vmatmul.bf16.gmra.mxu0 %v5106
        %v5297 = vpop.f32.mrf.mxu0
        %v5298 = vadd.f32 %v5199, %v5297
        %v5299 = vpop.f32.mrf.mxu0
        %v5300 = vadd.f32 %v5201, %v5299
        %5301 = vmatmul.bf16.gmra.mxu0 %v5109
        %v5302 = vpop.f32.mrf.mxu0
        %v5303 = vadd.f32 %v5204, %v5302
        %v5304 = vpop.f32.mrf.mxu0
        %v5305 = vadd.f32 %v5206, %v5304
        %5306 = vmatmul.bf16.gmra.mxu0 %v5112
        %v5307 = vpop.f32.mrf.mxu0
        %v5308 = vadd.f32 %v5209, %v5307
        %v5309 = vpop.f32.mrf.mxu0
        %v5310 = vadd.f32 %v5211, %v5309
        %5311 = vdwg.mxu0
        %v5312 = vadd.f32 %v4359, %v5223
        %v5313 = vadd.f32 %v4361, %v5225
        %v5314 = vadd.f32 %v4364, %v5228
        %v5315 = vadd.f32 %v4366, %v5230
        %v5316 = vadd.f32 %v4369, %v5233
        %v5317 = vadd.f32 %v4371, %v5235
        %v5318 = vadd.f32 %v4374, %v5238
        %v5319 = vadd.f32 %v4376, %v5240
        %v5320 = vadd.f32 %v4379, %v5243
        %v5321 = vadd.f32 %v4381, %v5245
        %v5322 = vadd.f32 %v4384, %v5248
        %v5323 = vadd.f32 %v4386, %v5250
        %v5324 = vadd.f32 %v4389, %v5253
        %v5325 = vadd.f32 %v4391, %v5255
        %v5326 = vadd.f32 %v4394, %v5258
        %v5327 = vadd.f32 %v4396, %v5260
        %v5328 = vadd.f32 %v4399, %v5263
        %v5329 = vadd.f32 %v4401, %v5265
        %v5330 = vadd.f32 %v4404, %v5268
        %v5331 = vadd.f32 %v4406, %v5270
        %v5332 = vadd.f32 %v4409, %v5273
        %v5333 = vadd.f32 %v4411, %v5275
        %v5334 = vadd.f32 %v4414, %v5278
        %v5335 = vadd.f32 %v4416, %v5280
        %v5336 = vadd.f32 %v4419, %v5283
        %v5337 = vadd.f32 %v4421, %v5285
        %v5338 = vadd.f32 %v4424, %v5288
        %v5339 = vadd.f32 %v4426, %v5290
        %v5340 = vadd.f32 %v4429, %v5293
        %v5341 = vadd.f32 %v4431, %v5295
        %v5342 = vadd.f32 %v4434, %v5298
        %v5343 = vadd.f32 %v4436, %v5300
        %v5344 = vadd.f32 %v4439, %v5303
        %v5345 = vadd.f32 %v4441, %v5305
        %v5346 = vadd.f32 %v4444, %v5308
        %v5347 = vadd.f32 %v4446, %v5310
        %v5348 = vld [vmem:[%s267] sm:$0x1]
        %v5350 = vperm.slane %v5348, 0
        %v5352 = vadd.f32 %v5312, %v5350
        %v5353 = vadd.f32 %v5313, %v5350
        %v5354 = vadd.f32 %v5314, %v5350
        %v5355 = vadd.f32 %v5315, %v5350
        %v5356 = vadd.f32 %v5316, %v5350
        %v5357 = vadd.f32 %v5317, %v5350
        %v5358 = vadd.f32 %v5318, %v5350
        %v5359 = vadd.f32 %v5319, %v5350
        %v5360 = vadd.f32 %v5320, %v5350
        %v5361 = vadd.f32 %v5321, %v5350
        %v5362 = vadd.f32 %v5322, %v5350
        %v5363 = vadd.f32 %v5323, %v5350
        %v5364 = vadd.f32 %v5324, %v5350
        %v5365 = vadd.f32 %v5325, %v5350
        %v5366 = vadd.f32 %v5326, %v5350
        %v5367 = vadd.f32 %v5327, %v5350
        %v5368 = vadd.f32 %v5328, %v5350
        %v5369 = vadd.f32 %v5329, %v5350
        %v5370 = vadd.f32 %v5330, %v5350
        %v5371 = vadd.f32 %v5331, %v5350
        %v5372 = vadd.f32 %v5332, %v5350
        %v5373 = vadd.f32 %v5333, %v5350
        %v5374 = vadd.f32 %v5334, %v5350
        %v5375 = vadd.f32 %v5335, %v5350
        %v5376 = vadd.f32 %v5336, %v5350
        %v5377 = vadd.f32 %v5337, %v5350
        %v5378 = vadd.f32 %v5338, %v5350
        %v5379 = vadd.f32 %v5339, %v5350
        %v5380 = vadd.f32 %v5340, %v5350
        %v5381 = vadd.f32 %v5341, %v5350
        %v5382 = vadd.f32 %v5342, %v5350
        %v5383 = vadd.f32 %v5343, %v5350
        %v5384 = vadd.f32 %v5344, %v5350
        %v5385 = vadd.f32 %v5345, %v5350
        %v5386 = vadd.f32 %v5346, %v5350
        %v5387 = vadd.f32 %v5347, %v5350
        %v5388 = vmax.f32 %v5352, 0.0
        %v5389 = vmax.f32 %v5353, 0.0
        %v5390 = vmax.f32 %v5354, 0.0
        %v5391 = vmax.f32 %v5355, 0.0
        %v5392 = vmax.f32 %v5356, 0.0
        %v5393 = vmax.f32 %v5357, 0.0
        %v5394 = vmax.f32 %v5358, 0.0
        %v5395 = vmax.f32 %v5359, 0.0
        %v5396 = vmax.f32 %v5360, 0.0
        %v5397 = vmax.f32 %v5361, 0.0
        %v5398 = vmax.f32 %v5362, 0.0
        %v5399 = vmax.f32 %v5363, 0.0
        %v5400 = vmax.f32 %v5364, 0.0
        %v5401 = vmax.f32 %v5365, 0.0
        %v5402 = vmax.f32 %v5366, 0.0
        %v5403 = vmax.f32 %v5367, 0.0
        %v5404 = vmax.f32 %v5368, 0.0
        %v5405 = vmax.f32 %v5369, 0.0
        %v5406 = vmax.f32 %v5370, 0.0
        %v5407 = vmax.f32 %v5371, 0.0
        %v5408 = vmax.f32 %v5372, 0.0
        %v5409 = vmax.f32 %v5373, 0.0
        %v5410 = vmax.f32 %v5374, 0.0
        %v5411 = vmax.f32 %v5375, 0.0
        %v5412 = vmax.f32 %v5376, 0.0
        %v5413 = vmax.f32 %v5377, 0.0
        %v5414 = vmax.f32 %v5378, 0.0
        %v5415 = vmax.f32 %v5379, 0.0
        %v5416 = vmax.f32 %v5380, 0.0
        %v5417 = vmax.f32 %v5381, 0.0
        %v5418 = vmax.f32 %v5382, 0.0
        %v5419 = vmax.f32 %v5383, 0.0
        %v5420 = vmax.f32 %v5384, 0.0
        %v5421 = vmax.f32 %v5385, 0.0
        %v5422 = vmax.f32 %v5386, 0.0
        %v5423 = vmax.f32 %v5387, 0.0
        %v5424 = vpack.c.bf16 %v5388, %v5388
        %v5425 = vpack.c.bf16 %v5389, %v5389
        %v5426 = vpack.c.bf16 %v5390, %v5390
        %v5427 = vpack.c.bf16 %v5391, %v5391
        %v5428 = vpack.c.bf16 %v5392, %v5392
        %v5429 = vpack.c.bf16 %v5393, %v5393
        %v5430 = vpack.c.bf16 %v5394, %v5394
        %v5431 = vpack.c.bf16 %v5395, %v5395
        %v5432 = vpack.c.bf16 %v5396, %v5396
        %v5433 = vpack.c.bf16 %v5397, %v5397
        %v5434 = vpack.c.bf16 %v5398, %v5398
        %v5435 = vpack.c.bf16 %v5399, %v5399
        %v5436 = vpack.c.bf16 %v5400, %v5400
        %v5437 = vpack.c.bf16 %v5401, %v5401
        %v5438 = vpack.c.bf16 %v5402, %v5402
        %v5439 = vpack.c.bf16 %v5403, %v5403
        %v5440 = vpack.c.bf16 %v5404, %v5404
        %v5441 = vpack.c.bf16 %v5405, %v5405
        %v5442 = vpack.c.bf16 %v5406, %v5406
        %v5443 = vpack.c.bf16 %v5407, %v5407
        %v5444 = vpack.c.bf16 %v5408, %v5408
        %v5445 = vpack.c.bf16 %v5409, %v5409
        %v5446 = vpack.c.bf16 %v5410, %v5410
        %v5447 = vpack.c.bf16 %v5411, %v5411
        %v5448 = vpack.c.bf16 %v5412, %v5412
        %v5449 = vpack.c.bf16 %v5413, %v5413
        %v5450 = vpack.c.bf16 %v5414, %v5414
        %v5451 = vpack.c.bf16 %v5415, %v5415
        %v5452 = vpack.c.bf16 %v5416, %v5416
        %v5453 = vpack.c.bf16 %v5417, %v5417
        %v5454 = vpack.c.bf16 %v5418, %v5418
        %v5455 = vpack.c.bf16 %v5419, %v5419
        %v5456 = vpack.c.bf16 %v5420, %v5420
        %v5457 = vpack.c.bf16 %v5421, %v5421
        %v5458 = vpack.c.bf16 %v5422, %v5422
        %v5459 = vpack.c.bf16 %v5423, %v5423
        %vm5460 = vcmask 519168
        %5461 = vst.msk [vmem:[%s255] sm:$0xf] %vm5460, %v5424
        %5462 = vst.msk [vmem:[%s255 + $0x4] sm:$0xf] %vm5460, %v5425
        %vm5466 = vcmask 1042432
        %vm5467 = vcmask 1046532
        %vm5468 = vmor %vm5466, %vm5467
        %v5469 = vrot.slane %v5426, 5
        %v5470 = vrot.slane %v5469, 4
        %v5471 = vrot.slane %v5427, 5
        %v5472 = vsel %vm5468, %v5470, %v5471
        %v5473 = vrot.slane %v5471, 4
        %v5474 = vrot.slane %v5428, 5
        %v5475 = vsel %vm5468, %v5473, %v5474
        %s5478 = scalar_lea.vmem %s255, 8 [#allocation4]
        %5479 = vst.msk [vmem:[%s5478] sm:$0xf] %vm5460, %v5472
        %5480 = vst.msk [vmem:[%s5478 + $0x4] sm:$0xf] %vm5460, %v5475
        %vm5483 = vcmask 1041408
        %vm5484 = vcmask 1045508
        %vm5485 = vmor %vm5483, %vm5484
        %v5486 = vrot.slane %v5428, 6
        %v5487 = vrot.slane %v5486, 4
        %v5488 = vrot.slane %v5429, 6
        %v5489 = vsel %vm5485, %v5487, %v5488
        %v5490 = vrot.slane %v5488, 4
        %v5491 = vrot.slane %v5430, 6
        %v5492 = vsel %vm5485, %v5490, %v5491
        %s5495 = scalar_lea.vmem %s255, 16 [#allocation4]
        %5496 = vst.msk [vmem:[%s5495] sm:$0xf] %vm5460, %v5489
        %5497 = vst.msk [vmem:[%s5495 + $0x4] sm:$0xf] %vm5460, %v5492
        %vm5500 = vcmask 1040384
        %vm5501 = vcmask 1044484
        %vm5502 = vmor %vm5500, %vm5501
        %v5503 = vrot.slane %v5430, 7
        %v5504 = vrot.slane %v5503, 4
        %v5505 = vrot.slane %v5431, 7
        %v5506 = vsel %vm5502, %v5504, %v5505
        %v5507 = vrot.slane %v5505, 4
        %v5508 = vrot.slane %v5432, 7
        %v5509 = vsel %vm5502, %v5507, %v5508
        %s5512 = scalar_lea.vmem %s255, 24 [#allocation4]
        %5513 = vst.msk [vmem:[%s5512] sm:$0xf] %vm5460, %v5506
        %5514 = vst.msk [vmem:[%s5512 + $0x4] sm:$0xf] %vm5460, %v5509
        %s5515 = scalar_lea.vmem %s255, 32 [#allocation4]
        %5516 = vst.msk [vmem:[%s5515] sm:$0xf] %vm5460, %v5433
        %5517 = vst.msk [vmem:[%s5515 + $0x4] sm:$0xf] %vm5460, %v5434
        %v5521 = vrot.slane %v5435, 5
        %v5522 = vrot.slane %v5521, 4
        %v5523 = vrot.slane %v5436, 5
        %v5524 = vsel %vm5468, %v5522, %v5523
        %v5525 = vrot.slane %v5523, 4
        %v5526 = vrot.slane %v5437, 5
        %v5527 = vsel %vm5468, %v5525, %v5526
        %s5530 = scalar_lea.vmem %s255, 40 [#allocation4]
        %5531 = vst.msk [vmem:[%s5530] sm:$0xf] %vm5460, %v5524
        %5532 = vst.msk [vmem:[%s5530 + $0x4] sm:$0xf] %vm5460, %v5527
        %v5535 = vrot.slane %v5437, 6
        %v5536 = vrot.slane %v5535, 4
        %v5537 = vrot.slane %v5438, 6
        %v5538 = vsel %vm5485, %v5536, %v5537
        %v5539 = vrot.slane %v5537, 4
        %v5540 = vrot.slane %v5439, 6
        %v5541 = vsel %vm5485, %v5539, %v5540
        %s5544 = scalar_lea.vmem %s255, 48 [#allocation4]
        %5545 = vst.msk [vmem:[%s5544] sm:$0xf] %vm5460, %v5538
        %5546 = vst.msk [vmem:[%s5544 + $0x4] sm:$0xf] %vm5460, %v5541
        %v5549 = vrot.slane %v5439, 7
        %v5550 = vrot.slane %v5549, 4
        %v5551 = vrot.slane %v5440, 7
        %v5552 = vsel %vm5502, %v5550, %v5551
        %v5553 = vrot.slane %v5551, 4
        %v5554 = vrot.slane %v5441, 7
        %v5555 = vsel %vm5502, %v5553, %v5554
        %s5558 = scalar_lea.vmem %s255, 56 [#allocation4]
        %5559 = vst.msk [vmem:[%s5558] sm:$0xf] %vm5460, %v5552
        %5560 = vst.msk [vmem:[%s5558 + $0x4] sm:$0xf] %vm5460, %v5555
        %s5561 = scalar_lea.vmem %s255, 64 [#allocation4]
        %5562 = vst.msk [vmem:[%s5561] sm:$0xf] %vm5460, %v5442
        %5563 = vst.msk [vmem:[%s5561 + $0x4] sm:$0xf] %vm5460, %v5443
        %v5567 = vrot.slane %v5444, 5
        %v5568 = vrot.slane %v5567, 4
        %v5569 = vrot.slane %v5445, 5
        %v5570 = vsel %vm5468, %v5568, %v5569
        %v5571 = vrot.slane %v5569, 4
        %v5572 = vrot.slane %v5446, 5
        %v5573 = vsel %vm5468, %v5571, %v5572
        %s5576 = scalar_lea.vmem %s255, 72 [#allocation4]
        %5577 = vst.msk [vmem:[%s5576] sm:$0xf] %vm5460, %v5570
        %5578 = vst.msk [vmem:[%s5576 + $0x4] sm:$0xf] %vm5460, %v5573
        %v5581 = vrot.slane %v5446, 6
        %v5582 = vrot.slane %v5581, 4
        %v5583 = vrot.slane %v5447, 6
        %v5584 = vsel %vm5485, %v5582, %v5583
        %v5585 = vrot.slane %v5583, 4
        %v5586 = vrot.slane %v5448, 6
        %v5587 = vsel %vm5485, %v5585, %v5586
        %s5590 = scalar_lea.vmem %s255, 80 [#allocation4]
        %5591 = vst.msk [vmem:[%s5590] sm:$0xf] %vm5460, %v5584
        %5592 = vst.msk [vmem:[%s5590 + $0x4] sm:$0xf] %vm5460, %v5587
        %v5595 = vrot.slane %v5448, 7
        %v5596 = vrot.slane %v5595, 4
        %v5597 = vrot.slane %v5449, 7
        %v5598 = vsel %vm5502, %v5596, %v5597
        %v5599 = vrot.slane %v5597, 4
        %v5600 = vrot.slane %v5450, 7
        %v5601 = vsel %vm5502, %v5599, %v5600
        %s5604 = scalar_lea.vmem %s255, 88 [#allocation4]
        %5605 = vst.msk [vmem:[%s5604] sm:$0xf] %vm5460, %v5598
        %5606 = vst.msk [vmem:[%s5604 + $0x4] sm:$0xf] %vm5460, %v5601
        %s5607 = scalar_lea.vmem %s255, 96 [#allocation4]
        %5608 = vst.msk [vmem:[%s5607] sm:$0xf] %vm5460, %v5451
        %5609 = vst.msk [vmem:[%s5607 + $0x4] sm:$0xf] %vm5460, %v5452
        %v5613 = vrot.slane %v5453, 5
        %v5614 = vrot.slane %v5613, 4
        %v5615 = vrot.slane %v5454, 5
        %v5616 = vsel %vm5468, %v5614, %v5615
        %v5617 = vrot.slane %v5615, 4
        %v5618 = vrot.slane %v5455, 5
        %v5619 = vsel %vm5468, %v5617, %v5618
        %s5622 = scalar_lea.vmem %s255, 104 [#allocation4]
        %5623 = vst.msk [vmem:[%s5622] sm:$0xf] %vm5460, %v5616
        %5624 = vst.msk [vmem:[%s5622 + $0x4] sm:$0xf] %vm5460, %v5619
        %v5627 = vrot.slane %v5455, 6
        %v5628 = vrot.slane %v5627, 4
        %v5629 = vrot.slane %v5456, 6
        %v5630 = vsel %vm5485, %v5628, %v5629
        %v5631 = vrot.slane %v5629, 4
        %v5632 = vrot.slane %v5457, 6
        %v5633 = vsel %vm5485, %v5631, %v5632
        %s5636 = scalar_lea.vmem %s255, 112 [#allocation4]
        %5637 = vst.msk [vmem:[%s5636] sm:$0xf] %vm5460, %v5630
        %5638 = vst.msk [vmem:[%s5636 + $0x4] sm:$0xf] %vm5460, %v5633
        %v5641 = vrot.slane %v5457, 7
        %v5642 = vrot.slane %v5641, 4
        %v5643 = vrot.slane %v5458, 7
        %v5644 = vsel %vm5502, %v5642, %v5643
        %v5645 = vrot.slane %v5643, 4
        %v5646 = vrot.slane %v5459, 7
        %v5647 = vsel %vm5502, %v5645, %v5646
        %s5650 = scalar_lea.vmem %s255, 120 [#allocation4]
        %5651 = vst.msk [vmem:[%s5650] sm:$0xf] %vm5460, %v5644
        %5652 = vst.msk [vmem:[%s5650 + $0x4] sm:$0xf] %vm5460, %v5647
        %s5653 = sand.u32 %s161, 1
        %s5654 = scalar_lea.sflag [#allocation5], %s5653
        %s5655 = sand.u32 %s161, 1
        %s5656 = smul.addr %s5655, 128
        %s5657 = scalar_lea.vmem [#allocation4], %s5656
        // Predicated region
        $region45: #{tpu_custom_call.1} parent=39 // pred_check
          %p5658 = pneg %p171
        $region46: #{tpu_custom_call.1} parent=39 // pred_check_branch
          %5660 = sbr.rel (%p5658) target = $region48
        $region47: #{tpu_custom_call.1} parent=39 // pred_region
          %5662 = vsyncadd %s5654, 0
          %s5663 = smul.addr %s23, 32
          %s5664 = sadd.s32 %s24, %s5663
          %s5665 = smul.addr %s5664, 4
          %s5666 = scalar_lea.hbm %s5, %s5665
          %s5667 = sshll.u32 %s5657, 4
          %s5668 = int_to_ptr.vmem [resolvable:$true] %s5667
          %s5669 = sshll.u32 %s5666, 4
          %s5670 = int_to_ptr.hbm [resolvable:$true] %s5669
          %5675 = dma.vmem_to_hbm [thread:$0]  %s5668, 2048, %s5670, %s5654, 64, 64, 4
        $region48: #{tpu_custom_call.1} parent=39 // pred_fallthru
          _
      $region40: #{tpu_custom_call.1} parent=5 // pred_fallthru
        _
      %p5676 = scmp.le.s32.totalorder 2, %s14
      // Predicated region
      $region49: #{tpu_custom_call.1} parent=5 // pred_check
        %p5677 = pneg %p5676
      $region50: #{tpu_custom_call.1} parent=5 // pred_check_branch
        %5679 = sbr.rel (%p5677) target = $region52
      $region51: #{tpu_custom_call.1} parent=5 // pred_region
        %s5680 = ssub.s32 %s14, 2
        // Predicated region
        $region53: #{tpu_custom_call.1} parent=51 // pred_check
          %p5681 = pneg %p177
        $region54: #{tpu_custom_call.1} parent=51 // pred_check_branch
          %5683 = sbr.rel (%p5681) target = $region56
        $region55: #{tpu_custom_call.1} parent=51 // pred_region
          %s5684 = sand.u32 %s162, 1
          %s5685 = scalar_lea.sflag [#allocation5], %s5684
          %s5686 = sand.u32 %s162, 1
          %s5687 = smul.addr %s5686, 128
          %s5688 = scalar_lea.vmem [#allocation4], %s5687
          %5690 = dma.done %s5685, 2048
        $region56: #{tpu_custom_call.1} parent=51 // pred_fallthru
          _
      $region52: #{tpu_custom_call.1} parent=5 // pred_fallthru
        _
    $region6: #{tpu_custom_call.1} parent=1 // loop_footer
      %s18 = sadd.s32 1, %s14
    $region7: #{tpu_custom_call.1} parent=1 // loop_footer_branch
      %13 = sbr.rel target = $region3
    $region8: #{tpu_custom_call.1} parent=1 // loop_exit
      _
    %5691 = vsyncpa [#allocation5], 1
    %s5692 = scalar_lea.sflag [#allocation5], 1
    %5693 = vsyncpa %s5692, 1

</llo_original>
